<compile_context>
chip_gen: v7x
topology: tpu7x:2x2x1
jax: 0.10.0
libtpu: 0.0.40
codegen_flags: <defaults>
</compile_context>

<pallas_src>
import jax
import jax.numpy as jnp
from jax.experimental import pallas as pl
from jax.experimental.pallas import tpu as pltpu

GEM_EPS = 1e-6


# ---------------------------------------------------------------------------
# Fused kernel: level-4 build, level-3 build, GeM accumulation, fc — per batch.
# Token orders (all chosen in the wrapper, GeM is order-invariant):
#   level 5 : t5  = h5*W5 + w5                         (natural)
#   level 4 : t4q = q5*n5 + t5,  q5 = 2*a5 + b5        (quadrant order)
#   level 3 : t3q = q4*n4 + t4q, q4 = 2*a4 + b4        (nested quadrant order)
# ---------------------------------------------------------------------------
def _make_fused_kernel(n5):
    """n5 = H5*W5 tokens of the top pyramid level (must be a multiple of 8)."""
    n4 = 4 * n5           # tokens after the first 2x2 upsample
    n3 = 16 * n5          # tokens of the final (level-3) map
    inv_n3 = 1.0 / float(n3)

    def kernel(p_ref,                                  # scalar prefetch: GeM p
               fm5_ref, fm4_ref, fm3_ref,              # activations, quadrant order, bf16
               wc5_ref, w4_ref, b4_ref,                # level-4 weights (conv5∘tconv5 composed)
               wt4_ref, w3_ref, b3_ref,                # level-3 weights
               wf_ref, bf_ref,                         # fc weights
               o_ref,                                  # (1, 1, Cout) output
               xf4_ref):                               # (n4, L) f32 VMEM scratch
        p = p_ref[0]

        # ---- level 4: xf4 = tconv5(conv5(fm5)) + conv4(fm4), fully VMEM resident
        fm5 = fm5_ref[0]                               # (n5, C5) bf16
        lat4 = jnp.dot(fm4_ref[0], w4_ref[...],
                       preferred_element_type=jnp.float32)        # (n4, L) f32
        for q in range(4):                             # q = 2*a + b (upsample quadrant)
            up4 = jnp.dot(fm5, wc5_ref[q],
                          preferred_element_type=jnp.float32)     # (n5, L)
            xf4_ref[q * n5:(q + 1) * n5, :] = (
                lat4[q * n5:(q + 1) * n5, :] + up4 + b4_ref[q])

        # ---- level 3 + GeM accumulation (xf3 is never materialized in HBM)
        xf4 = xf4_ref[...].astype(jnp.bfloat16)        # (n4, L)
        fm3 = fm3_ref[0]                               # (n3, C3) bf16
        acc = jnp.zeros((1, xf4.shape[1]), jnp.float32)
        for q in range(4):                             # q = 2*a' + b'
            up3 = jnp.dot(xf4, wt4_ref[q],
                          preferred_element_type=jnp.float32)     # (n4, L)
            lat3 = jnp.dot(fm3[q * n4:(q + 1) * n4, :], w3_ref[...],
                           preferred_element_type=jnp.float32)    # (n4, L)
            xf3 = up3 + lat3 + b3_ref[...]
            xc = jnp.maximum(xf3, GEM_EPS)             # clamp(min=eps)
            acc = acc + jnp.sum(jnp.exp(p * jnp.log(xc)), axis=0, keepdims=True)

        # ---- GeM finalize + fused fc block
        pooled = jnp.exp(jnp.log(acc * inv_n3) / p)    # (1, L) f32
        pooled8 = jnp.broadcast_to(pooled.astype(jnp.bfloat16),
                                   (8, pooled.shape[1]))
        fc = jnp.dot(pooled8, wf_ref[...], preferred_element_type=jnp.float32)
        out = fc[0:1, :] + bf_ref[...]                 # (1, Cout)
        o_ref[...] = out.reshape(o_ref.shape).astype(o_ref.dtype)

    return kernel


# ---------------------------------------------------------------------------
# Wrapper: weight pre-composition, quadrant-order input layout, one pallas_call.
# ---------------------------------------------------------------------------
def fpn_gem_forward(fm3, fm4, fm5, params):
    B, H5, W5, C5 = fm5.shape
    _, H4, W4, C4 = fm4.shape
    _, H3, W3, C3 = fm3.shape
    assert (H4, W4) == (2 * H5, 2 * W5) and (H3, W3) == (4 * H5, 4 * W5)
    n5 = H5 * W5
    assert n5 % 8 == 0, "top-level token count must be sublane aligned"
    n4, n3 = 4 * n5, 16 * n5
    L = params["w5"].shape[1]
    Cout = params["wf"].shape[1]

    # --- pre-compose conv1x1['5'] ∘ tconv['5'] into one matmul per quadrant.
    w5, b5 = params["w5"], params["b5"]
    wt5, bt5 = params["wt5"], params["bt5"]            # (L, L, 2, 2), (L,)
    wc5 = jnp.stack([w5 @ wt5[:, :, a, b] for a in (0, 1) for b in (0, 1)]
                    ).astype(jnp.bfloat16)                          # (4, C5, L)
    b4c = jnp.stack([(b5 @ wt5[:, :, a, b] + bt5 + params["b4"])[None, :]
                     for a in (0, 1) for b in (0, 1)])              # (4, 1, L) f32
    wt4 = jnp.stack([params["wt4"][:, :, a, b] for a in (0, 1) for b in (0, 1)]
                    ).astype(jnp.bfloat16)                          # (4, L, L)
    b3c = (params["b3"] + params["bt4"])[None, :]                   # (1, L) f32
    w4 = params["w4"].astype(jnp.bfloat16)
    w3 = params["w3"].astype(jnp.bfloat16)
    wf = params["wf"].astype(jnp.bfloat16)
    bf2 = params["bf"][None, :].astype(jnp.float32)

    # --- inputs: tokens in (nested) quadrant order, bf16 (halves DMA bytes).
    fm5_t = fm5.reshape(B, n5, C5).astype(jnp.bfloat16)
    fm4_q = jnp.transpose(fm4.reshape(B, H5, 2, W5, 2, C4),
                          (0, 2, 4, 1, 3, 5)).reshape(B, n4, C4).astype(jnp.bfloat16)
    fm3_qq = jnp.transpose(fm3.reshape(B, H5, 2, 2, W5, 2, 2, C3),
                           (0, 3, 6, 2, 5, 1, 4, 7)).reshape(B, n3, C3).astype(jnp.bfloat16)
    p_arr = jnp.asarray(params["p"], jnp.float32).reshape(1)

    # --- right-sized VMEM budget: double-buffered blocks + scratch + temporaries.
    def nbytes(a):
        return a.size * a.dtype.itemsize
    block_bytes = (nbytes(fm5_t) // B + nbytes(fm4_q) // B + nbytes(fm3_qq) // B
                   + nbytes(wc5) + nbytes(w4) + nbytes(b4c) + nbytes(wt4)
                   + nbytes(w3) + nbytes(b3c) + nbytes(wf) + nbytes(bf2)
                   + Cout * 4)
    vmem_limit = int(2 * block_bytes + n4 * L * 4 + (4 << 20))

    grid_spec = pltpu.PrefetchScalarGridSpec(
        num_scalar_prefetch=1,
        grid=(B,),
        in_specs=[
            pl.BlockSpec((1, n5, C5), lambda b, _p: (b, 0, 0)),   # fm5 tokens
            pl.BlockSpec((1, n4, C4), lambda b, _p: (b, 0, 0)),   # fm4, quadrant order
            pl.BlockSpec((1, n3, C3), lambda b, _p: (b, 0, 0)),   # fm3, nested quadrants
            pl.BlockSpec((4, C5, L), lambda b, _p: (0, 0, 0)),    # composed conv5∘tconv5
            pl.BlockSpec((C4, L), lambda b, _p: (0, 0)),          # w4
            pl.BlockSpec((4, 1, L), lambda b, _p: (0, 0, 0)),     # composed level-4 bias
            pl.BlockSpec((4, L, L), lambda b, _p: (0, 0, 0)),     # tconv4 per-quadrant
            pl.BlockSpec((C3, L), lambda b, _p: (0, 0)),          # w3
            pl.BlockSpec((1, L), lambda b, _p: (0, 0)),           # level-3 bias
            pl.BlockSpec((L, Cout), lambda b, _p: (0, 0)),        # fc weight
            pl.BlockSpec((1, Cout), lambda b, _p: (0, 0)),        # fc bias
        ],
        out_specs=pl.BlockSpec((1, 1, Cout), lambda b, _p: (b, 0, 0)),
        scratch_shapes=[pltpu.VMEM((n4, L), jnp.float32)],
    )

    out = pl.pallas_call(
        _make_fused_kernel(n5),
        out_shape=jax.ShapeDtypeStruct((B, 1, Cout), jnp.float32),
        grid_spec=grid_spec,
        compiler_params=pltpu.CompilerParams(
            dimension_semantics=("parallel",),        # B >= 2 -> both v7x TCs busy
            vmem_limit_bytes=vmem_limit),
    )(p_arr, fm5_t, fm4_q, fm3_qq, wc5, w4, b4c, wt4, w3, b3c, wf, bf2)
    return out.reshape(B, Cout)


# ---------------------------------------------------------------------------
# Pure-JAX f32 reference (natural layout, un-composed weights)
# ---------------------------------------------------------------------------
def reference_forward(fm3, fm4, fm5, params):
    def conv(x, w, b, res=None):
        y = jnp.einsum("bhwc,cd->bhwd", x, w) + b
        return y if res is None else y + res

    def tconv(x, wt, bt):
        B, H, W, _ = x.shape
        Cout = wt.shape[1]
        y = jnp.einsum("bhwc,cdij->bhwijd", x, wt)
        y = jnp.transpose(y, (0, 1, 3, 2, 4, 5)).reshape(B, 2 * H, 2 * W, Cout)
        return y + bt

    xf = conv(fm5, params["w5"], params["b5"])
    xf = conv(fm4, params["w4"], params["b4"],
              res=tconv(xf, params["wt5"], params["bt5"]))
    xf = conv(fm3, params["w3"], params["b3"],
              res=tconv(xf, params["wt4"], params["bt4"]))
    xc = jnp.maximum(xf, GEM_EPS)
    pooled = jnp.mean(xc ** params["p"], axis=(1, 2)) ** (1.0 / params["p"])
    return pooled @ params["wf"] + params["bf"]


if __name__ == "__main__":
    key = jax.random.PRNGKey(0)
    B = 2
    lateral_dim = 128            # multiple of 128 -> lane-dense everywhere
    out_channels = 256
    layers = [64, 64, 128, 256, 512]
    H5 = W5 = 4                  # top-of-pyramid spatial size
    H4, W4, H3, W3 = 2 * H5, 2 * W5, 4 * H5, 4 * W5

    keys = jax.random.split(key, 15)

    # Synthetic backbone feature maps (channels-last), deterministic.
    fm3 = jax.random.normal(keys[0], (B, H3, W3, layers[2]), jnp.float32)
    fm4 = jax.random.normal(keys[1], (B, H4, W4, layers[3]), jnp.float32)
    fm5 = jax.random.normal(keys[2], (B, H5, W5, layers[4]), jnp.float32)

    def lin_init(k, cin, cout):
        return jax.random.normal(k, (cin, cout), jnp.float32) / jnp.sqrt(cin)

    params = {
        # lateral 1x1 convs (fh_conv1x1['3'], ['4'], ['5'])
        "w5": lin_init(keys[3], layers[4], lateral_dim),
        "b5": jax.random.normal(keys[4], (lateral_dim,), jnp.float32) * 0.1,
        "w4": lin_init(keys[5], layers[3], lateral_dim),
        "b4": jax.random.normal(keys[6], (lateral_dim,), jnp.float32) * 0.1,
        "w3": lin_init(keys[7], layers[2], lateral_dim),
        "b3": jax.random.normal(keys[8], (lateral_dim,), jnp.float32) * 0.1,
        # transposed convs (fh_tconvs['5'], ['4']); weight layout (Cin, Cout, 2, 2)
        "wt5": jax.random.normal(keys[9], (lateral_dim, lateral_dim, 2, 2),
                                 jnp.float32) / jnp.sqrt(lateral_dim),
        "bt5": jax.random.normal(keys[10], (lateral_dim,), jnp.float32) * 0.1,
        "wt4": jax.random.normal(keys[11], (lateral_dim, lateral_dim, 2, 2),
                                 jnp.float32) / jnp.sqrt(lateral_dim),
        "bt4": jax.random.normal(keys[12], (lateral_dim,), jnp.float32) * 0.1,
        # add_fc_block
        "wf": lin_init(keys[13], lateral_dim, out_channels),
        "bf": jax.random.normal(keys[14], (out_channels,), jnp.float32) * 0.1,
        # GeM learnable p
        "p": jnp.float32(3.0),
    }

    fwd = jax.jit(fpn_gem_forward)
    out = fwd(fm3, fm4, fm5, params)
    jax.block_until_ready(out)

    ref = reference_forward(fm3, fm4, fm5, params)
    assert out.shape == (B, out_channels)
    max_err = float(jnp.max(jnp.abs(out - ref)))
    assert jnp.allclose(out, ref, atol=5e-2, rtol=5e-2), f"max abs err {max_err}"

    print("KERNEL_OK")
</pallas_src>

<mosaic_0001>
module attributes {stable_mosaic.version = 11 : i64} {
  func.func @kernel(%arg0: i32, %arg1: memref<1xf32, #tpu.memory_space<smem>>, %arg2: memref<1x16x512xbf16, #tpu.memory_space<vmem>>, %arg3: memref<1x64x256xbf16, #tpu.memory_space<vmem>>, %arg4: memref<1x256x128xbf16, #tpu.memory_space<vmem>>, %arg5: memref<4x512x128xbf16, #tpu.memory_space<vmem>>, %arg6: memref<256x128xbf16, #tpu.memory_space<vmem>>, %arg7: memref<4x1x128xf32, #tpu.memory_space<vmem>>, %arg8: memref<4x128x128xbf16, #tpu.memory_space<vmem>>, %arg9: memref<128x128xbf16, #tpu.memory_space<vmem>>, %arg10: memref<1x128xf32, #tpu.memory_space<vmem>>, %arg11: memref<128x256xbf16, #tpu.memory_space<vmem>>, %arg12: memref<1x256xf32, #tpu.memory_space<vmem>>, %arg13: memref<1x1x256xf32, #tpu.memory_space<vmem>>, %arg14: memref<64x128xf32, #tpu.memory_space<vmem>>) attributes {dimension_semantics = [#tpu.dimension_semantics<parallel>], iteration_bounds = array<i64: 2>, scalar_prefetch = 1 : i64, scratch_operands = 1 : i64, tpu.core_type = #tpu.core_type<tc>, window_params = [{transform_indices = @transform_0, window_bounds = array<i64: 1, 16, 512>}, {transform_indices = @transform_1, window_bounds = array<i64: 1, 64, 256>}, {transform_indices = @transform_2, window_bounds = array<i64: 1, 256, 128>}, {pipeline_mode = #tpu.pipeline_mode<synchronous>, transform_indices = @transform_3, window_bounds = array<i64: 4, 512, 128>}, {pipeline_mode = #tpu.pipeline_mode<synchronous>, transform_indices = @transform_4, window_bounds = array<i64: 256, 128>}, {pipeline_mode = #tpu.pipeline_mode<synchronous>, transform_indices = @transform_5, window_bounds = array<i64: 4, 1, 128>}, {pipeline_mode = #tpu.pipeline_mode<synchronous>, transform_indices = @transform_6, window_bounds = array<i64: 4, 128, 128>}, {pipeline_mode = #tpu.pipeline_mode<synchronous>, transform_indices = @transform_7, window_bounds = array<i64: 128, 128>}, {pipeline_mode = #tpu.pipeline_mode<synchronous>, transform_indices = @transform_8, window_bounds = array<i64: 1, 128>}, {pipeline_mode = #tpu.pipeline_mode<synchronous>, transform_indices = @transform_9, window_bounds = array<i64: 128, 256>}, {pipeline_mode = #tpu.pipeline_mode<synchronous>, transform_indices = @transform_10, window_bounds = array<i64: 1, 256>}, {transform_indices = @transform_11, window_bounds = array<i64: 1, 1, 256>}]} {
    %c0 = arith.constant 0 : index
    %0 = memref.load %arg1[%c0] : memref<1xf32, #tpu.memory_space<smem>>
    %c0_0 = arith.constant 0 : index
    %c0_1 = arith.constant 0 : index
    %c0_2 = arith.constant 0 : index
    %1 = vector.load %arg2[%c0_0, %c0_1, %c0_2] : memref<1x16x512xbf16, #tpu.memory_space<vmem>>, vector<1x16x512xbf16>
    %2 = vector.shape_cast %1 : vector<1x16x512xbf16> to vector<16x512xbf16>
    %c0_3 = arith.constant 0 : index
    %c0_4 = arith.constant 0 : index
    %c0_5 = arith.constant 0 : index
    %3 = vector.load %arg3[%c0_3, %c0_4, %c0_5] : memref<1x64x256xbf16, #tpu.memory_space<vmem>>, vector<1x64x256xbf16>
    %4 = vector.shape_cast %3 : vector<1x64x256xbf16> to vector<64x256xbf16>
    %c0_6 = arith.constant 0 : index
    %c0_7 = arith.constant 0 : index
    %5 = vector.load %arg6[%c0_6, %c0_7] : memref<256x128xbf16, #tpu.memory_space<vmem>>, vector<256x128xbf16>
    %cst = arith.constant dense<0.000000e+00> : vector<64x128xf32>
    %6 = tpu.matmul %4, %5, %cst {dimension_numbers = #tpu.dot_dimension_numbers<[1], [0], [0], [1], [0, 0, 1, 1], [], []>} : vector<64x256xbf16>, vector<256x128xbf16>, vector<64x128xf32> -> vector<64x128xf32>
    %c0_8 = arith.constant 0 : index
    %c0_9 = arith.constant 0 : index
    %c0_10 = arith.constant 0 : index
    %7 = vector.load %arg5[%c0_8, %c0_9, %c0_10] : memref<4x512x128xbf16, #tpu.memory_space<vmem>>, vector<1x512x128xbf16>
    %8 = vector.shape_cast %7 : vector<1x512x128xbf16> to vector<512x128xbf16>
    %cst_11 = arith.constant dense<0.000000e+00> : vector<16x128xf32>
    %9 = tpu.matmul %2, %8, %cst_11 {dimension_numbers = #tpu.dot_dimension_numbers<[1], [0], [0], [1], [0, 0, 1, 1], [], []>} : vector<16x512xbf16>, vector<512x128xbf16>, vector<16x128xf32> -> vector<16x128xf32>
    %10 = vector.extract_strided_slice %6 {offsets = [0, 0], sizes = [16, 128], strides = [1, 1]} : vector<64x128xf32> to vector<16x128xf32>
    %11 = arith.addf %10, %9 : vector<16x128xf32>
    %c0_12 = arith.constant 0 : index
    %c0_13 = arith.constant 0 : index
    %c0_14 = arith.constant 0 : index
    %12 = vector.load %arg7[%c0_12, %c0_13, %c0_14] : memref<4x1x128xf32, #tpu.memory_space<vmem>>, vector<1x1x128xf32>
    %13 = vector.shape_cast %12 : vector<1x1x128xf32> to vector<1x128xf32>
    %14 = vector.broadcast %13 : vector<1x128xf32> to vector<16x128xf32>
    %15 = arith.addf %11, %14 : vector<16x128xf32>
    %c0_15 = arith.constant 0 : index
    %c0_16 = arith.constant 0 : index
    %16 = vector.load %arg14[%c0_15, %c0_16] : memref<64x128xf32, #tpu.memory_space<vmem>>, vector<16x128xf32>
    tpu.vector_store %arg14[%c0_15, %c0_16], %15 {strides = array<i32>} : memref<64x128xf32, #tpu.memory_space<vmem>>, vector<16x128xf32>,
    %c1 = arith.constant 1 : index
    %c0_17 = arith.constant 0 : index
    %c0_18 = arith.constant 0 : index
    %17 = vector.load %arg5[%c1, %c0_17, %c0_18] : memref<4x512x128xbf16, #tpu.memory_space<vmem>>, vector<1x512x128xbf16>
    %18 = vector.shape_cast %17 : vector<1x512x128xbf16> to vector<512x128xbf16>
    %cst_19 = arith.constant dense<0.000000e+00> : vector<16x128xf32>
    %19 = tpu.matmul %2, %18, %cst_19 {dimension_numbers = #tpu.dot_dimension_numbers<[1], [0], [0], [1], [0, 0, 1, 1], [], []>} : vector<16x512xbf16>, vector<512x128xbf16>, vector<16x128xf32> -> vector<16x128xf32>
    %20 = vector.extract_strided_slice %6 {offsets = [16, 0], sizes = [16, 128], strides = [1, 1]} : vector<64x128xf32> to vector<16x128xf32>
    %21 = arith.addf %20, %19 : vector<16x128xf32>
    %c1_20 = arith.constant 1 : index
    %c0_21 = arith.constant 0 : index
    %c0_22 = arith.constant 0 : index
    %22 = vector.load %arg7[%c1_20, %c0_21, %c0_22] : memref<4x1x128xf32, #tpu.memory_space<vmem>>, vector<1x1x128xf32>
    %23 = vector.shape_cast %22 : vector<1x1x128xf32> to vector<1x128xf32>
    %24 = vector.broadcast %23 : vector<1x128xf32> to vector<16x128xf32>
    %25 = arith.addf %21, %24 : vector<16x128xf32>
    %c16 = arith.constant 16 : index
    %c0_23 = arith.constant 0 : index
    %26 = vector.load %arg14[%c16, %c0_23] : memref<64x128xf32, #tpu.memory_space<vmem>>, vector<16x128xf32>
    tpu.vector_store %arg14[%c16, %c0_23], %25 {strides = array<i32>} : memref<64x128xf32, #tpu.memory_space<vmem>>, vector<16x128xf32>,
    %c2 = arith.constant 2 : index
    %c0_24 = arith.constant 0 : index
    %c0_25 = arith.constant 0 : index
    %27 = vector.load %arg5[%c2, %c0_24, %c0_25] : memref<4x512x128xbf16, #tpu.memory_space<vmem>>, vector<1x512x128xbf16>
    %28 = vector.shape_cast %27 : vector<1x512x128xbf16> to vector<512x128xbf16>
    %cst_26 = arith.constant dense<0.000000e+00> : vector<16x128xf32>
    %29 = tpu.matmul %2, %28, %cst_26 {dimension_numbers = #tpu.dot_dimension_numbers<[1], [0], [0], [1], [0, 0, 1, 1], [], []>} : vector<16x512xbf16>, vector<512x128xbf16>, vector<16x128xf32> -> vector<16x128xf32>
    %30 = vector.extract_strided_slice %6 {offsets = [32, 0], sizes = [16, 128], strides = [1, 1]} : vector<64x128xf32> to vector<16x128xf32>
    %31 = arith.addf %30, %29 : vector<16x128xf32>
    %c2_27 = arith.constant 2 : index
    %c0_28 = arith.constant 0 : index
    %c0_29 = arith.constant 0 : index
    %32 = vector.load %arg7[%c2_27, %c0_28, %c0_29] : memref<4x1x128xf32, #tpu.memory_space<vmem>>, vector<1x1x128xf32>
    %33 = vector.shape_cast %32 : vector<1x1x128xf32> to vector<1x128xf32>
    %34 = vector.broadcast %33 : vector<1x128xf32> to vector<16x128xf32>
    %35 = arith.addf %31, %34 : vector<16x128xf32>
    %c32 = arith.constant 32 : index
    %c0_30 = arith.constant 0 : index
    %36 = vector.load %arg14[%c32, %c0_30] : memref<64x128xf32, #tpu.memory_space<vmem>>, vector<16x128xf32>
    tpu.vector_store %arg14[%c32, %c0_30], %35 {strides = array<i32>} : memref<64x128xf32, #tpu.memory_space<vmem>>, vector<16x128xf32>,
    %c3 = arith.constant 3 : index
    %c0_31 = arith.constant 0 : index
    %c0_32 = arith.constant 0 : index
    %37 = vector.load %arg5[%c3, %c0_31, %c0_32] : memref<4x512x128xbf16, #tpu.memory_space<vmem>>, vector<1x512x128xbf16>
    %38 = vector.shape_cast %37 : vector<1x512x128xbf16> to vector<512x128xbf16>
    %cst_33 = arith.constant dense<0.000000e+00> : vector<16x128xf32>
    %39 = tpu.matmul %2, %38, %cst_33 {dimension_numbers = #tpu.dot_dimension_numbers<[1], [0], [0], [1], [0, 0, 1, 1], [], []>} : vector<16x512xbf16>, vector<512x128xbf16>, vector<16x128xf32> -> vector<16x128xf32>
    %40 = vector.extract_strided_slice %6 {offsets = [48, 0], sizes = [16, 128], strides = [1, 1]} : vector<64x128xf32> to vector<16x128xf32>
    %41 = arith.addf %40, %39 : vector<16x128xf32>
    %c3_34 = arith.constant 3 : index
    %c0_35 = arith.constant 0 : index
    %c0_36 = arith.constant 0 : index
    %42 = vector.load %arg7[%c3_34, %c0_35, %c0_36] : memref<4x1x128xf32, #tpu.memory_space<vmem>>, vector<1x1x128xf32>
    %43 = vector.shape_cast %42 : vector<1x1x128xf32> to vector<1x128xf32>
    %44 = vector.broadcast %43 : vector<1x128xf32> to vector<16x128xf32>
    %45 = arith.addf %41, %44 : vector<16x128xf32>
    %c48 = arith.constant 48 : index
    %c0_37 = arith.constant 0 : index
    %46 = vector.load %arg14[%c48, %c0_37] : memref<64x128xf32, #tpu.memory_space<vmem>>, vector<16x128xf32>
    tpu.vector_store %arg14[%c48, %c0_37], %45 {strides = array<i32>} : memref<64x128xf32, #tpu.memory_space<vmem>>, vector<16x128xf32>,
    %c0_38 = arith.constant 0 : index
    %c0_39 = arith.constant 0 : index
    %47 = vector.load %arg14[%c0_38, %c0_39] : memref<64x128xf32, #tpu.memory_space<vmem>>, vector<64x128xf32>
    %48 = arith.truncf %47 : vector<64x128xf32> to vector<64x128xbf16>
    %c0_40 = arith.constant 0 : index
    %c0_41 = arith.constant 0 : index
    %c0_42 = arith.constant 0 : index
    %49 = vector.load %arg4[%c0_40, %c0_41, %c0_42] : memref<1x256x128xbf16, #tpu.memory_space<vmem>>, vector<1x256x128xbf16>
    %50 = vector.shape_cast %49 : vector<1x256x128xbf16> to vector<256x128xbf16>
    %cst_43 = arith.constant 0.000000e+00 : f32
    %51 = vector.broadcast %cst_43 : f32 to vector<1x128xf32>
    %c0_44 = arith.constant 0 : index
    %c0_45 = arith.constant 0 : index
    %c0_46 = arith.constant 0 : index
    %52 = vector.load %arg8[%c0_44, %c0_45, %c0_46] : memref<4x128x128xbf16, #tpu.memory_space<vmem>>, vector<1x128x128xbf16>
    %53 = vector.shape_cast %52 : vector<1x128x128xbf16> to vector<128x128xbf16>
    %cst_47 = arith.constant dense<0.000000e+00> : vector<64x128xf32>
    %54 = tpu.matmul %48, %53, %cst_47 {dimension_numbers = #tpu.dot_dimension_numbers<[1], [0], [0], [1], [0, 0, 1, 1], [], []>} : vector<64x128xbf16>, vector<128x128xbf16>, vector<64x128xf32> -> vector<64x128xf32>
    %55 = vector.extract_strided_slice %50 {offsets = [0, 0], sizes = [64, 128], strides = [1, 1]} : vector<256x128xbf16> to vector<64x128xbf16>
    %c0_48 = arith.constant 0 : index
    %c0_49 = arith.constant 0 : index
    %56 = vector.load %arg9[%c0_48, %c0_49] : memref<128x128xbf16, #tpu.memory_space<vmem>>, vector<128x128xbf16>
    %cst_50 = arith.constant dense<0.000000e+00> : vector<64x128xf32>
    %57 = tpu.matmul %55, %56, %cst_50 {dimension_numbers = #tpu.dot_dimension_numbers<[1], [0], [0], [1], [0, 0, 1, 1], [], []>} : vector<64x128xbf16>, vector<128x128xbf16>, vector<64x128xf32> -> vector<64x128xf32>
    %58 = arith.addf %54, %57 : vector<64x128xf32>
    %c0_51 = arith.constant 0 : index
    %c0_52 = arith.constant 0 : index
    %59 = vector.load %arg10[%c0_51, %c0_52] : memref<1x128xf32, #tpu.memory_space<vmem>>, vector<1x128xf32>
    %60 = vector.broadcast %59 : vector<1x128xf32> to vector<64x128xf32>
    %61 = arith.addf %58, %60 : vector<64x128xf32>
    %cst_53 = arith.constant 9.99999997E-7 : f32
    %62 = vector.broadcast %cst_53 : f32 to vector<64x128xf32>
    %63 = arith.maximumf %61, %62 : vector<64x128xf32>
    %64 = math.log %63 : vector<64x128xf32>
    %65 = vector.broadcast %0 : f32 to vector<64x128xf32>
    %66 = arith.mulf %65, %64 : vector<64x128xf32>
    %67 = math.exp %66 : vector<64x128xf32>
    %cst_54 = arith.constant dense<0.000000e+00> : vector<128xf32>
    %68 = vector.multi_reduction <add>, %67, %cst_54 [0] : vector<64x128xf32> to vector<128xf32>
    %69 = vector.shape_cast %68 : vector<128xf32> to vector<1x128xf32>
    %70 = arith.addf %51, %69 : vector<1x128xf32>
    %c1_55 = arith.constant 1 : index
    %c0_56 = arith.constant 0 : index
    %c0_57 = arith.constant 0 : index
    %71 = vector.load %arg8[%c1_55, %c0_56, %c0_57] : memref<4x128x128xbf16, #tpu.memory_space<vmem>>, vector<1x128x128xbf16>
    %72 = vector.shape_cast %71 : vector<1x128x128xbf16> to vector<128x128xbf16>
    %cst_58 = arith.constant dense<0.000000e+00> : vector<64x128xf32>
    %73 = tpu.matmul %48, %72, %cst_58 {dimension_numbers = #tpu.dot_dimension_numbers<[1], [0], [0], [1], [0, 0, 1, 1], [], []>} : vector<64x128xbf16>, vector<128x128xbf16>, vector<64x128xf32> -> vector<64x128xf32>
    %74 = vector.extract_strided_slice %50 {offsets = [64, 0], sizes = [64, 128], strides = [1, 1]} : vector<256x128xbf16> to vector<64x128xbf16>
    %c0_59 = arith.constant 0 : index
    %c0_60 = arith.constant 0 : index
    %75 = vector.load %arg9[%c0_59, %c0_60] : memref<128x128xbf16, #tpu.memory_space<vmem>>, vector<128x128xbf16>
    %cst_61 = arith.constant dense<0.000000e+00> : vector<64x128xf32>
    %76 = tpu.matmul %74, %75, %cst_61 {dimension_numbers = #tpu.dot_dimension_numbers<[1], [0], [0], [1], [0, 0, 1, 1], [], []>} : vector<64x128xbf16>, vector<128x128xbf16>, vector<64x128xf32> -> vector<64x128xf32>
    %77 = arith.addf %73, %76 : vector<64x128xf32>
    %c0_62 = arith.constant 0 : index
    %c0_63 = arith.constant 0 : index
    %78 = vector.load %arg10[%c0_62, %c0_63] : memref<1x128xf32, #tpu.memory_space<vmem>>, vector<1x128xf32>
    %79 = vector.broadcast %78 : vector<1x128xf32> to vector<64x128xf32>
    %80 = arith.addf %77, %79 : vector<64x128xf32>
    %cst_64 = arith.constant 9.99999997E-7 : f32
    %81 = vector.broadcast %cst_64 : f32 to vector<64x128xf32>
    %82 = arith.maximumf %80, %81 : vector<64x128xf32>
    %83 = math.log %82 : vector<64x128xf32>
    %84 = vector.broadcast %0 : f32 to vector<64x128xf32>
    %85 = arith.mulf %84, %83 : vector<64x128xf32>
    %86 = math.exp %85 : vector<64x128xf32>
    %cst_65 = arith.constant dense<0.000000e+00> : vector<128xf32>
    %87 = vector.multi_reduction <add>, %86, %cst_65 [0] : vector<64x128xf32> to vector<128xf32>
    %88 = vector.shape_cast %87 : vector<128xf32> to vector<1x128xf32>
    %89 = arith.addf %70, %88 : vector<1x128xf32>
    %c2_66 = arith.constant 2 : index
    %c0_67 = arith.constant 0 : index
    %c0_68 = arith.constant 0 : index
    %90 = vector.load %arg8[%c2_66, %c0_67, %c0_68] : memref<4x128x128xbf16, #tpu.memory_space<vmem>>, vector<1x128x128xbf16>
    %91 = vector.shape_cast %90 : vector<1x128x128xbf16> to vector<128x128xbf16>
    %cst_69 = arith.constant dense<0.000000e+00> : vector<64x128xf32>
    %92 = tpu.matmul %48, %91, %cst_69 {dimension_numbers = #tpu.dot_dimension_numbers<[1], [0], [0], [1], [0, 0, 1, 1], [], []>} : vector<64x128xbf16>, vector<128x128xbf16>, vector<64x128xf32> -> vector<64x128xf32>
    %93 = vector.extract_strided_slice %50 {offsets = [128, 0], sizes = [64, 128], strides = [1, 1]} : vector<256x128xbf16> to vector<64x128xbf16>
    %c0_70 = arith.constant 0 : index
    %c0_71 = arith.constant 0 : index
    %94 = vector.load %arg9[%c0_70, %c0_71] : memref<128x128xbf16, #tpu.memory_space<vmem>>, vector<128x128xbf16>
    %cst_72 = arith.constant dense<0.000000e+00> : vector<64x128xf32>
    %95 = tpu.matmul %93, %94, %cst_72 {dimension_numbers = #tpu.dot_dimension_numbers<[1], [0], [0], [1], [0, 0, 1, 1], [], []>} : vector<64x128xbf16>, vector<128x128xbf16>, vector<64x128xf32> -> vector<64x128xf32>
    %96 = arith.addf %92, %95 : vector<64x128xf32>
    %c0_73 = arith.constant 0 : index
    %c0_74 = arith.constant 0 : index
    %97 = vector.load %arg10[%c0_73, %c0_74] : memref<1x128xf32, #tpu.memory_space<vmem>>, vector<1x128xf32>
    %98 = vector.broadcast %97 : vector<1x128xf32> to vector<64x128xf32>
    %99 = arith.addf %96, %98 : vector<64x128xf32>
    %cst_75 = arith.constant 9.99999997E-7 : f32
    %100 = vector.broadcast %cst_75 : f32 to vector<64x128xf32>
    %101 = arith.maximumf %99, %100 : vector<64x128xf32>
    %102 = math.log %101 : vector<64x128xf32>
    %103 = vector.broadcast %0 : f32 to vector<64x128xf32>
    %104 = arith.mulf %103, %102 : vector<64x128xf32>
    %105 = math.exp %104 : vector<64x128xf32>
    %cst_76 = arith.constant dense<0.000000e+00> : vector<128xf32>
    %106 = vector.multi_reduction <add>, %105, %cst_76 [0] : vector<64x128xf32> to vector<128xf32>
    %107 = vector.shape_cast %106 : vector<128xf32> to vector<1x128xf32>
    %108 = arith.addf %89, %107 : vector<1x128xf32>
    %c3_77 = arith.constant 3 : index
    %c0_78 = arith.constant 0 : index
    %c0_79 = arith.constant 0 : index
    %109 = vector.load %arg8[%c3_77, %c0_78, %c0_79] : memref<4x128x128xbf16, #tpu.memory_space<vmem>>, vector<1x128x128xbf16>
    %110 = vector.shape_cast %109 : vector<1x128x128xbf16> to vector<128x128xbf16>
    %cst_80 = arith.constant dense<0.000000e+00> : vector<64x128xf32>
    %111 = tpu.matmul %48, %110, %cst_80 {dimension_numbers = #tpu.dot_dimension_numbers<[1], [0], [0], [1], [0, 0, 1, 1], [], []>} : vector<64x128xbf16>, vector<128x128xbf16>, vector<64x128xf32> -> vector<64x128xf32>
    %112 = vector.extract_strided_slice %50 {offsets = [192, 0], sizes = [64, 128], strides = [1, 1]} : vector<256x128xbf16> to vector<64x128xbf16>
    %c0_81 = arith.constant 0 : index
    %c0_82 = arith.constant 0 : index
    %113 = vector.load %arg9[%c0_81, %c0_82] : memref<128x128xbf16, #tpu.memory_space<vmem>>, vector<128x128xbf16>
    %cst_83 = arith.constant dense<0.000000e+00> : vector<64x128xf32>
    %114 = tpu.matmul %112, %113, %cst_83 {dimension_numbers = #tpu.dot_dimension_numbers<[1], [0], [0], [1], [0, 0, 1, 1], [], []>} : vector<64x128xbf16>, vector<128x128xbf16>, vector<64x128xf32> -> vector<64x128xf32>
    %115 = arith.addf %111, %114 : vector<64x128xf32>
    %c0_84 = arith.constant 0 : index
    %c0_85 = arith.constant 0 : index
    %116 = vector.load %arg10[%c0_84, %c0_85] : memref<1x128xf32, #tpu.memory_space<vmem>>, vector<1x128xf32>
    %117 = vector.broadcast %116 : vector<1x128xf32> to vector<64x128xf32>
    %118 = arith.addf %115, %117 : vector<64x128xf32>
    %cst_86 = arith.constant 9.99999997E-7 : f32
    %119 = vector.broadcast %cst_86 : f32 to vector<64x128xf32>
    %120 = arith.maximumf %118, %119 : vector<64x128xf32>
    %121 = math.log %120 : vector<64x128xf32>
    %122 = vector.broadcast %0 : f32 to vector<64x128xf32>
    %123 = arith.mulf %122, %121 : vector<64x128xf32>
    %124 = math.exp %123 : vector<64x128xf32>
    %cst_87 = arith.constant dense<0.000000e+00> : vector<128xf32>
    %125 = vector.multi_reduction <add>, %124, %cst_87 [0] : vector<64x128xf32> to vector<128xf32>
    %126 = vector.shape_cast %125 : vector<128xf32> to vector<1x128xf32>
    %127 = arith.addf %108, %126 : vector<1x128xf32>
    %cst_88 = arith.constant 3.906250e-03 : f32
    %128 = vector.broadcast %cst_88 : f32 to vector<1x128xf32>
    %129 = arith.mulf %127, %128 : vector<1x128xf32>
    %130 = math.log %129 : vector<1x128xf32>
    %131 = vector.broadcast %0 : f32 to vector<1x128xf32>
    %132 = arith.divf %130, %131 : vector<1x128xf32>
    %133 = math.exp %132 : vector<1x128xf32>
    %134 = arith.truncf %133 : vector<1x128xf32> to vector<1x128xbf16>
    %135 = vector.shape_cast %134 : vector<1x128xbf16> to vector<1x128xbf16>
    %136 = vector.broadcast %135 : vector<1x128xbf16> to vector<8x128xbf16>
    %c0_89 = arith.constant 0 : index
    %c0_90 = arith.constant 0 : index
    %137 = vector.load %arg11[%c0_89, %c0_90] : memref<128x256xbf16, #tpu.memory_space<vmem>>, vector<128x256xbf16>
    %cst_91 = arith.constant dense<0.000000e+00> : vector<8x256xf32>
    %138 = tpu.matmul %136, %137, %cst_91 {dimension_numbers = #tpu.dot_dimension_numbers<[1], [0], [0], [1], [0, 0, 1, 1], [], []>} : vector<8x128xbf16>, vector<128x256xbf16>, vector<8x256xf32> -> vector<8x256xf32>
    %139 = vector.extract_strided_slice %138 {offsets = [0, 0], sizes = [1, 256], strides = [1, 1]} : vector<8x256xf32> to vector<1x256xf32>
    %c0_92 = arith.constant 0 : index
    %c0_93 = arith.constant 0 : index
    %140 = vector.load %arg12[%c0_92, %c0_93] : memref<1x256xf32, #tpu.memory_space<vmem>>, vector<1x256xf32>
    %141 = arith.addf %139, %140 : vector<1x256xf32>
    %142 = vector.shape_cast %141 : vector<1x256xf32> to vector<1x1x256xf32>
    %c0_94 = arith.constant 0 : index
    %c0_95 = arith.constant 0 : index
    %c0_96 = arith.constant 0 : index
    %143 = vector.load %arg13[%c0_94, %c0_95, %c0_96] : memref<1x1x256xf32, #tpu.memory_space<vmem>>, vector<1x1x256xf32>
    tpu.vector_store %arg13[%c0_94, %c0_95, %c0_96], %142 {strides = array<i32>} : memref<1x1x256xf32, #tpu.memory_space<vmem>>, vector<1x1x256xf32>,
    return
  }
  func.func @transform_0(%arg0: i32, %arg1: memref<1xf32, #tpu.memory_space<smem>>) -> (i32, i32, i32) {
    %c0_i32 = arith.constant 0 : i32
    %c0_i32_0 = arith.constant 0 : i32
    %c0_i32_1 = arith.constant 0 : i32
    return %arg0, %c0_i32, %c0_i32_0 : i32, i32, i32
  }
  func.func @transform_1(%arg0: i32, %arg1: memref<1xf32, #tpu.memory_space<smem>>) -> (i32, i32, i32) {
    %c0_i32 = arith.constant 0 : i32
    %c0_i32_0 = arith.constant 0 : i32
    %c0_i32_1 = arith.constant 0 : i32
    return %arg0, %c0_i32, %c0_i32_0 : i32, i32, i32
  }
  func.func @transform_2(%arg0: i32, %arg1: memref<1xf32, #tpu.memory_space<smem>>) -> (i32, i32, i32) {
    %c0_i32 = arith.constant 0 : i32
    %c0_i32_0 = arith.constant 0 : i32
    %c0_i32_1 = arith.constant 0 : i32
    return %arg0, %c0_i32, %c0_i32_0 : i32, i32, i32
  }
  func.func @transform_3(%arg0: i32, %arg1: memref<1xf32, #tpu.memory_space<smem>>) -> (i32, i32, i32) {
    %c0_i32 = arith.constant 0 : i32
    %c0_i32_0 = arith.constant 0 : i32
    %c0_i32_1 = arith.constant 0 : i32
    %c0_i32_2 = arith.constant 0 : i32
    return %c0_i32, %c0_i32_0, %c0_i32_1 : i32, i32, i32
  }
  func.func @transform_4(%arg0: i32, %arg1: memref<1xf32, #tpu.memory_space<smem>>) -> (i32, i32) {
    %c0_i32 = arith.constant 0 : i32
    %c0_i32_0 = arith.constant 0 : i32
    %c0_i32_1 = arith.constant 0 : i32
    return %c0_i32, %c0_i32_0 : i32, i32
  }
  func.func @transform_5(%arg0: i32, %arg1: memref<1xf32, #tpu.memory_space<smem>>) -> (i32, i32, i32) {
    %c0_i32 = arith.constant 0 : i32
    %c0_i32_0 = arith.constant 0 : i32
    %c0_i32_1 = arith.constant 0 : i32
    %c0_i32_2 = arith.constant 0 : i32
    return %c0_i32, %c0_i32_0, %c0_i32_1 : i32, i32, i32
  }
  func.func @transform_6(%arg0: i32, %arg1: memref<1xf32, #tpu.memory_space<smem>>) -> (i32, i32, i32) {
    %c0_i32 = arith.constant 0 : i32
    %c0_i32_0 = arith.constant 0 : i32
    %c0_i32_1 = arith.constant 0 : i32
    %c0_i32_2 = arith.constant 0 : i32
    return %c0_i32, %c0_i32_0, %c0_i32_1 : i32, i32, i32
  }
  func.func @transform_7(%arg0: i32, %arg1: memref<1xf32, #tpu.memory_space<smem>>) -> (i32, i32) {
    %c0_i32 = arith.constant 0 : i32
    %c0_i32_0 = arith.constant 0 : i32
    %c0_i32_1 = arith.constant 0 : i32
    return %c0_i32, %c0_i32_0 : i32, i32
  }
  func.func @transform_8(%arg0: i32, %arg1: memref<1xf32, #tpu.memory_space<smem>>) -> (i32, i32) {
    %c0_i32 = arith.constant 0 : i32
    %c0_i32_0 = arith.constant 0 : i32
    %c0_i32_1 = arith.constant 0 : i32
    return %c0_i32, %c0_i32_0 : i32, i32
  }
  func.func @transform_9(%arg0: i32, %arg1: memref<1xf32, #tpu.memory_space<smem>>) -> (i32, i32) {
    %c0_i32 = arith.constant 0 : i32
    %c0_i32_0 = arith.constant 0 : i32
    %c0_i32_1 = arith.constant 0 : i32
    return %c0_i32, %c0_i32_0 : i32, i32
  }
  func.func @transform_10(%arg0: i32, %arg1: memref<1xf32, #tpu.memory_space<smem>>) -> (i32, i32) {
    %c0_i32 = arith.constant 0 : i32
    %c0_i32_0 = arith.constant 0 : i32
    %c0_i32_1 = arith.constant 0 : i32
    return %c0_i32, %c0_i32_0 : i32, i32
  }
  func.func @transform_11(%arg0: i32, %arg1: memref<1xf32, #tpu.memory_space<smem>>) -> (i32, i32, i32) {
    %c0_i32 = arith.constant 0 : i32
    %c0_i32_0 = arith.constant 0 : i32
    %c0_i32_1 = arith.constant 0 : i32
    return %arg0, %c0_i32, %c0_i32_0 : i32, i32, i32
  }
}

</mosaic_0001>

<llo_original>
// kernel: fpn_gem_forward.1
$region0: #{fpn_gem_forward.1}
  #allocation0 [shape = 'u32[]', space=smem, size = 0x4, offset = 0x4, fixed_abs, tag = 'smem constant byte address 0x4 - core index']
  #allocation1 [shape = 'u32[144,128]{1,0:T(1,128)}', space=vmem, size = 0x12000, scoped, tag = 'internal scratch']
  #allocation2 [shape = 'f32[64,128]{1,0:T(8,128)}', space=vmem, size = 0x8000, scoped, tag = 'scratch operand']
  #allocation3 [shape = 's32[1]{0}', space=sflag, size = 0x4, scoped, tag = 'scoped memory for fpn_gem_forward.1']
  #allocation4 [shape = 'f32[1]{0:T(128)S(6)}', space=smem, size = 0x200, scoped, tag = 'prefetched SMEM operand 0']
  %s0 = inlined_call_operand.<no memory space> [shape: f32[1], index: 0, kind: input, shape index: {}]
  %s1 = inlined_call_operand.vmem [shape: bf16[2,16,512], index: 1, kind: input, shape index: {}]
  %s2 = inlined_call_operand.vmem [shape: bf16[2,64,256], index: 2, kind: input, shape index: {}]
  %s3 = inlined_call_operand.vmem [shape: bf16[2,256,128], index: 3, kind: input, shape index: {}]
  %s4 = inlined_call_operand.vmem [shape: bf16[4,512,128], index: 4, kind: input, shape index: {}]
  %s5 = inlined_call_operand.vmem [shape: bf16[256,128], index: 5, kind: input, shape index: {}]
  %s6 = inlined_call_operand.vmem [shape: f32[4,1,128], index: 6, kind: input, shape index: {}]
  %s7 = inlined_call_operand.vmem [shape: bf16[4,128,128], index: 7, kind: input, shape index: {}]
  %s8 = inlined_call_operand.vmem [shape: bf16[128,128], index: 8, kind: input, shape index: {}]
  %s9 = inlined_call_operand.vmem [shape: f32[1,128], index: 9, kind: input, shape index: {}]
  %s10 = inlined_call_operand.vmem [shape: bf16[128,256], index: 10, kind: input, shape index: {}]
  %s11 = inlined_call_operand.vmem [shape: f32[1,256], index: 11, kind: input, shape index: {}]
  %s12 = inlined_call_operand.vmem [shape: f32[2,1,256], index: 12, kind: output, shape index: {}]
  %s13 = sld [smem:[#allocation0]]
  $region77: #{fpn_gem_forward.1} parent=0
    _
  %s15 = ssub.s32 1, %s13
  %s16 = scalar_select 0, %s15, %s13
  %17 = sst [smem:[#allocation4]] %s0
  loop: start=0, step=1, limit=4
  $region2: #{fpn_gem_forward.1} parent=0 // loop_pre_header
    _
  $region3: #{fpn_gem_forward.1} parent=0 // loop_header
    %s19 = sphi 0, %s23
    %p20 = scmp.ge.s32.totalorder %s19, 4
    %s29 = sphi 0, %s31
    %s32 = sphi 0, %s29
    %s33 = sphi 0, %s32
    %s49 = sphi 0, %s33
    %s55 = sphi 0, %s57
    %s58 = sphi 0, %s55
    %s59 = sphi 0, %s58
    %s75 = sphi 0, %s59
    %s81 = sphi 0, %s83
    %s84 = sphi 0, %s81
    %s85 = sphi 0, %s84
    %s101 = sphi 0, %s85
    %s105 = sphi 0, %s105
    %s107 = sphi 0, %s105
    %s108 = sphi 0, %s107
    %s122 = sphi 0, %s108
    %s126 = sphi 0, %s126
    %s128 = sphi 0, %s126
    %s129 = sphi 0, %s128
    %s143 = sphi 0, %s129
    %s147 = sphi 0, %s147
    %s149 = sphi 0, %s147
    %s150 = sphi 0, %s149
    %s164 = sphi 0, %s150
    %s168 = sphi 0, %s168
    %s170 = sphi 0, %s168
    %s171 = sphi 0, %s170
    %s185 = sphi 0, %s171
    %s189 = sphi 0, %s189
    %s191 = sphi 0, %s189
    %s192 = sphi 0, %s191
    %s206 = sphi 0, %s192
    %s210 = sphi 0, %s210
    %s212 = sphi 0, %s210
    %s213 = sphi 0, %s212
    %s227 = sphi 0, %s213
    %s231 = sphi 0, %s231
    %s233 = sphi 0, %s231
    %s234 = sphi 0, %s233
    %s248 = sphi 0, %s234
    %s252 = sphi 0, %s252
    %s254 = sphi 0, %s252
    %s255 = sphi 0, %s254
    %s269 = sphi 0, %s255
    %s275 = sphi 0, %s277
    %s278 = sphi 0, %s275
    %s279 = sphi 0, %s278
    %s295 = sphi 0, %s279
  $region4: #{fpn_gem_forward.1} parent=0 // loop_header_branch
    %22 = sbr.rel (%p20) target = $region8
  $region5: #{fpn_gem_forward.1} parent=0 // loop_body
    %s24 = ssub.s32 %s19, 1
    %s25 = ssub.s32 %s19, 2
    %s26 = sadd.s32 %s19, 1
    %s27 = ssub.s32 %s19, %s26
    %p28 = scmp.eq.s32.totalorder %s27, 0
    %s30 = sadd.s32 %s29, 1
    %s31 = scalar_select %p28, %s29, %s30
    %p34 = pneg %p28
    %p35 = scmp.eq.s32.totalorder %s19, 1
    %p36 = por %p34, %p35
    %p37 = scmp.ne.s32.totalorder %s29, %s32
    %p38 = scmp.eq.s32.totalorder %s19, 0
    %p39 = por %p37, %p38
    %p40 = scmp.ne.s32.totalorder %s29, %s32
    %p41 = scmp.eq.s32.totalorder %s24, 1
    %p42 = por %p40, %p41
    %p43 = scmp.ne.s32.totalorder %s32, %s33
    %p44 = scmp.eq.s32.totalorder %s24, 0
    %p45 = por %p43, %p44
    %p46 = scmp.ne.s32.totalorder %s32, %s33
    %p47 = scmp.eq.s32.totalorder %s25, 1
    %p48 = por %p46, %p47
    %p50 = scmp.ne.s32.totalorder %s33, %s49
    %p51 = scmp.eq.s32.totalorder %s25, 0
    %p52 = por %p50, %p51
    %s53 = ssub.s32 %s19, %s26
    %p54 = scmp.eq.s32.totalorder %s53, 0
    %s56 = sadd.s32 %s55, 1
    %s57 = scalar_select %p54, %s55, %s56
    %p60 = pneg %p54
    %p61 = scmp.eq.s32.totalorder %s19, 1
    %p62 = por %p60, %p61
    %p63 = scmp.ne.s32.totalorder %s55, %s58
    %p64 = scmp.eq.s32.totalorder %s19, 0
    %p65 = por %p63, %p64
    %p66 = scmp.ne.s32.totalorder %s55, %s58
    %p67 = scmp.eq.s32.totalorder %s24, 1
    %p68 = por %p66, %p67
    %p69 = scmp.ne.s32.totalorder %s58, %s59
    %p70 = scmp.eq.s32.totalorder %s24, 0
    %p71 = por %p69, %p70
    %p72 = scmp.ne.s32.totalorder %s58, %s59
    %p73 = scmp.eq.s32.totalorder %s25, 1
    %p74 = por %p72, %p73
    %p76 = scmp.ne.s32.totalorder %s59, %s75
    %p77 = scmp.eq.s32.totalorder %s25, 0
    %p78 = por %p76, %p77
    %s79 = ssub.s32 %s19, %s26
    %p80 = scmp.eq.s32.totalorder %s79, 0
    %s82 = sadd.s32 %s81, 1
    %s83 = scalar_select %p80, %s81, %s82
    %p86 = pneg %p80
    %p87 = scmp.eq.s32.totalorder %s19, 1
    %p88 = por %p86, %p87
    %p89 = scmp.ne.s32.totalorder %s81, %s84
    %p90 = scmp.eq.s32.totalorder %s19, 0
    %p91 = por %p89, %p90
    %p92 = scmp.ne.s32.totalorder %s81, %s84
    %p93 = scmp.eq.s32.totalorder %s24, 1
    %p94 = por %p92, %p93
    %p95 = scmp.ne.s32.totalorder %s84, %s85
    %p96 = scmp.eq.s32.totalorder %s24, 0
    %p97 = por %p95, %p96
    %p98 = scmp.ne.s32.totalorder %s84, %s85
    %p99 = scmp.eq.s32.totalorder %s25, 1
    %p100 = por %p98, %p99
    %p102 = scmp.ne.s32.totalorder %s85, %s101
    %p103 = scmp.eq.s32.totalorder %s25, 0
    %p104 = por %p102, %p103
    %s106 = sadd.s32 %s105, 1
    %p109 = scmp.eq.s32.totalorder %s19, 1
    %p110 = scmp.ne.s32.totalorder %s105, %s107
    %p111 = scmp.eq.s32.totalorder %s19, 0
    %p112 = por %p110, %p111
    %p113 = scmp.ne.s32.totalorder %s105, %s107
    %p114 = scmp.eq.s32.totalorder %s24, 1
    %p115 = por %p113, %p114
    %p116 = scmp.ne.s32.totalorder %s107, %s108
    %p117 = scmp.eq.s32.totalorder %s24, 0
    %p118 = por %p116, %p117
    %p119 = scmp.ne.s32.totalorder %s107, %s108
    %p120 = scmp.eq.s32.totalorder %s25, 1
    %p121 = por %p119, %p120
    %p123 = scmp.ne.s32.totalorder %s108, %s122
    %p124 = scmp.eq.s32.totalorder %s25, 0
    %p125 = por %p123, %p124
    %s127 = sadd.s32 %s126, 1
    %p130 = scmp.eq.s32.totalorder %s19, 1
    %p131 = scmp.ne.s32.totalorder %s126, %s128
    %p132 = scmp.eq.s32.totalorder %s19, 0
    %p133 = por %p131, %p132
    %p134 = scmp.ne.s32.totalorder %s126, %s128
    %p135 = scmp.eq.s32.totalorder %s24, 1
    %p136 = por %p134, %p135
    %p137 = scmp.ne.s32.totalorder %s128, %s129
    %p138 = scmp.eq.s32.totalorder %s24, 0
    %p139 = por %p137, %p138
    %p140 = scmp.ne.s32.totalorder %s128, %s129
    %p141 = scmp.eq.s32.totalorder %s25, 1
    %p142 = por %p140, %p141
    %p144 = scmp.ne.s32.totalorder %s129, %s143
    %p145 = scmp.eq.s32.totalorder %s25, 0
    %p146 = por %p144, %p145
    %s148 = sadd.s32 %s147, 1
    %p151 = scmp.eq.s32.totalorder %s19, 1
    %p152 = scmp.ne.s32.totalorder %s147, %s149
    %p153 = scmp.eq.s32.totalorder %s19, 0
    %p154 = por %p152, %p153
    %p155 = scmp.ne.s32.totalorder %s147, %s149
    %p156 = scmp.eq.s32.totalorder %s24, 1
    %p157 = por %p155, %p156
    %p158 = scmp.ne.s32.totalorder %s149, %s150
    %p159 = scmp.eq.s32.totalorder %s24, 0
    %p160 = por %p158, %p159
    %p161 = scmp.ne.s32.totalorder %s149, %s150
    %p162 = scmp.eq.s32.totalorder %s25, 1
    %p163 = por %p161, %p162
    %p165 = scmp.ne.s32.totalorder %s150, %s164
    %p166 = scmp.eq.s32.totalorder %s25, 0
    %p167 = por %p165, %p166
    %s169 = sadd.s32 %s168, 1
    %p172 = scmp.eq.s32.totalorder %s19, 1
    %p173 = scmp.ne.s32.totalorder %s168, %s170
    %p174 = scmp.eq.s32.totalorder %s19, 0
    %p175 = por %p173, %p174
    %p176 = scmp.ne.s32.totalorder %s168, %s170
    %p177 = scmp.eq.s32.totalorder %s24, 1
    %p178 = por %p176, %p177
    %p179 = scmp.ne.s32.totalorder %s170, %s171
    %p180 = scmp.eq.s32.totalorder %s24, 0
    %p181 = por %p179, %p180
    %p182 = scmp.ne.s32.totalorder %s170, %s171
    %p183 = scmp.eq.s32.totalorder %s25, 1
    %p184 = por %p182, %p183
    %p186 = scmp.ne.s32.totalorder %s171, %s185
    %p187 = scmp.eq.s32.totalorder %s25, 0
    %p188 = por %p186, %p187
    %s190 = sadd.s32 %s189, 1
    %p193 = scmp.eq.s32.totalorder %s19, 1
    %p194 = scmp.ne.s32.totalorder %s189, %s191
    %p195 = scmp.eq.s32.totalorder %s19, 0
    %p196 = por %p194, %p195
    %p197 = scmp.ne.s32.totalorder %s189, %s191
    %p198 = scmp.eq.s32.totalorder %s24, 1
    %p199 = por %p197, %p198
    %p200 = scmp.ne.s32.totalorder %s191, %s192
    %p201 = scmp.eq.s32.totalorder %s24, 0
    %p202 = por %p200, %p201
    %p203 = scmp.ne.s32.totalorder %s191, %s192
    %p204 = scmp.eq.s32.totalorder %s25, 1
    %p205 = por %p203, %p204
    %p207 = scmp.ne.s32.totalorder %s192, %s206
    %p208 = scmp.eq.s32.totalorder %s25, 0
    %p209 = por %p207, %p208
    %s211 = sadd.s32 %s210, 1
    %p214 = scmp.eq.s32.totalorder %s19, 1
    %p215 = scmp.ne.s32.totalorder %s210, %s212
    %p216 = scmp.eq.s32.totalorder %s19, 0
    %p217 = por %p215, %p216
    %p218 = scmp.ne.s32.totalorder %s210, %s212
    %p219 = scmp.eq.s32.totalorder %s24, 1
    %p220 = por %p218, %p219
    %p221 = scmp.ne.s32.totalorder %s212, %s213
    %p222 = scmp.eq.s32.totalorder %s24, 0
    %p223 = por %p221, %p222
    %p224 = scmp.ne.s32.totalorder %s212, %s213
    %p225 = scmp.eq.s32.totalorder %s25, 1
    %p226 = por %p224, %p225
    %p228 = scmp.ne.s32.totalorder %s213, %s227
    %p229 = scmp.eq.s32.totalorder %s25, 0
    %p230 = por %p228, %p229
    %s232 = sadd.s32 %s231, 1
    %p235 = scmp.eq.s32.totalorder %s19, 1
    %p236 = scmp.ne.s32.totalorder %s231, %s233
    %p237 = scmp.eq.s32.totalorder %s19, 0
    %p238 = por %p236, %p237
    %p239 = scmp.ne.s32.totalorder %s231, %s233
    %p240 = scmp.eq.s32.totalorder %s24, 1
    %p241 = por %p239, %p240
    %p242 = scmp.ne.s32.totalorder %s233, %s234
    %p243 = scmp.eq.s32.totalorder %s24, 0
    %p244 = por %p242, %p243
    %p245 = scmp.ne.s32.totalorder %s233, %s234
    %p246 = scmp.eq.s32.totalorder %s25, 1
    %p247 = por %p245, %p246
    %p249 = scmp.ne.s32.totalorder %s234, %s248
    %p250 = scmp.eq.s32.totalorder %s25, 0
    %p251 = por %p249, %p250
    %s253 = sadd.s32 %s252, 1
    %p256 = scmp.eq.s32.totalorder %s19, 1
    %p257 = scmp.ne.s32.totalorder %s252, %s254
    %p258 = scmp.eq.s32.totalorder %s19, 0
    %p259 = por %p257, %p258
    %p260 = scmp.ne.s32.totalorder %s252, %s254
    %p261 = scmp.eq.s32.totalorder %s24, 1
    %p262 = por %p260, %p261
    %p263 = scmp.ne.s32.totalorder %s254, %s255
    %p264 = scmp.eq.s32.totalorder %s24, 0
    %p265 = por %p263, %p264
    %p266 = scmp.ne.s32.totalorder %s254, %s255
    %p267 = scmp.eq.s32.totalorder %s25, 1
    %p268 = por %p266, %p267
    %p270 = scmp.ne.s32.totalorder %s255, %s269
    %p271 = scmp.eq.s32.totalorder %s25, 0
    %p272 = por %p270, %p271
    %s273 = ssub.s32 %s19, %s26
    %p274 = scmp.eq.s32.totalorder %s273, 0
    %s276 = sadd.s32 %s275, 1
    %s277 = scalar_select %p274, %s275, %s276
    %p280 = pneg %p274
    %p281 = scmp.eq.s32.totalorder %s19, 1
    %p282 = por %p280, %p281
    %p283 = scmp.ne.s32.totalorder %s275, %s278
    %p284 = scmp.eq.s32.totalorder %s19, 0
    %p285 = por %p283, %p284
    %p286 = scmp.ne.s32.totalorder %s275, %s278
    %p287 = scmp.eq.s32.totalorder %s24, 1
    %p288 = por %p286, %p287
    %p289 = scmp.ne.s32.totalorder %s278, %s279
    %p290 = scmp.eq.s32.totalorder %s24, 0
    %p291 = por %p289, %p290
    %p292 = scmp.ne.s32.totalorder %s278, %s279
    %p293 = scmp.eq.s32.totalorder %s25, 1
    %p294 = por %p292, %p293
    %p296 = scmp.ne.s32.totalorder %s279, %s295
    %p297 = scmp.eq.s32.totalorder %s25, 0
    %p298 = por %p296, %p297
    %p299 = scmp.le.s32.totalorder 1, %s19
    %p300 = scmp.lt.s32.totalorder %s19, 3
    %p301 = pnand %p299, %p300
    %p302 = pneg %p301
    // Predicated region
    $region9: #{fpn_gem_forward.1} parent=5 // pred_check
      _
    $region10: #{fpn_gem_forward.1} parent=5 // pred_check_branch
      %304 = sbr.rel (%p301) target = $region12
    $region11: #{fpn_gem_forward.1} parent=5 // pred_region
      %s305 = ssub.s32 %s19, 1
      // Predicated region
      $region13: #{fpn_gem_forward.1} parent=11 // pred_check
        %p306 = pneg %p118
      $region14: #{fpn_gem_forward.1} parent=11 // pred_check_branch
        %308 = sbr.rel (%p306) target = $region16
      $region15: #{fpn_gem_forward.1} parent=11 // pred_region
        _
      $region16: #{fpn_gem_forward.1} parent=11 // pred_fallthru
        _
      // Predicated region
      $region17: #{fpn_gem_forward.1} parent=11 // pred_check
        %p309 = pneg %p139
      $region18: #{fpn_gem_forward.1} parent=11 // pred_check_branch
        %311 = sbr.rel (%p309) target = $region20
      $region19: #{fpn_gem_forward.1} parent=11 // pred_region
        _
      $region20: #{fpn_gem_forward.1} parent=11 // pred_fallthru
        _
      // Predicated region
      $region21: #{fpn_gem_forward.1} parent=11 // pred_check
        %p312 = pneg %p160
      $region22: #{fpn_gem_forward.1} parent=11 // pred_check_branch
        %314 = sbr.rel (%p312) target = $region24
      $region23: #{fpn_gem_forward.1} parent=11 // pred_region
        _
      $region24: #{fpn_gem_forward.1} parent=11 // pred_fallthru
        _
      // Predicated region
      $region25: #{fpn_gem_forward.1} parent=11 // pred_check
        %p315 = pneg %p181
      $region26: #{fpn_gem_forward.1} parent=11 // pred_check_branch
        %317 = sbr.rel (%p315) target = $region28
      $region27: #{fpn_gem_forward.1} parent=11 // pred_region
        _
      $region28: #{fpn_gem_forward.1} parent=11 // pred_fallthru
        _
      // Predicated region
      $region29: #{fpn_gem_forward.1} parent=11 // pred_check
        %p318 = pneg %p202
      $region30: #{fpn_gem_forward.1} parent=11 // pred_check_branch
        %320 = sbr.rel (%p318) target = $region32
      $region31: #{fpn_gem_forward.1} parent=11 // pred_region
        _
      $region32: #{fpn_gem_forward.1} parent=11 // pred_fallthru
        _
      // Predicated region
      $region33: #{fpn_gem_forward.1} parent=11 // pred_check
        %p321 = pneg %p223
      $region34: #{fpn_gem_forward.1} parent=11 // pred_check_branch
        %323 = sbr.rel (%p321) target = $region36
      $region35: #{fpn_gem_forward.1} parent=11 // pred_region
        _
      $region36: #{fpn_gem_forward.1} parent=11 // pred_fallthru
        _
      // Predicated region
      $region37: #{fpn_gem_forward.1} parent=11 // pred_check
        %p324 = pneg %p244
      $region38: #{fpn_gem_forward.1} parent=11 // pred_check_branch
        %326 = sbr.rel (%p324) target = $region40
      $region39: #{fpn_gem_forward.1} parent=11 // pred_region
        _
      $region40: #{fpn_gem_forward.1} parent=11 // pred_fallthru
        _
      // Predicated region
      $region41: #{fpn_gem_forward.1} parent=11 // pred_check
        %p327 = pneg %p265
      $region42: #{fpn_gem_forward.1} parent=11 // pred_check_branch
        %329 = sbr.rel (%p327) target = $region44
      $region43: #{fpn_gem_forward.1} parent=11 // pred_region
        _
      $region44: #{fpn_gem_forward.1} parent=11 // pred_fallthru
        _
    $region12: #{fpn_gem_forward.1} parent=5 // pred_fallthru
      _
    %p330 = scmp.lt.s32.totalorder %s19, 2
    // Predicated region
    $region45: #{fpn_gem_forward.1} parent=5 // pred_check
      %p331 = pneg %p330
    $region46: #{fpn_gem_forward.1} parent=5 // pred_check_branch
      %333 = sbr.rel (%p331) target = $region48
    $region47: #{fpn_gem_forward.1} parent=5 // pred_region
      // Predicated region
      $region49: #{fpn_gem_forward.1} parent=47 // pred_check
        %p334 = pneg %p39
      $region50: #{fpn_gem_forward.1} parent=47 // pred_check_branch
        %336 = sbr.rel (%p334) target = $region52
      $region51: #{fpn_gem_forward.1} parent=47 // pred_region
        %p337 = scmp.lt.s32.totalorder %s19, 1
        %s338 = scalar_select %p337, %s19, 1
        %s339 = smul.addr %s338, 8
        %s340 = smul.addr %s339, 4
        %s341 = scalar_lea.vmem %s1, %s340
      $region52: #{fpn_gem_forward.1} parent=47 // pred_fallthru
        _
      // Predicated region
      $region53: #{fpn_gem_forward.1} parent=47 // pred_check
        %p342 = pneg %p65
      $region54: #{fpn_gem_forward.1} parent=47 // pred_check_branch
        %344 = sbr.rel (%p342) target = $region56
      $region55: #{fpn_gem_forward.1} parent=47 // pred_region
        %p345 = scmp.lt.s32.totalorder %s19, 1
        %s346 = scalar_select %p345, %s19, 1
        %s347 = smul.addr %s346, 16
        %s348 = smul.addr %s347, 4
        %s349 = scalar_lea.vmem %s2, %s348
      $region56: #{fpn_gem_forward.1} parent=47 // pred_fallthru
        _
      // Predicated region
      $region57: #{fpn_gem_forward.1} parent=47 // pred_check
        %p350 = pneg %p91
      $region58: #{fpn_gem_forward.1} parent=47 // pred_check_branch
        %352 = sbr.rel (%p350) target = $region60
      $region59: #{fpn_gem_forward.1} parent=47 // pred_region
        %p353 = scmp.lt.s32.totalorder %s19, 1
        %s354 = scalar_select %p353, %s19, 1
        %s355 = smul.addr %s354, 32
        %s356 = smul.addr %s355, 4
        %s357 = scalar_lea.vmem %s3, %s356
      $region60: #{fpn_gem_forward.1} parent=47 // pred_fallthru
        _
    $region48: #{fpn_gem_forward.1} parent=5 // pred_fallthru
      _
    %p358 = scmp.le.s32.totalorder 1, %s19
    %p359 = scmp.lt.s32.totalorder %s19, 3
    %p360 = pnand %p358, %p359
    %p361 = pneg %p360
    // Predicated region
    $region61: #{fpn_gem_forward.1} parent=5 // pred_check
      _
    $region62: #{fpn_gem_forward.1} parent=5 // pred_check_branch
      %363 = sbr.rel (%p360) target = $region64
    $region63: #{fpn_gem_forward.1} parent=5 // pred_region
      %s364 = ssub.s32 %s19, 1
      %p365 = scmp.lt.s32.totalorder %s24, 1
      %s366 = scalar_select %p365, %s24, 1
      %s367 = smul.addr %s366, 8
      %s368 = smul.addr %s367, 4
      %s369 = scalar_lea.vmem %s1, %s368
      %p370 = pneg %p45
      %p371 = pneg %p42
      %p372 = scmp.lt.s32.totalorder %s24, 1
      %s373 = scalar_select %p372, %s24, 1
      %s374 = smul.addr %s373, 16
      %s375 = smul.addr %s374, 4
      %s376 = scalar_lea.vmem %s2, %s375
      %p377 = pneg %p71
      %p378 = pneg %p68
      %p379 = scmp.lt.s32.totalorder %s24, 1
      %s380 = scalar_select %p379, %s24, 1
      %s381 = smul.addr %s380, 32
      %s382 = smul.addr %s381, 4
      %s383 = scalar_lea.vmem %s3, %s382
      %p384 = pneg %p97
      %p385 = pneg %p94
      %p386 = pneg %p118
      %p387 = pneg %p115
      %p388 = pneg %p139
      %p389 = pneg %p136
      %p390 = pneg %p160
      %p391 = pneg %p157
      %p392 = pneg %p181
      %p393 = pneg %p178
      %p394 = pneg %p202
      %p395 = pneg %p199
      %p396 = pneg %p223
      %p397 = pneg %p220
      %p398 = pneg %p244
      %p399 = pneg %p241
      %p400 = pneg %p265
      %p401 = pneg %p262
      %p402 = pneg %p291
      %p403 = pneg %p288
      %p404 = scmp.lt.s32.totalorder %s24, 1
      %s405 = scalar_select %p404, %s24, 1
      %s406 = smul.addr %s405, 2
      %s407 = scalar_lea.vmem %s12, %s406
      %p408 = scmp.lt.s32.totalorder %s24, 1
      %s409 = scalar_select %p408, %s24, 1
      %s410 = smul.addr %s409, 8
      %s411 = smul.addr %s410, 4
      %s412 = scalar_lea.vmem %s1, %s411
      %p413 = scmp.lt.s32.totalorder %s24, 1
      %s414 = scalar_select %p413, %s24, 1
      %s415 = smul.addr %s414, 16
      %s416 = smul.addr %s415, 4
      %s417 = scalar_lea.vmem %s2, %s416
      %p418 = scmp.lt.s32.totalorder %s24, 1
      %s419 = scalar_select %p418, %s24, 1
      %s420 = smul.addr %s419, 32
      %s421 = smul.addr %s420, 4
      %s422 = scalar_lea.vmem %s3, %s421
      %p423 = scmp.lt.s32.totalorder %s24, 1
      %s424 = scalar_select %p423, %s24, 1
      %s425 = smul.addr %s424, 2
      %s426 = scalar_lea.vmem %s12, %s425
      %s428 = sld [smem:[#allocation4]]
      %v429 = vld [vmem:[%s412] sm:$0xff]
      %v430 = vld [vmem:[%s412 + $0x8] sm:$0xff]
      %v431 = vld [vmem:[%s412 + $0x10] sm:$0xff]
      %v432 = vld [vmem:[%s412 + $0x18] sm:$0xff]
      %v433 = vld [vmem:[%s417] sm:$0xff]
      %v434 = vld [vmem:[%s417 + $0x8] sm:$0xff]
      %v435 = vld [vmem:[%s417 + $0x10] sm:$0xff]
      %v436 = vld [vmem:[%s417 + $0x18] sm:$0xff]
      %v437 = vld [vmem:[%s417 + $0x20] sm:$0xff]
      %v438 = vld [vmem:[%s417 + $0x28] sm:$0xff]
      %v439 = vld [vmem:[%s417 + $0x30] sm:$0xff]
      %v440 = vld [vmem:[%s417 + $0x38] sm:$0xff]
      %v441 = vld [vmem:[%s5] sm:$0xf]
      %v442 = vld [vmem:[%s5 + $0x4] sm:$0xf]
      %v443 = vld [vmem:[%s5 + $0x8] sm:$0xf]
      %v444 = vld [vmem:[%s5 + $0xc] sm:$0xf]
      %v445 = vld [vmem:[%s5 + $0x10] sm:$0xf]
      %v446 = vld [vmem:[%s5 + $0x14] sm:$0xf]
      %v447 = vld [vmem:[%s5 + $0x18] sm:$0xf]
      %v448 = vld [vmem:[%s5 + $0x1c] sm:$0xf]
      %v449 = vld [vmem:[%s5 + $0x20] sm:$0xf]
      %v450 = vld [vmem:[%s5 + $0x24] sm:$0xf]
      %v451 = vld [vmem:[%s5 + $0x28] sm:$0xf]
      %v452 = vld [vmem:[%s5 + $0x2c] sm:$0xf]
      %v453 = vld [vmem:[%s5 + $0x30] sm:$0xf]
      %v454 = vld [vmem:[%s5 + $0x34] sm:$0xf]
      %v455 = vld [vmem:[%s5 + $0x38] sm:$0xf]
      %v456 = vld [vmem:[%s5 + $0x3c] sm:$0xf]
      %v457 = vld [vmem:[%s5 + $0x40] sm:$0xf]
      %v458 = vld [vmem:[%s5 + $0x44] sm:$0xf]
      %v459 = vld [vmem:[%s5 + $0x48] sm:$0xf]
      %v460 = vld [vmem:[%s5 + $0x4c] sm:$0xf]
      %v461 = vld [vmem:[%s5 + $0x50] sm:$0xf]
      %v462 = vld [vmem:[%s5 + $0x54] sm:$0xf]
      %v463 = vld [vmem:[%s5 + $0x58] sm:$0xf]
      %v464 = vld [vmem:[%s5 + $0x5c] sm:$0xf]
      %v465 = vld [vmem:[%s5 + $0x60] sm:$0xf]
      %v466 = vld [vmem:[%s5 + $0x64] sm:$0xf]
      %v467 = vld [vmem:[%s5 + $0x68] sm:$0xf]
      %v468 = vld [vmem:[%s5 + $0x6c] sm:$0xf]
      %v469 = vld [vmem:[%s5 + $0x70] sm:$0xf]
      %v470 = vld [vmem:[%s5 + $0x74] sm:$0xf]
      %v471 = vld [vmem:[%s5 + $0x78] sm:$0xf]
      %v472 = vld [vmem:[%s5 + $0x7c] sm:$0xf]
      %v481 = vunpack.c.l.b16 %v433
      %v482 = vunpack.c.h.b16 %v433
      %v483 = vunpack.c.l.b16 %v434
      %v484 = vunpack.c.h.b16 %v434
      %v485 = vunpack.c.l.b16 %v435
      %v486 = vunpack.c.h.b16 %v435
      %v487 = vunpack.c.l.b16 %v436
      %v488 = vunpack.c.h.b16 %v436
      %v489 = vunpack.c.l.b16 %v437
      %v490 = vunpack.c.h.b16 %v437
      %v491 = vunpack.c.l.b16 %v438
      %v492 = vunpack.c.h.b16 %v438
      %v493 = vunpack.c.l.b16 %v439
      %v494 = vunpack.c.h.b16 %v439
      %v495 = vunpack.c.l.b16 %v440
      %v496 = vunpack.c.h.b16 %v440
      %v497 = vpack.c.b16 %v483, %v481
      %v498 = vpack.c.b16 %v484, %v482
      %v499 = vpack.c.b16 %v487, %v485
      %v500 = vpack.c.b16 %v488, %v486
      %v501 = vpack.c.b16 %v491, %v489
      %v502 = vpack.c.b16 %v492, %v490
      %v503 = vpack.c.b16 %v495, %v493
      %v504 = vpack.c.b16 %v496, %v494
      %v545 = vunpack.c.l.b16 %v441
      %v546 = vunpack.c.l.b16 %v442
      %v547 = vunpack.c.l.b16 %v443
      %v548 = vunpack.c.l.b16 %v444
      %v549 = vunpack.c.l.b16 %v445
      %v550 = vunpack.c.l.b16 %v446
      %v551 = vunpack.c.l.b16 %v447
      %v552 = vunpack.c.l.b16 %v448
      %v553 = vunpack.c.l.b16 %v449
      %v554 = vunpack.c.l.b16 %v450
      %v555 = vunpack.c.l.b16 %v451
      %v556 = vunpack.c.l.b16 %v452
      %v557 = vunpack.c.l.b16 %v453
      %v558 = vunpack.c.l.b16 %v454
      %v559 = vunpack.c.l.b16 %v455
      %v560 = vunpack.c.l.b16 %v456
      %v561 = vunpack.c.l.b16 %v457
      %v562 = vunpack.c.l.b16 %v458
      %v563 = vunpack.c.l.b16 %v459
      %v564 = vunpack.c.l.b16 %v460
      %v565 = vunpack.c.l.b16 %v461
      %v566 = vunpack.c.l.b16 %v462
      %v567 = vunpack.c.l.b16 %v463
      %v568 = vunpack.c.l.b16 %v464
      %v569 = vunpack.c.l.b16 %v465
      %v570 = vunpack.c.l.b16 %v466
      %v571 = vunpack.c.l.b16 %v467
      %v572 = vunpack.c.l.b16 %v468
      %v573 = vunpack.c.l.b16 %v469
      %v574 = vunpack.c.l.b16 %v470
      %v575 = vunpack.c.l.b16 %v471
      %v576 = vunpack.c.l.b16 %v472
      %v577 = vpack.c.b16 %v546, %v545
      %v578 = vpack.c.b16 %v548, %v547
      %v579 = vpack.c.b16 %v550, %v549
      %v580 = vpack.c.b16 %v552, %v551
      %v581 = vpack.c.b16 %v554, %v553
      %v582 = vpack.c.b16 %v556, %v555
      %v583 = vpack.c.b16 %v558, %v557
      %v584 = vpack.c.b16 %v560, %v559
      %v585 = vpack.c.b16 %v562, %v561
      %v586 = vpack.c.b16 %v564, %v563
      %v587 = vpack.c.b16 %v566, %v565
      %v588 = vpack.c.b16 %v568, %v567
      %v589 = vpack.c.b16 %v570, %v569
      %v590 = vpack.c.b16 %v572, %v571
      %v591 = vpack.c.b16 %v574, %v573
      %v592 = vpack.c.b16 %v576, %v575
      %609 = vmatprep.subr.bf16.mxu0 0
      %610 = vmatpush1.bf16.msra.mxu0 %v577
      %611 = vmatprep.subr.bf16.mxu0 0
      %612 = vmatpush1.bf16.msra.mxu0 %v578
      %613 = vmatprep.subr.bf16.mxu0 0
      %614 = vmatpush1.bf16.msra.mxu0 %v579
      %615 = vmatprep.subr.bf16.mxu0 0
      %616 = vmatpush1.bf16.msra.mxu0 %v580
      %617 = vmatprep.subr.bf16.mxu0 0
      %618 = vmatpush1.bf16.msra.mxu0 %v581
      %619 = vmatprep.subr.bf16.mxu0 0
      %620 = vmatpush1.bf16.msra.mxu0 %v582
      %621 = vmatprep.subr.bf16.mxu0 0
      %622 = vmatpush1.bf16.msra.mxu0 %v583
      %623 = vmatprep.subr.bf16.mxu0 0
      %624 = vmatpush1.bf16.msra.mxu0 %v584
      %625 = vmatprep.subr.bf16.mxu0 0
      %626 = vmatpush1.bf16.msra.mxu0 %v585
      %627 = vmatprep.subr.bf16.mxu0 0
      %628 = vmatpush1.bf16.msra.mxu0 %v586
      %629 = vmatprep.subr.bf16.mxu0 0
      %630 = vmatpush1.bf16.msra.mxu0 %v587
      %631 = vmatprep.subr.bf16.mxu0 0
      %632 = vmatpush1.bf16.msra.mxu0 %v588
      %633 = vmatprep.subr.bf16.mxu0 0
      %634 = vmatpush1.bf16.msra.mxu0 %v589
      %635 = vmatprep.subr.bf16.mxu0 0
      %636 = vmatpush1.bf16.msra.mxu0 %v590
      %637 = vmatprep.subr.bf16.mxu0 0
      %638 = vmatpush1.bf16.msra.mxu0 %v591
      %639 = vmatprep.subr.bf16.mxu0 0
      %640 = vmatpush1.bf16.msra.mxu0 %v592
      %641 = vmatprep.mubr.bf16.mxu0 %v498
      %642 = vmatmul.mubr.bf16.gmra.mrb[0].mxu0 %v497
      %v643 = vpop.f32.mrb[0].mxu0
      %v644 = vadd.f32 0.0, %v643
      %v645 = vpop.f32.mrb[0].mxu0
      %v646 = vpop.f32.mrb[0].mxu0
      %v647 = vadd.f32 0.0, %v646
      %v648 = vpop.f32.mrb[0].mxu0
      %649 = vmatprep.mubr.bf16.mxu0 %v500
      %650 = vmatmul.mubr.bf16.gmra.mrb[0].mxu0 %v499
      %v651 = vpop.f32.mrb[0].mxu0
      %v652 = vadd.f32 0.0, %v651
      %v653 = vpop.f32.mrb[0].mxu0
      %v654 = vpop.f32.mrb[0].mxu0
      %v655 = vadd.f32 0.0, %v654
      %v656 = vpop.f32.mrb[0].mxu0
      %657 = vmatprep.mubr.bf16.mxu0 %v502
      %658 = vmatmul.mubr.bf16.gmra.mrb[0].mxu0 %v501
      %v659 = vpop.f32.mrb[0].mxu0
      %v660 = vadd.f32 0.0, %v659
      %v661 = vpop.f32.mrb[0].mxu0
      %v662 = vpop.f32.mrb[0].mxu0
      %v663 = vadd.f32 0.0, %v662
      %v664 = vpop.f32.mrb[0].mxu0
      %665 = vmatprep.mubr.bf16.mxu0 %v504
      %666 = vmatmul.mubr.bf16.gmra.mrb[0].mxu0 %v503
      %v667 = vpop.f32.mrb[0].mxu0
      %v668 = vadd.f32 0.0, %v667
      %v669 = vpop.f32.mrb[0].mxu0
      %v670 = vpop.f32.mrb[0].mxu0
      %v671 = vadd.f32 0.0, %v670
      %v672 = vpop.f32.mrb[0].mxu0
      %673 = vdwg.mxu0
      %v674 = vld [vmem:[%s4] sm:$0xf]
      %v675 = vld [vmem:[%s4 + $0x4] sm:$0xf]
      %v676 = vld [vmem:[%s4 + $0x8] sm:$0xf]
      %v677 = vld [vmem:[%s4 + $0xc] sm:$0xf]
      %v678 = vld [vmem:[%s4 + $0x10] sm:$0xf]
      %v679 = vld [vmem:[%s4 + $0x14] sm:$0xf]
      %v680 = vld [vmem:[%s4 + $0x18] sm:$0xf]
      %v681 = vld [vmem:[%s4 + $0x1c] sm:$0xf]
      %v682 = vld [vmem:[%s4 + $0x20] sm:$0xf]
      %v683 = vld [vmem:[%s4 + $0x24] sm:$0xf]
      %v684 = vld [vmem:[%s4 + $0x28] sm:$0xf]
      %v685 = vld [vmem:[%s4 + $0x2c] sm:$0xf]
      %v686 = vld [vmem:[%s4 + $0x30] sm:$0xf]
      %v687 = vld [vmem:[%s4 + $0x34] sm:$0xf]
      %v688 = vld [vmem:[%s4 + $0x38] sm:$0xf]
      %v689 = vld [vmem:[%s4 + $0x3c] sm:$0xf]
      %v690 = vld [vmem:[%s4 + $0x40] sm:$0xf]
      %v691 = vld [vmem:[%s4 + $0x44] sm:$0xf]
      %v692 = vld [vmem:[%s4 + $0x48] sm:$0xf]
      %v693 = vld [vmem:[%s4 + $0x4c] sm:$0xf]
      %v694 = vld [vmem:[%s4 + $0x50] sm:$0xf]
      %v695 = vld [vmem:[%s4 + $0x54] sm:$0xf]
      %v696 = vld [vmem:[%s4 + $0x58] sm:$0xf]
      %v697 = vld [vmem:[%s4 + $0x5c] sm:$0xf]
      %v698 = vld [vmem:[%s4 + $0x60] sm:$0xf]
      %v699 = vld [vmem:[%s4 + $0x64] sm:$0xf]
      %v700 = vld [vmem:[%s4 + $0x68] sm:$0xf]
      %v701 = vld [vmem:[%s4 + $0x6c] sm:$0xf]
      %v702 = vld [vmem:[%s4 + $0x70] sm:$0xf]
      %v703 = vld [vmem:[%s4 + $0x74] sm:$0xf]
      %v704 = vld [vmem:[%s4 + $0x78] sm:$0xf]
      %v705 = vld [vmem:[%s4 + $0x7c] sm:$0xf]
      %v706 = vld [vmem:[%s4 + $0x80] sm:$0xf]
      %v707 = vld [vmem:[%s4 + $0x84] sm:$0xf]
      %v708 = vld [vmem:[%s4 + $0x88] sm:$0xf]
      %v709 = vld [vmem:[%s4 + $0x8c] sm:$0xf]
      %v710 = vld [vmem:[%s4 + $0x90] sm:$0xf]
      %v711 = vld [vmem:[%s4 + $0x94] sm:$0xf]
      %v712 = vld [vmem:[%s4 + $0x98] sm:$0xf]
      %v713 = vld [vmem:[%s4 + $0x9c] sm:$0xf]
      %v714 = vld [vmem:[%s4 + $0xa0] sm:$0xf]
      %v715 = vld [vmem:[%s4 + $0xa4] sm:$0xf]
      %v716 = vld [vmem:[%s4 + $0xa8] sm:$0xf]
      %v717 = vld [vmem:[%s4 + $0xac] sm:$0xf]
      %v718 = vld [vmem:[%s4 + $0xb0] sm:$0xf]
      %v719 = vld [vmem:[%s4 + $0xb4] sm:$0xf]
      %v720 = vld [vmem:[%s4 + $0xb8] sm:$0xf]
      %v721 = vld [vmem:[%s4 + $0xbc] sm:$0xf]
      %v722 = vld [vmem:[%s4 + $0xc0] sm:$0xf]
      %v723 = vld [vmem:[%s4 + $0xc4] sm:$0xf]
      %v724 = vld [vmem:[%s4 + $0xc8] sm:$0xf]
      %v725 = vld [vmem:[%s4 + $0xcc] sm:$0xf]
      %v726 = vld [vmem:[%s4 + $0xd0] sm:$0xf]
      %v727 = vld [vmem:[%s4 + $0xd4] sm:$0xf]
      %v728 = vld [vmem:[%s4 + $0xd8] sm:$0xf]
      %v729 = vld [vmem:[%s4 + $0xdc] sm:$0xf]
      %v730 = vld [vmem:[%s4 + $0xe0] sm:$0xf]
      %v731 = vld [vmem:[%s4 + $0xe4] sm:$0xf]
      %v732 = vld [vmem:[%s4 + $0xe8] sm:$0xf]
      %v733 = vld [vmem:[%s4 + $0xec] sm:$0xf]
      %v734 = vld [vmem:[%s4 + $0xf0] sm:$0xf]
      %v735 = vld [vmem:[%s4 + $0xf4] sm:$0xf]
      %v736 = vld [vmem:[%s4 + $0xf8] sm:$0xf]
      %v737 = vld [vmem:[%s4 + $0xfc] sm:$0xf]
      %v742 = vunpack.c.l.b16 %v429
      %v743 = vunpack.c.h.b16 %v429
      %v744 = vunpack.c.l.b16 %v430
      %v745 = vunpack.c.h.b16 %v430
      %v746 = vunpack.c.l.b16 %v431
      %v747 = vunpack.c.h.b16 %v431
      %v748 = vunpack.c.l.b16 %v432
      %v749 = vunpack.c.h.b16 %v432
      %v750 = vpack.c.b16 %v746, %v742
      %v751 = vpack.c.b16 %v747, %v743
      %v752 = vpack.c.b16 %v748, %v744
      %v753 = vpack.c.b16 %v749, %v745
      %v822 = vunpack.c.l.b16 %v674
      %v823 = vunpack.c.l.b16 %v675
      %v824 = vunpack.c.l.b16 %v676
      %v825 = vunpack.c.l.b16 %v677
      %v826 = vunpack.c.l.b16 %v678
      %v827 = vunpack.c.l.b16 %v679
      %v828 = vunpack.c.l.b16 %v680
      %v829 = vunpack.c.l.b16 %v681
      %v830 = vunpack.c.l.b16 %v682
      %v831 = vunpack.c.l.b16 %v683
      %v832 = vunpack.c.l.b16 %v684
      %v833 = vunpack.c.l.b16 %v685
      %v834 = vunpack.c.l.b16 %v686
      %v835 = vunpack.c.l.b16 %v687
      %v836 = vunpack.c.l.b16 %v688
      %v837 = vunpack.c.l.b16 %v689
      %v838 = vunpack.c.l.b16 %v690
      %v839 = vunpack.c.l.b16 %v691
      %v840 = vunpack.c.l.b16 %v692
      %v841 = vunpack.c.l.b16 %v693
      %v842 = vunpack.c.l.b16 %v694
      %v843 = vunpack.c.l.b16 %v695
      %v844 = vunpack.c.l.b16 %v696
      %v845 = vunpack.c.l.b16 %v697
      %v846 = vunpack.c.l.b16 %v698
      %v847 = vunpack.c.l.b16 %v699
      %v848 = vunpack.c.l.b16 %v700
      %v849 = vunpack.c.l.b16 %v701
      %v850 = vunpack.c.l.b16 %v702
      %v851 = vunpack.c.l.b16 %v703
      %v852 = vunpack.c.l.b16 %v704
      %v853 = vunpack.c.l.b16 %v705
      %v854 = vunpack.c.l.b16 %v706
      %v855 = vunpack.c.l.b16 %v707
      %v856 = vunpack.c.l.b16 %v708
      %v857 = vunpack.c.l.b16 %v709
      %v858 = vunpack.c.l.b16 %v710
      %v859 = vunpack.c.l.b16 %v711
      %v860 = vunpack.c.l.b16 %v712
      %v861 = vunpack.c.l.b16 %v713
      %v862 = vunpack.c.l.b16 %v714
      %v863 = vunpack.c.l.b16 %v715
      %v864 = vunpack.c.l.b16 %v716
      %v865 = vunpack.c.l.b16 %v717
      %v866 = vunpack.c.l.b16 %v718
      %v867 = vunpack.c.l.b16 %v719
      %v868 = vunpack.c.l.b16 %v720
      %v869 = vunpack.c.l.b16 %v721
      %v870 = vunpack.c.l.b16 %v722
      %v871 = vunpack.c.l.b16 %v723
      %v872 = vunpack.c.l.b16 %v724
      %v873 = vunpack.c.l.b16 %v725
      %v874 = vunpack.c.l.b16 %v726
      %v875 = vunpack.c.l.b16 %v727
      %v876 = vunpack.c.l.b16 %v728
      %v877 = vunpack.c.l.b16 %v729
      %v878 = vunpack.c.l.b16 %v730
      %v879 = vunpack.c.l.b16 %v731
      %v880 = vunpack.c.l.b16 %v732
      %v881 = vunpack.c.l.b16 %v733
      %v882 = vunpack.c.l.b16 %v734
      %v883 = vunpack.c.l.b16 %v735
      %v884 = vunpack.c.l.b16 %v736
      %v885 = vunpack.c.l.b16 %v737
      %v886 = vpack.c.b16 %v823, %v822
      %v887 = vpack.c.b16 %v825, %v824
      %v888 = vpack.c.b16 %v827, %v826
      %v889 = vpack.c.b16 %v829, %v828
      %v890 = vpack.c.b16 %v831, %v830
      %v891 = vpack.c.b16 %v833, %v832
      %v892 = vpack.c.b16 %v835, %v834
      %v893 = vpack.c.b16 %v837, %v836
      %v894 = vpack.c.b16 %v839, %v838
      %v895 = vpack.c.b16 %v841, %v840
      %v896 = vpack.c.b16 %v843, %v842
      %v897 = vpack.c.b16 %v845, %v844
      %v898 = vpack.c.b16 %v847, %v846
      %v899 = vpack.c.b16 %v849, %v848
      %v900 = vpack.c.b16 %v851, %v850
      %v901 = vpack.c.b16 %v853, %v852
      %v902 = vpack.c.b16 %v855, %v854
      %v903 = vpack.c.b16 %v857, %v856
      %v904 = vpack.c.b16 %v859, %v858
      %v905 = vpack.c.b16 %v861, %v860
      %v906 = vpack.c.b16 %v863, %v862
      %v907 = vpack.c.b16 %v865, %v864
      %v908 = vpack.c.b16 %v867, %v866
      %v909 = vpack.c.b16 %v869, %v868
      %v910 = vpack.c.b16 %v871, %v870
      %v911 = vpack.c.b16 %v873, %v872
      %v912 = vpack.c.b16 %v875, %v874
      %v913 = vpack.c.b16 %v877, %v876
      %v914 = vpack.c.b16 %v879, %v878
      %v915 = vpack.c.b16 %v881, %v880
      %v916 = vpack.c.b16 %v883, %v882
      %v917 = vpack.c.b16 %v885, %v884
      %950 = vmatprep.subr.bf16.mxu0 0
      %951 = vmatpush1.bf16.msra.mxu0 %v886
      %952 = vmatprep.subr.bf16.mxu0 0
      %953 = vmatpush1.bf16.msra.mxu0 %v887
      %954 = vmatprep.subr.bf16.mxu0 0
      %955 = vmatpush1.bf16.msra.mxu0 %v888
      %956 = vmatprep.subr.bf16.mxu0 0
      %957 = vmatpush1.bf16.msra.mxu0 %v889
      %958 = vmatprep.subr.bf16.mxu0 0
      %959 = vmatpush1.bf16.msra.mxu0 %v890
      %960 = vmatprep.subr.bf16.mxu0 0
      %961 = vmatpush1.bf16.msra.mxu0 %v891
      %962 = vmatprep.subr.bf16.mxu0 0
      %963 = vmatpush1.bf16.msra.mxu0 %v892
      %964 = vmatprep.subr.bf16.mxu0 0
      %965 = vmatpush1.bf16.msra.mxu0 %v893
      %966 = vmatprep.subr.bf16.mxu0 0
      %967 = vmatpush1.bf16.msra.mxu0 %v894
      %968 = vmatprep.subr.bf16.mxu0 0
      %969 = vmatpush1.bf16.msra.mxu0 %v895
      %970 = vmatprep.subr.bf16.mxu0 0
      %971 = vmatpush1.bf16.msra.mxu0 %v896
      %972 = vmatprep.subr.bf16.mxu0 0
      %973 = vmatpush1.bf16.msra.mxu0 %v897
      %974 = vmatprep.subr.bf16.mxu0 0
      %975 = vmatpush1.bf16.msra.mxu0 %v898
      %976 = vmatprep.subr.bf16.mxu0 0
      %977 = vmatpush1.bf16.msra.mxu0 %v899
      %978 = vmatprep.subr.bf16.mxu0 0
      %979 = vmatpush1.bf16.msra.mxu0 %v900
      %980 = vmatprep.subr.bf16.mxu0 0
      %981 = vmatpush1.bf16.msra.mxu0 %v901
      %982 = vmatprep.mubr.bf16.mxu0 %v751
      %983 = vmatmul.mubr.bf16.gmra.mrb[0].mxu0 %v750
      %v984 = vpop.f32.mrb[0].mxu0
      %v985 = vadd.f32 0.0, %v984
      %v986 = vpop.f32.mrb[0].mxu0
      %v987 = vpop.f32.mrb[0].mxu0
      %v988 = vadd.f32 0.0, %v987
      %v989 = vpop.f32.mrb[0].mxu0
      %990 = vdwg.mxu0
      %991 = vmatprep.subr.bf16.mxu0 0
      %992 = vmatpush1.bf16.msra.mxu0 %v902
      %993 = vmatprep.subr.bf16.mxu0 0
      %994 = vmatpush1.bf16.msra.mxu0 %v903
      %995 = vmatprep.subr.bf16.mxu0 0
      %996 = vmatpush1.bf16.msra.mxu0 %v904
      %997 = vmatprep.subr.bf16.mxu0 0
      %998 = vmatpush1.bf16.msra.mxu0 %v905
      %999 = vmatprep.subr.bf16.mxu0 0
      %1000 = vmatpush1.bf16.msra.mxu0 %v906
      %1001 = vmatprep.subr.bf16.mxu0 0
      %1002 = vmatpush1.bf16.msra.mxu0 %v907
      %1003 = vmatprep.subr.bf16.mxu0 0
      %1004 = vmatpush1.bf16.msra.mxu0 %v908
      %1005 = vmatprep.subr.bf16.mxu0 0
      %1006 = vmatpush1.bf16.msra.mxu0 %v909
      %1007 = vmatprep.subr.bf16.mxu0 0
      %1008 = vmatpush1.bf16.msra.mxu0 %v910
      %1009 = vmatprep.subr.bf16.mxu0 0
      %1010 = vmatpush1.bf16.msra.mxu0 %v911
      %1011 = vmatprep.subr.bf16.mxu0 0
      %1012 = vmatpush1.bf16.msra.mxu0 %v912
      %1013 = vmatprep.subr.bf16.mxu0 0
      %1014 = vmatpush1.bf16.msra.mxu0 %v913
      %1015 = vmatprep.subr.bf16.mxu0 0
      %1016 = vmatpush1.bf16.msra.mxu0 %v914
      %1017 = vmatprep.subr.bf16.mxu0 0
      %1018 = vmatpush1.bf16.msra.mxu0 %v915
      %1019 = vmatprep.subr.bf16.mxu0 0
      %1020 = vmatpush1.bf16.msra.mxu0 %v916
      %1021 = vmatprep.subr.bf16.mxu0 0
      %1022 = vmatpush1.bf16.msra.mxu0 %v917
      %1023 = vmatprep.mubr.bf16.mxu0 %v753
      %1024 = vmatmul.mubr.bf16.gmra.mrb[0].mxu0 %v752
      %v1025 = vpop.f32.mrb[0].mxu0
      %v1026 = vadd.f32 %v985, %v1025
      %v1027 = vpop.f32.mrb[0].mxu0
      %v1028 = vpop.f32.mrb[0].mxu0
      %v1029 = vadd.f32 %v988, %v1028
      %v1030 = vpop.f32.mrb[0].mxu0
      %1031 = vdwg.mxu0
      %v1032 = vadd.f32 %v644, %v1026
      %v1033 = vadd.f32 %v647, %v1029
      %v1034 = vld [vmem:[%s6] sm:$0x1]
      %v1036 = vlaneseq
      %v1037 = vshrl.u32 %v1036, 7
      %v1038 = vsub.s32 0, %v1037
      %v1039 = vrot.slane %v1034, %v1038
      %v1041 = vadd.f32 %v1032, %v1039
      %v1042 = vadd.f32 %v1033, %v1039
      %1043 = vst [vmem:[#allocation2] sm:$0xff] %v1041
      %1044 = vst [vmem:[#allocation2 + $0x8] sm:$0xff] %v1042
      %s1045 = scalar_lea.vmem %s4, 256
      %v1046 = vld [vmem:[%s1045] sm:$0xf]
      %v1047 = vld [vmem:[%s1045 + $0x4] sm:$0xf]
      %v1048 = vld [vmem:[%s1045 + $0x8] sm:$0xf]
      %v1049 = vld [vmem:[%s1045 + $0xc] sm:$0xf]
      %v1050 = vld [vmem:[%s1045 + $0x10] sm:$0xf]
      %v1051 = vld [vmem:[%s1045 + $0x14] sm:$0xf]
      %v1052 = vld [vmem:[%s1045 + $0x18] sm:$0xf]
      %v1053 = vld [vmem:[%s1045 + $0x1c] sm:$0xf]
      %v1054 = vld [vmem:[%s1045 + $0x20] sm:$0xf]
      %v1055 = vld [vmem:[%s1045 + $0x24] sm:$0xf]
      %v1056 = vld [vmem:[%s1045 + $0x28] sm:$0xf]
      %v1057 = vld [vmem:[%s1045 + $0x2c] sm:$0xf]
      %v1058 = vld [vmem:[%s1045 + $0x30] sm:$0xf]
      %v1059 = vld [vmem:[%s1045 + $0x34] sm:$0xf]
      %v1060 = vld [vmem:[%s1045 + $0x38] sm:$0xf]
      %v1061 = vld [vmem:[%s1045 + $0x3c] sm:$0xf]
      %v1062 = vld [vmem:[%s1045 + $0x40] sm:$0xf]
      %v1063 = vld [vmem:[%s1045 + $0x44] sm:$0xf]
      %v1064 = vld [vmem:[%s1045 + $0x48] sm:$0xf]
      %v1065 = vld [vmem:[%s1045 + $0x4c] sm:$0xf]
      %v1066 = vld [vmem:[%s1045 + $0x50] sm:$0xf]
      %v1067 = vld [vmem:[%s1045 + $0x54] sm:$0xf]
      %v1068 = vld [vmem:[%s1045 + $0x58] sm:$0xf]
      %v1069 = vld [vmem:[%s1045 + $0x5c] sm:$0xf]
      %v1070 = vld [vmem:[%s1045 + $0x60] sm:$0xf]
      %v1071 = vld [vmem:[%s1045 + $0x64] sm:$0xf]
      %v1072 = vld [vmem:[%s1045 + $0x68] sm:$0xf]
      %v1073 = vld [vmem:[%s1045 + $0x6c] sm:$0xf]
      %v1074 = vld [vmem:[%s1045 + $0x70] sm:$0xf]
      %v1075 = vld [vmem:[%s1045 + $0x74] sm:$0xf]
      %v1076 = vld [vmem:[%s1045 + $0x78] sm:$0xf]
      %v1077 = vld [vmem:[%s1045 + $0x7c] sm:$0xf]
      %v1078 = vld [vmem:[%s1045 + $0x80] sm:$0xf]
      %v1079 = vld [vmem:[%s1045 + $0x84] sm:$0xf]
      %v1080 = vld [vmem:[%s1045 + $0x88] sm:$0xf]
      %v1081 = vld [vmem:[%s1045 + $0x8c] sm:$0xf]
      %v1082 = vld [vmem:[%s1045 + $0x90] sm:$0xf]
      %v1083 = vld [vmem:[%s1045 + $0x94] sm:$0xf]
      %v1084 = vld [vmem:[%s1045 + $0x98] sm:$0xf]
      %v1085 = vld [vmem:[%s1045 + $0x9c] sm:$0xf]
      %v1086 = vld [vmem:[%s1045 + $0xa0] sm:$0xf]
      %v1087 = vld [vmem:[%s1045 + $0xa4] sm:$0xf]
      %v1088 = vld [vmem:[%s1045 + $0xa8] sm:$0xf]
      %v1089 = vld [vmem:[%s1045 + $0xac] sm:$0xf]
      %v1090 = vld [vmem:[%s1045 + $0xb0] sm:$0xf]
      %v1091 = vld [vmem:[%s1045 + $0xb4] sm:$0xf]
      %v1092 = vld [vmem:[%s1045 + $0xb8] sm:$0xf]
      %v1093 = vld [vmem:[%s1045 + $0xbc] sm:$0xf]
      %v1094 = vld [vmem:[%s1045 + $0xc0] sm:$0xf]
      %v1095 = vld [vmem:[%s1045 + $0xc4] sm:$0xf]
      %v1096 = vld [vmem:[%s1045 + $0xc8] sm:$0xf]
      %v1097 = vld [vmem:[%s1045 + $0xcc] sm:$0xf]
      %v1098 = vld [vmem:[%s1045 + $0xd0] sm:$0xf]
      %v1099 = vld [vmem:[%s1045 + $0xd4] sm:$0xf]
      %v1100 = vld [vmem:[%s1045 + $0xd8] sm:$0xf]
      %v1101 = vld [vmem:[%s1045 + $0xdc] sm:$0xf]
      %v1102 = vld [vmem:[%s1045 + $0xe0] sm:$0xf]
      %v1103 = vld [vmem:[%s1045 + $0xe4] sm:$0xf]
      %v1104 = vld [vmem:[%s1045 + $0xe8] sm:$0xf]
      %v1105 = vld [vmem:[%s1045 + $0xec] sm:$0xf]
      %v1106 = vld [vmem:[%s1045 + $0xf0] sm:$0xf]
      %v1107 = vld [vmem:[%s1045 + $0xf4] sm:$0xf]
      %v1108 = vld [vmem:[%s1045 + $0xf8] sm:$0xf]
      %v1109 = vld [vmem:[%s1045 + $0xfc] sm:$0xf]
      %v1174 = vunpack.c.l.b16 %v1046
      %v1175 = vunpack.c.l.b16 %v1047
      %v1176 = vunpack.c.l.b16 %v1048
      %v1177 = vunpack.c.l.b16 %v1049
      %v1178 = vunpack.c.l.b16 %v1050
      %v1179 = vunpack.c.l.b16 %v1051
      %v1180 = vunpack.c.l.b16 %v1052
      %v1181 = vunpack.c.l.b16 %v1053
      %v1182 = vunpack.c.l.b16 %v1054
      %v1183 = vunpack.c.l.b16 %v1055
      %v1184 = vunpack.c.l.b16 %v1056
      %v1185 = vunpack.c.l.b16 %v1057
      %v1186 = vunpack.c.l.b16 %v1058
      %v1187 = vunpack.c.l.b16 %v1059
      %v1188 = vunpack.c.l.b16 %v1060
      %v1189 = vunpack.c.l.b16 %v1061
      %v1190 = vunpack.c.l.b16 %v1062
      %v1191 = vunpack.c.l.b16 %v1063
      %v1192 = vunpack.c.l.b16 %v1064
      %v1193 = vunpack.c.l.b16 %v1065
      %v1194 = vunpack.c.l.b16 %v1066
      %v1195 = vunpack.c.l.b16 %v1067
      %v1196 = vunpack.c.l.b16 %v1068
      %v1197 = vunpack.c.l.b16 %v1069
      %v1198 = vunpack.c.l.b16 %v1070
      %v1199 = vunpack.c.l.b16 %v1071
      %v1200 = vunpack.c.l.b16 %v1072
      %v1201 = vunpack.c.l.b16 %v1073
      %v1202 = vunpack.c.l.b16 %v1074
      %v1203 = vunpack.c.l.b16 %v1075
      %v1204 = vunpack.c.l.b16 %v1076
      %v1205 = vunpack.c.l.b16 %v1077
      %v1206 = vunpack.c.l.b16 %v1078
      %v1207 = vunpack.c.l.b16 %v1079
      %v1208 = vunpack.c.l.b16 %v1080
      %v1209 = vunpack.c.l.b16 %v1081
      %v1210 = vunpack.c.l.b16 %v1082
      %v1211 = vunpack.c.l.b16 %v1083
      %v1212 = vunpack.c.l.b16 %v1084
      %v1213 = vunpack.c.l.b16 %v1085
      %v1214 = vunpack.c.l.b16 %v1086
      %v1215 = vunpack.c.l.b16 %v1087
      %v1216 = vunpack.c.l.b16 %v1088
      %v1217 = vunpack.c.l.b16 %v1089
      %v1218 = vunpack.c.l.b16 %v1090
      %v1219 = vunpack.c.l.b16 %v1091
      %v1220 = vunpack.c.l.b16 %v1092
      %v1221 = vunpack.c.l.b16 %v1093
      %v1222 = vunpack.c.l.b16 %v1094
      %v1223 = vunpack.c.l.b16 %v1095
      %v1224 = vunpack.c.l.b16 %v1096
      %v1225 = vunpack.c.l.b16 %v1097
      %v1226 = vunpack.c.l.b16 %v1098
      %v1227 = vunpack.c.l.b16 %v1099
      %v1228 = vunpack.c.l.b16 %v1100
      %v1229 = vunpack.c.l.b16 %v1101
      %v1230 = vunpack.c.l.b16 %v1102
      %v1231 = vunpack.c.l.b16 %v1103
      %v1232 = vunpack.c.l.b16 %v1104
      %v1233 = vunpack.c.l.b16 %v1105
      %v1234 = vunpack.c.l.b16 %v1106
      %v1235 = vunpack.c.l.b16 %v1107
      %v1236 = vunpack.c.l.b16 %v1108
      %v1237 = vunpack.c.l.b16 %v1109
      %v1238 = vpack.c.b16 %v1175, %v1174
      %v1239 = vpack.c.b16 %v1177, %v1176
      %v1240 = vpack.c.b16 %v1179, %v1178
      %v1241 = vpack.c.b16 %v1181, %v1180
      %v1242 = vpack.c.b16 %v1183, %v1182
      %v1243 = vpack.c.b16 %v1185, %v1184
      %v1244 = vpack.c.b16 %v1187, %v1186
      %v1245 = vpack.c.b16 %v1189, %v1188
      %v1246 = vpack.c.b16 %v1191, %v1190
      %v1247 = vpack.c.b16 %v1193, %v1192
      %v1248 = vpack.c.b16 %v1195, %v1194
      %v1249 = vpack.c.b16 %v1197, %v1196
      %v1250 = vpack.c.b16 %v1199, %v1198
      %v1251 = vpack.c.b16 %v1201, %v1200
      %v1252 = vpack.c.b16 %v1203, %v1202
      %v1253 = vpack.c.b16 %v1205, %v1204
      %v1254 = vpack.c.b16 %v1207, %v1206
      %v1255 = vpack.c.b16 %v1209, %v1208
      %v1256 = vpack.c.b16 %v1211, %v1210
      %v1257 = vpack.c.b16 %v1213, %v1212
      %v1258 = vpack.c.b16 %v1215, %v1214
      %v1259 = vpack.c.b16 %v1217, %v1216
      %v1260 = vpack.c.b16 %v1219, %v1218
      %v1261 = vpack.c.b16 %v1221, %v1220
      %v1262 = vpack.c.b16 %v1223, %v1222
      %v1263 = vpack.c.b16 %v1225, %v1224
      %v1264 = vpack.c.b16 %v1227, %v1226
      %v1265 = vpack.c.b16 %v1229, %v1228
      %v1266 = vpack.c.b16 %v1231, %v1230
      %v1267 = vpack.c.b16 %v1233, %v1232
      %v1268 = vpack.c.b16 %v1235, %v1234
      %v1269 = vpack.c.b16 %v1237, %v1236
      %1302 = vmatprep.subr.bf16.mxu0 0
      %1303 = vmatpush1.bf16.msra.mxu0 %v1238
      %1304 = vmatprep.subr.bf16.mxu0 0
      %1305 = vmatpush1.bf16.msra.mxu0 %v1239
      %1306 = vmatprep.subr.bf16.mxu0 0
      %1307 = vmatpush1.bf16.msra.mxu0 %v1240
      %1308 = vmatprep.subr.bf16.mxu0 0
      %1309 = vmatpush1.bf16.msra.mxu0 %v1241
      %1310 = vmatprep.subr.bf16.mxu0 0
      %1311 = vmatpush1.bf16.msra.mxu0 %v1242
      %1312 = vmatprep.subr.bf16.mxu0 0
      %1313 = vmatpush1.bf16.msra.mxu0 %v1243
      %1314 = vmatprep.subr.bf16.mxu0 0
      %1315 = vmatpush1.bf16.msra.mxu0 %v1244
      %1316 = vmatprep.subr.bf16.mxu0 0
      %1317 = vmatpush1.bf16.msra.mxu0 %v1245
      %1318 = vmatprep.subr.bf16.mxu0 0
      %1319 = vmatpush1.bf16.msra.mxu0 %v1246
      %1320 = vmatprep.subr.bf16.mxu0 0
      %1321 = vmatpush1.bf16.msra.mxu0 %v1247
      %1322 = vmatprep.subr.bf16.mxu0 0
      %1323 = vmatpush1.bf16.msra.mxu0 %v1248
      %1324 = vmatprep.subr.bf16.mxu0 0
      %1325 = vmatpush1.bf16.msra.mxu0 %v1249
      %1326 = vmatprep.subr.bf16.mxu0 0
      %1327 = vmatpush1.bf16.msra.mxu0 %v1250
      %1328 = vmatprep.subr.bf16.mxu0 0
      %1329 = vmatpush1.bf16.msra.mxu0 %v1251
      %1330 = vmatprep.subr.bf16.mxu0 0
      %1331 = vmatpush1.bf16.msra.mxu0 %v1252
      %1332 = vmatprep.subr.bf16.mxu0 0
      %1333 = vmatpush1.bf16.msra.mxu0 %v1253
      %1334 = vmatprep.mubr.bf16.mxu0 %v751
      %1335 = vmatmul.mubr.bf16.gmra.mrb[0].mxu0 %v750
      %v1336 = vpop.f32.mrb[0].mxu0
      %v1337 = vadd.f32 0.0, %v1336
      %v1338 = vpop.f32.mrb[0].mxu0
      %v1339 = vpop.f32.mrb[0].mxu0
      %v1340 = vadd.f32 0.0, %v1339
      %v1341 = vpop.f32.mrb[0].mxu0
      %1342 = vdwg.mxu0
      %1343 = vmatprep.subr.bf16.mxu0 0
      %1344 = vmatpush1.bf16.msra.mxu0 %v1254
      %1345 = vmatprep.subr.bf16.mxu0 0
      %1346 = vmatpush1.bf16.msra.mxu0 %v1255
      %1347 = vmatprep.subr.bf16.mxu0 0
      %1348 = vmatpush1.bf16.msra.mxu0 %v1256
      %1349 = vmatprep.subr.bf16.mxu0 0
      %1350 = vmatpush1.bf16.msra.mxu0 %v1257
      %1351 = vmatprep.subr.bf16.mxu0 0
      %1352 = vmatpush1.bf16.msra.mxu0 %v1258
      %1353 = vmatprep.subr.bf16.mxu0 0
      %1354 = vmatpush1.bf16.msra.mxu0 %v1259
      %1355 = vmatprep.subr.bf16.mxu0 0
      %1356 = vmatpush1.bf16.msra.mxu0 %v1260
      %1357 = vmatprep.subr.bf16.mxu0 0
      %1358 = vmatpush1.bf16.msra.mxu0 %v1261
      %1359 = vmatprep.subr.bf16.mxu0 0
      %1360 = vmatpush1.bf16.msra.mxu0 %v1262
      %1361 = vmatprep.subr.bf16.mxu0 0
      %1362 = vmatpush1.bf16.msra.mxu0 %v1263
      %1363 = vmatprep.subr.bf16.mxu0 0
      %1364 = vmatpush1.bf16.msra.mxu0 %v1264
      %1365 = vmatprep.subr.bf16.mxu0 0
      %1366 = vmatpush1.bf16.msra.mxu0 %v1265
      %1367 = vmatprep.subr.bf16.mxu0 0
      %1368 = vmatpush1.bf16.msra.mxu0 %v1266
      %1369 = vmatprep.subr.bf16.mxu0 0
      %1370 = vmatpush1.bf16.msra.mxu0 %v1267
      %1371 = vmatprep.subr.bf16.mxu0 0
      %1372 = vmatpush1.bf16.msra.mxu0 %v1268
      %1373 = vmatprep.subr.bf16.mxu0 0
      %1374 = vmatpush1.bf16.msra.mxu0 %v1269
      %1375 = vmatprep.mubr.bf16.mxu0 %v753
      %1376 = vmatmul.mubr.bf16.gmra.mrb[0].mxu0 %v752
      %v1377 = vpop.f32.mrb[0].mxu0
      %v1378 = vadd.f32 %v1337, %v1377
      %v1379 = vpop.f32.mrb[0].mxu0
      %v1380 = vpop.f32.mrb[0].mxu0
      %v1381 = vadd.f32 %v1340, %v1380
      %v1382 = vpop.f32.mrb[0].mxu0
      %1383 = vdwg.mxu0
      %v1384 = vadd.f32 %v652, %v1378
      %v1385 = vadd.f32 %v655, %v1381
      %s1386 = scalar_lea.vmem %s6, 1
      %v1387 = vld [vmem:[%s1386] sm:$0x1]
      %v1389 = vlaneseq
      %v1390 = vshrl.u32 %v1389, 7
      %v1391 = vsub.s32 0, %v1390
      %v1392 = vrot.slane %v1387, %v1391
      %v1394 = vadd.f32 %v1384, %v1392
      %v1395 = vadd.f32 %v1385, %v1392
      %1396 = vst [vmem:[#allocation2 + $0x10] sm:$0xff] %v1394
      %1397 = vst [vmem:[#allocation2 + $0x18] sm:$0xff] %v1395
      %s1398 = scalar_lea.vmem %s4, 512
      %v1399 = vld [vmem:[%s1398] sm:$0xf]
      %v1400 = vld [vmem:[%s1398 + $0x4] sm:$0xf]
      %v1401 = vld [vmem:[%s1398 + $0x8] sm:$0xf]
      %v1402 = vld [vmem:[%s1398 + $0xc] sm:$0xf]
      %v1403 = vld [vmem:[%s1398 + $0x10] sm:$0xf]
      %v1404 = vld [vmem:[%s1398 + $0x14] sm:$0xf]
      %v1405 = vld [vmem:[%s1398 + $0x18] sm:$0xf]
      %v1406 = vld [vmem:[%s1398 + $0x1c] sm:$0xf]
      %v1407 = vld [vmem:[%s1398 + $0x20] sm:$0xf]
      %v1408 = vld [vmem:[%s1398 + $0x24] sm:$0xf]
      %v1409 = vld [vmem:[%s1398 + $0x28] sm:$0xf]
      %v1410 = vld [vmem:[%s1398 + $0x2c] sm:$0xf]
      %v1411 = vld [vmem:[%s1398 + $0x30] sm:$0xf]
      %v1412 = vld [vmem:[%s1398 + $0x34] sm:$0xf]
      %v1413 = vld [vmem:[%s1398 + $0x38] sm:$0xf]
      %v1414 = vld [vmem:[%s1398 + $0x3c] sm:$0xf]
      %v1415 = vld [vmem:[%s1398 + $0x40] sm:$0xf]
      %v1416 = vld [vmem:[%s1398 + $0x44] sm:$0xf]
      %v1417 = vld [vmem:[%s1398 + $0x48] sm:$0xf]
      %v1418 = vld [vmem:[%s1398 + $0x4c] sm:$0xf]
      %v1419 = vld [vmem:[%s1398 + $0x50] sm:$0xf]
      %v1420 = vld [vmem:[%s1398 + $0x54] sm:$0xf]
      %v1421 = vld [vmem:[%s1398 + $0x58] sm:$0xf]
      %v1422 = vld [vmem:[%s1398 + $0x5c] sm:$0xf]
      %v1423 = vld [vmem:[%s1398 + $0x60] sm:$0xf]
      %v1424 = vld [vmem:[%s1398 + $0x64] sm:$0xf]
      %v1425 = vld [vmem:[%s1398 + $0x68] sm:$0xf]
      %v1426 = vld [vmem:[%s1398 + $0x6c] sm:$0xf]
      %v1427 = vld [vmem:[%s1398 + $0x70] sm:$0xf]
      %v1428 = vld [vmem:[%s1398 + $0x74] sm:$0xf]
      %v1429 = vld [vmem:[%s1398 + $0x78] sm:$0xf]
      %v1430 = vld [vmem:[%s1398 + $0x7c] sm:$0xf]
      %v1431 = vld [vmem:[%s1398 + $0x80] sm:$0xf]
      %v1432 = vld [vmem:[%s1398 + $0x84] sm:$0xf]
      %v1433 = vld [vmem:[%s1398 + $0x88] sm:$0xf]
      %v1434 = vld [vmem:[%s1398 + $0x8c] sm:$0xf]
      %v1435 = vld [vmem:[%s1398 + $0x90] sm:$0xf]
      %v1436 = vld [vmem:[%s1398 + $0x94] sm:$0xf]
      %v1437 = vld [vmem:[%s1398 + $0x98] sm:$0xf]
      %v1438 = vld [vmem:[%s1398 + $0x9c] sm:$0xf]
      %v1439 = vld [vmem:[%s1398 + $0xa0] sm:$0xf]
      %v1440 = vld [vmem:[%s1398 + $0xa4] sm:$0xf]
      %v1441 = vld [vmem:[%s1398 + $0xa8] sm:$0xf]
      %v1442 = vld [vmem:[%s1398 + $0xac] sm:$0xf]
      %v1443 = vld [vmem:[%s1398 + $0xb0] sm:$0xf]
      %v1444 = vld [vmem:[%s1398 + $0xb4] sm:$0xf]
      %v1445 = vld [vmem:[%s1398 + $0xb8] sm:$0xf]
      %v1446 = vld [vmem:[%s1398 + $0xbc] sm:$0xf]
      %v1447 = vld [vmem:[%s1398 + $0xc0] sm:$0xf]
      %v1448 = vld [vmem:[%s1398 + $0xc4] sm:$0xf]
      %v1449 = vld [vmem:[%s1398 + $0xc8] sm:$0xf]
      %v1450 = vld [vmem:[%s1398 + $0xcc] sm:$0xf]
      %v1451 = vld [vmem:[%s1398 + $0xd0] sm:$0xf]
      %v1452 = vld [vmem:[%s1398 + $0xd4] sm:$0xf]
      %v1453 = vld [vmem:[%s1398 + $0xd8] sm:$0xf]
      %v1454 = vld [vmem:[%s1398 + $0xdc] sm:$0xf]
      %v1455 = vld [vmem:[%s1398 + $0xe0] sm:$0xf]
      %v1456 = vld [vmem:[%s1398 + $0xe4] sm:$0xf]
      %v1457 = vld [vmem:[%s1398 + $0xe8] sm:$0xf]
      %v1458 = vld [vmem:[%s1398 + $0xec] sm:$0xf]
      %v1459 = vld [vmem:[%s1398 + $0xf0] sm:$0xf]
      %v1460 = vld [vmem:[%s1398 + $0xf4] sm:$0xf]
      %v1461 = vld [vmem:[%s1398 + $0xf8] sm:$0xf]
      %v1462 = vld [vmem:[%s1398 + $0xfc] sm:$0xf]
      %v1527 = vunpack.c.l.b16 %v1399
      %v1528 = vunpack.c.l.b16 %v1400
      %v1529 = vunpack.c.l.b16 %v1401
      %v1530 = vunpack.c.l.b16 %v1402
      %v1531 = vunpack.c.l.b16 %v1403
      %v1532 = vunpack.c.l.b16 %v1404
      %v1533 = vunpack.c.l.b16 %v1405
      %v1534 = vunpack.c.l.b16 %v1406
      %v1535 = vunpack.c.l.b16 %v1407
      %v1536 = vunpack.c.l.b16 %v1408
      %v1537 = vunpack.c.l.b16 %v1409
      %v1538 = vunpack.c.l.b16 %v1410
      %v1539 = vunpack.c.l.b16 %v1411
      %v1540 = vunpack.c.l.b16 %v1412
      %v1541 = vunpack.c.l.b16 %v1413
      %v1542 = vunpack.c.l.b16 %v1414
      %v1543 = vunpack.c.l.b16 %v1415
      %v1544 = vunpack.c.l.b16 %v1416
      %v1545 = vunpack.c.l.b16 %v1417
      %v1546 = vunpack.c.l.b16 %v1418
      %v1547 = vunpack.c.l.b16 %v1419
      %v1548 = vunpack.c.l.b16 %v1420
      %v1549 = vunpack.c.l.b16 %v1421
      %v1550 = vunpack.c.l.b16 %v1422
      %v1551 = vunpack.c.l.b16 %v1423
      %v1552 = vunpack.c.l.b16 %v1424
      %v1553 = vunpack.c.l.b16 %v1425
      %v1554 = vunpack.c.l.b16 %v1426
      %v1555 = vunpack.c.l.b16 %v1427
      %v1556 = vunpack.c.l.b16 %v1428
      %v1557 = vunpack.c.l.b16 %v1429
      %v1558 = vunpack.c.l.b16 %v1430
      %v1559 = vunpack.c.l.b16 %v1431
      %v1560 = vunpack.c.l.b16 %v1432
      %v1561 = vunpack.c.l.b16 %v1433
      %v1562 = vunpack.c.l.b16 %v1434
      %v1563 = vunpack.c.l.b16 %v1435
      %v1564 = vunpack.c.l.b16 %v1436
      %v1565 = vunpack.c.l.b16 %v1437
      %v1566 = vunpack.c.l.b16 %v1438
      %v1567 = vunpack.c.l.b16 %v1439
      %v1568 = vunpack.c.l.b16 %v1440
      %v1569 = vunpack.c.l.b16 %v1441
      %v1570 = vunpack.c.l.b16 %v1442
      %v1571 = vunpack.c.l.b16 %v1443
      %v1572 = vunpack.c.l.b16 %v1444
      %v1573 = vunpack.c.l.b16 %v1445
      %v1574 = vunpack.c.l.b16 %v1446
      %v1575 = vunpack.c.l.b16 %v1447
      %v1576 = vunpack.c.l.b16 %v1448
      %v1577 = vunpack.c.l.b16 %v1449
      %v1578 = vunpack.c.l.b16 %v1450
      %v1579 = vunpack.c.l.b16 %v1451
      %v1580 = vunpack.c.l.b16 %v1452
      %v1581 = vunpack.c.l.b16 %v1453
      %v1582 = vunpack.c.l.b16 %v1454
      %v1583 = vunpack.c.l.b16 %v1455
      %v1584 = vunpack.c.l.b16 %v1456
      %v1585 = vunpack.c.l.b16 %v1457
      %v1586 = vunpack.c.l.b16 %v1458
      %v1587 = vunpack.c.l.b16 %v1459
      %v1588 = vunpack.c.l.b16 %v1460
      %v1589 = vunpack.c.l.b16 %v1461
      %v1590 = vunpack.c.l.b16 %v1462
      %v1591 = vpack.c.b16 %v1528, %v1527
      %v1592 = vpack.c.b16 %v1530, %v1529
      %v1593 = vpack.c.b16 %v1532, %v1531
      %v1594 = vpack.c.b16 %v1534, %v1533
      %v1595 = vpack.c.b16 %v1536, %v1535
      %v1596 = vpack.c.b16 %v1538, %v1537
      %v1597 = vpack.c.b16 %v1540, %v1539
      %v1598 = vpack.c.b16 %v1542, %v1541
      %v1599 = vpack.c.b16 %v1544, %v1543
      %v1600 = vpack.c.b16 %v1546, %v1545
      %v1601 = vpack.c.b16 %v1548, %v1547
      %v1602 = vpack.c.b16 %v1550, %v1549
      %v1603 = vpack.c.b16 %v1552, %v1551
      %v1604 = vpack.c.b16 %v1554, %v1553
      %v1605 = vpack.c.b16 %v1556, %v1555
      %v1606 = vpack.c.b16 %v1558, %v1557
      %v1607 = vpack.c.b16 %v1560, %v1559
      %v1608 = vpack.c.b16 %v1562, %v1561
      %v1609 = vpack.c.b16 %v1564, %v1563
      %v1610 = vpack.c.b16 %v1566, %v1565
      %v1611 = vpack.c.b16 %v1568, %v1567
      %v1612 = vpack.c.b16 %v1570, %v1569
      %v1613 = vpack.c.b16 %v1572, %v1571
      %v1614 = vpack.c.b16 %v1574, %v1573
      %v1615 = vpack.c.b16 %v1576, %v1575
      %v1616 = vpack.c.b16 %v1578, %v1577
      %v1617 = vpack.c.b16 %v1580, %v1579
      %v1618 = vpack.c.b16 %v1582, %v1581
      %v1619 = vpack.c.b16 %v1584, %v1583
      %v1620 = vpack.c.b16 %v1586, %v1585
      %v1621 = vpack.c.b16 %v1588, %v1587
      %v1622 = vpack.c.b16 %v1590, %v1589
      %1655 = vmatprep.subr.bf16.mxu0 0
      %1656 = vmatpush1.bf16.msra.mxu0 %v1591
      %1657 = vmatprep.subr.bf16.mxu0 0
      %1658 = vmatpush1.bf16.msra.mxu0 %v1592
      %1659 = vmatprep.subr.bf16.mxu0 0
      %1660 = vmatpush1.bf16.msra.mxu0 %v1593
      %1661 = vmatprep.subr.bf16.mxu0 0
      %1662 = vmatpush1.bf16.msra.mxu0 %v1594
      %1663 = vmatprep.subr.bf16.mxu0 0
      %1664 = vmatpush1.bf16.msra.mxu0 %v1595
      %1665 = vmatprep.subr.bf16.mxu0 0
      %1666 = vmatpush1.bf16.msra.mxu0 %v1596
      %1667 = vmatprep.subr.bf16.mxu0 0
      %1668 = vmatpush1.bf16.msra.mxu0 %v1597
      %1669 = vmatprep.subr.bf16.mxu0 0
      %1670 = vmatpush1.bf16.msra.mxu0 %v1598
      %1671 = vmatprep.subr.bf16.mxu0 0
      %1672 = vmatpush1.bf16.msra.mxu0 %v1599
      %1673 = vmatprep.subr.bf16.mxu0 0
      %1674 = vmatpush1.bf16.msra.mxu0 %v1600
      %1675 = vmatprep.subr.bf16.mxu0 0
      %1676 = vmatpush1.bf16.msra.mxu0 %v1601
      %1677 = vmatprep.subr.bf16.mxu0 0
      %1678 = vmatpush1.bf16.msra.mxu0 %v1602
      %1679 = vmatprep.subr.bf16.mxu0 0
      %1680 = vmatpush1.bf16.msra.mxu0 %v1603
      %1681 = vmatprep.subr.bf16.mxu0 0
      %1682 = vmatpush1.bf16.msra.mxu0 %v1604
      %1683 = vmatprep.subr.bf16.mxu0 0
      %1684 = vmatpush1.bf16.msra.mxu0 %v1605
      %1685 = vmatprep.subr.bf16.mxu0 0
      %1686 = vmatpush1.bf16.msra.mxu0 %v1606
      %1687 = vmatprep.mubr.bf16.mxu0 %v751
      %1688 = vmatmul.mubr.bf16.gmra.mrb[0].mxu0 %v750
      %v1689 = vpop.f32.mrb[0].mxu0
      %v1690 = vadd.f32 0.0, %v1689
      %v1691 = vpop.f32.mrb[0].mxu0
      %v1692 = vpop.f32.mrb[0].mxu0
      %v1693 = vadd.f32 0.0, %v1692
      %v1694 = vpop.f32.mrb[0].mxu0
      %1695 = vdwg.mxu0
      %1696 = vmatprep.subr.bf16.mxu0 0
      %1697 = vmatpush1.bf16.msra.mxu0 %v1607
      %1698 = vmatprep.subr.bf16.mxu0 0
      %1699 = vmatpush1.bf16.msra.mxu0 %v1608
      %1700 = vmatprep.subr.bf16.mxu0 0
      %1701 = vmatpush1.bf16.msra.mxu0 %v1609
      %1702 = vmatprep.subr.bf16.mxu0 0
      %1703 = vmatpush1.bf16.msra.mxu0 %v1610
      %1704 = vmatprep.subr.bf16.mxu0 0
      %1705 = vmatpush1.bf16.msra.mxu0 %v1611
      %1706 = vmatprep.subr.bf16.mxu0 0
      %1707 = vmatpush1.bf16.msra.mxu0 %v1612
      %1708 = vmatprep.subr.bf16.mxu0 0
      %1709 = vmatpush1.bf16.msra.mxu0 %v1613
      %1710 = vmatprep.subr.bf16.mxu0 0
      %1711 = vmatpush1.bf16.msra.mxu0 %v1614
      %1712 = vmatprep.subr.bf16.mxu0 0
      %1713 = vmatpush1.bf16.msra.mxu0 %v1615
      %1714 = vmatprep.subr.bf16.mxu0 0
      %1715 = vmatpush1.bf16.msra.mxu0 %v1616
      %1716 = vmatprep.subr.bf16.mxu0 0
      %1717 = vmatpush1.bf16.msra.mxu0 %v1617
      %1718 = vmatprep.subr.bf16.mxu0 0
      %1719 = vmatpush1.bf16.msra.mxu0 %v1618
      %1720 = vmatprep.subr.bf16.mxu0 0
      %1721 = vmatpush1.bf16.msra.mxu0 %v1619
      %1722 = vmatprep.subr.bf16.mxu0 0
      %1723 = vmatpush1.bf16.msra.mxu0 %v1620
      %1724 = vmatprep.subr.bf16.mxu0 0
      %1725 = vmatpush1.bf16.msra.mxu0 %v1621
      %1726 = vmatprep.subr.bf16.mxu0 0
      %1727 = vmatpush1.bf16.msra.mxu0 %v1622
      %1728 = vmatprep.mubr.bf16.mxu0 %v753
      %1729 = vmatmul.mubr.bf16.gmra.mrb[0].mxu0 %v752
      %v1730 = vpop.f32.mrb[0].mxu0
      %v1731 = vadd.f32 %v1690, %v1730
      %v1732 = vpop.f32.mrb[0].mxu0
      %v1733 = vpop.f32.mrb[0].mxu0
      %v1734 = vadd.f32 %v1693, %v1733
      %v1735 = vpop.f32.mrb[0].mxu0
      %1736 = vdwg.mxu0
      %v1737 = vadd.f32 %v660, %v1731
      %v1738 = vadd.f32 %v663, %v1734
      %s1739 = scalar_lea.vmem %s6, 2
      %v1740 = vld [vmem:[%s1739] sm:$0x1]
      %v1742 = vlaneseq
      %v1743 = vshrl.u32 %v1742, 7
      %v1744 = vsub.s32 0, %v1743
      %v1745 = vrot.slane %v1740, %v1744
      %v1747 = vadd.f32 %v1737, %v1745
      %v1748 = vadd.f32 %v1738, %v1745
      %1749 = vst [vmem:[#allocation2 + $0x20] sm:$0xff] %v1747
      %1750 = vst [vmem:[#allocation2 + $0x28] sm:$0xff] %v1748
      %s1751 = scalar_lea.vmem %s4, 768
      %v1752 = vld [vmem:[%s1751] sm:$0xf]
      %v1753 = vld [vmem:[%s1751 + $0x4] sm:$0xf]
      %v1754 = vld [vmem:[%s1751 + $0x8] sm:$0xf]
      %v1755 = vld [vmem:[%s1751 + $0xc] sm:$0xf]
      %v1756 = vld [vmem:[%s1751 + $0x10] sm:$0xf]
      %v1757 = vld [vmem:[%s1751 + $0x14] sm:$0xf]
      %v1758 = vld [vmem:[%s1751 + $0x18] sm:$0xf]
      %v1759 = vld [vmem:[%s1751 + $0x1c] sm:$0xf]
      %v1760 = vld [vmem:[%s1751 + $0x20] sm:$0xf]
      %v1761 = vld [vmem:[%s1751 + $0x24] sm:$0xf]
      %v1762 = vld [vmem:[%s1751 + $0x28] sm:$0xf]
      %v1763 = vld [vmem:[%s1751 + $0x2c] sm:$0xf]
      %v1764 = vld [vmem:[%s1751 + $0x30] sm:$0xf]
      %v1765 = vld [vmem:[%s1751 + $0x34] sm:$0xf]
      %v1766 = vld [vmem:[%s1751 + $0x38] sm:$0xf]
      %v1767 = vld [vmem:[%s1751 + $0x3c] sm:$0xf]
      %v1768 = vld [vmem:[%s1751 + $0x40] sm:$0xf]
      %v1769 = vld [vmem:[%s1751 + $0x44] sm:$0xf]
      %v1770 = vld [vmem:[%s1751 + $0x48] sm:$0xf]
      %v1771 = vld [vmem:[%s1751 + $0x4c] sm:$0xf]
      %v1772 = vld [vmem:[%s1751 + $0x50] sm:$0xf]
      %v1773 = vld [vmem:[%s1751 + $0x54] sm:$0xf]
      %v1774 = vld [vmem:[%s1751 + $0x58] sm:$0xf]
      %v1775 = vld [vmem:[%s1751 + $0x5c] sm:$0xf]
      %v1776 = vld [vmem:[%s1751 + $0x60] sm:$0xf]
      %v1777 = vld [vmem:[%s1751 + $0x64] sm:$0xf]
      %v1778 = vld [vmem:[%s1751 + $0x68] sm:$0xf]
      %v1779 = vld [vmem:[%s1751 + $0x6c] sm:$0xf]
      %v1780 = vld [vmem:[%s1751 + $0x70] sm:$0xf]
      %v1781 = vld [vmem:[%s1751 + $0x74] sm:$0xf]
      %v1782 = vld [vmem:[%s1751 + $0x78] sm:$0xf]
      %v1783 = vld [vmem:[%s1751 + $0x7c] sm:$0xf]
      %v1784 = vld [vmem:[%s1751 + $0x80] sm:$0xf]
      %v1785 = vld [vmem:[%s1751 + $0x84] sm:$0xf]
      %v1786 = vld [vmem:[%s1751 + $0x88] sm:$0xf]
      %v1787 = vld [vmem:[%s1751 + $0x8c] sm:$0xf]
      %v1788 = vld [vmem:[%s1751 + $0x90] sm:$0xf]
      %v1789 = vld [vmem:[%s1751 + $0x94] sm:$0xf]
      %v1790 = vld [vmem:[%s1751 + $0x98] sm:$0xf]
      %v1791 = vld [vmem:[%s1751 + $0x9c] sm:$0xf]
      %v1792 = vld [vmem:[%s1751 + $0xa0] sm:$0xf]
      %v1793 = vld [vmem:[%s1751 + $0xa4] sm:$0xf]
      %v1794 = vld [vmem:[%s1751 + $0xa8] sm:$0xf]
      %v1795 = vld [vmem:[%s1751 + $0xac] sm:$0xf]
      %v1796 = vld [vmem:[%s1751 + $0xb0] sm:$0xf]
      %v1797 = vld [vmem:[%s1751 + $0xb4] sm:$0xf]
      %v1798 = vld [vmem:[%s1751 + $0xb8] sm:$0xf]
      %v1799 = vld [vmem:[%s1751 + $0xbc] sm:$0xf]
      %v1800 = vld [vmem:[%s1751 + $0xc0] sm:$0xf]
      %v1801 = vld [vmem:[%s1751 + $0xc4] sm:$0xf]
      %v1802 = vld [vmem:[%s1751 + $0xc8] sm:$0xf]
      %v1803 = vld [vmem:[%s1751 + $0xcc] sm:$0xf]
      %v1804 = vld [vmem:[%s1751 + $0xd0] sm:$0xf]
      %v1805 = vld [vmem:[%s1751 + $0xd4] sm:$0xf]
      %v1806 = vld [vmem:[%s1751 + $0xd8] sm:$0xf]
      %v1807 = vld [vmem:[%s1751 + $0xdc] sm:$0xf]
      %v1808 = vld [vmem:[%s1751 + $0xe0] sm:$0xf]
      %v1809 = vld [vmem:[%s1751 + $0xe4] sm:$0xf]
      %v1810 = vld [vmem:[%s1751 + $0xe8] sm:$0xf]
      %v1811 = vld [vmem:[%s1751 + $0xec] sm:$0xf]
      %v1812 = vld [vmem:[%s1751 + $0xf0] sm:$0xf]
      %v1813 = vld [vmem:[%s1751 + $0xf4] sm:$0xf]
      %v1814 = vld [vmem:[%s1751 + $0xf8] sm:$0xf]
      %v1815 = vld [vmem:[%s1751 + $0xfc] sm:$0xf]
      %v1880 = vunpack.c.l.b16 %v1752
      %v1881 = vunpack.c.l.b16 %v1753
      %v1882 = vunpack.c.l.b16 %v1754
      %v1883 = vunpack.c.l.b16 %v1755
      %v1884 = vunpack.c.l.b16 %v1756
      %v1885 = vunpack.c.l.b16 %v1757
      %v1886 = vunpack.c.l.b16 %v1758
      %v1887 = vunpack.c.l.b16 %v1759
      %v1888 = vunpack.c.l.b16 %v1760
      %v1889 = vunpack.c.l.b16 %v1761
      %v1890 = vunpack.c.l.b16 %v1762
      %v1891 = vunpack.c.l.b16 %v1763
      %v1892 = vunpack.c.l.b16 %v1764
      %v1893 = vunpack.c.l.b16 %v1765
      %v1894 = vunpack.c.l.b16 %v1766
      %v1895 = vunpack.c.l.b16 %v1767
      %v1896 = vunpack.c.l.b16 %v1768
      %v1897 = vunpack.c.l.b16 %v1769
      %v1898 = vunpack.c.l.b16 %v1770
      %v1899 = vunpack.c.l.b16 %v1771
      %v1900 = vunpack.c.l.b16 %v1772
      %v1901 = vunpack.c.l.b16 %v1773
      %v1902 = vunpack.c.l.b16 %v1774
      %v1903 = vunpack.c.l.b16 %v1775
      %v1904 = vunpack.c.l.b16 %v1776
      %v1905 = vunpack.c.l.b16 %v1777
      %v1906 = vunpack.c.l.b16 %v1778
      %v1907 = vunpack.c.l.b16 %v1779
      %v1908 = vunpack.c.l.b16 %v1780
      %v1909 = vunpack.c.l.b16 %v1781
      %v1910 = vunpack.c.l.b16 %v1782
      %v1911 = vunpack.c.l.b16 %v1783
      %v1912 = vunpack.c.l.b16 %v1784
      %v1913 = vunpack.c.l.b16 %v1785
      %v1914 = vunpack.c.l.b16 %v1786
      %v1915 = vunpack.c.l.b16 %v1787
      %v1916 = vunpack.c.l.b16 %v1788
      %v1917 = vunpack.c.l.b16 %v1789
      %v1918 = vunpack.c.l.b16 %v1790
      %v1919 = vunpack.c.l.b16 %v1791
      %v1920 = vunpack.c.l.b16 %v1792
      %v1921 = vunpack.c.l.b16 %v1793
      %v1922 = vunpack.c.l.b16 %v1794
      %v1923 = vunpack.c.l.b16 %v1795
      %v1924 = vunpack.c.l.b16 %v1796
      %v1925 = vunpack.c.l.b16 %v1797
      %v1926 = vunpack.c.l.b16 %v1798
      %v1927 = vunpack.c.l.b16 %v1799
      %v1928 = vunpack.c.l.b16 %v1800
      %v1929 = vunpack.c.l.b16 %v1801
      %v1930 = vunpack.c.l.b16 %v1802
      %v1931 = vunpack.c.l.b16 %v1803
      %v1932 = vunpack.c.l.b16 %v1804
      %v1933 = vunpack.c.l.b16 %v1805
      %v1934 = vunpack.c.l.b16 %v1806
      %v1935 = vunpack.c.l.b16 %v1807
      %v1936 = vunpack.c.l.b16 %v1808
      %v1937 = vunpack.c.l.b16 %v1809
      %v1938 = vunpack.c.l.b16 %v1810
      %v1939 = vunpack.c.l.b16 %v1811
      %v1940 = vunpack.c.l.b16 %v1812
      %v1941 = vunpack.c.l.b16 %v1813
      %v1942 = vunpack.c.l.b16 %v1814
      %v1943 = vunpack.c.l.b16 %v1815
      %v1944 = vpack.c.b16 %v1881, %v1880
      %v1945 = vpack.c.b16 %v1883, %v1882
      %v1946 = vpack.c.b16 %v1885, %v1884
      %v1947 = vpack.c.b16 %v1887, %v1886
      %v1948 = vpack.c.b16 %v1889, %v1888
      %v1949 = vpack.c.b16 %v1891, %v1890
      %v1950 = vpack.c.b16 %v1893, %v1892
      %v1951 = vpack.c.b16 %v1895, %v1894
      %v1952 = vpack.c.b16 %v1897, %v1896
      %v1953 = vpack.c.b16 %v1899, %v1898
      %v1954 = vpack.c.b16 %v1901, %v1900
      %v1955 = vpack.c.b16 %v1903, %v1902
      %v1956 = vpack.c.b16 %v1905, %v1904
      %v1957 = vpack.c.b16 %v1907, %v1906
      %v1958 = vpack.c.b16 %v1909, %v1908
      %v1959 = vpack.c.b16 %v1911, %v1910
      %v1960 = vpack.c.b16 %v1913, %v1912
      %v1961 = vpack.c.b16 %v1915, %v1914
      %v1962 = vpack.c.b16 %v1917, %v1916
      %v1963 = vpack.c.b16 %v1919, %v1918
      %v1964 = vpack.c.b16 %v1921, %v1920
      %v1965 = vpack.c.b16 %v1923, %v1922
      %v1966 = vpack.c.b16 %v1925, %v1924
      %v1967 = vpack.c.b16 %v1927, %v1926
      %v1968 = vpack.c.b16 %v1929, %v1928
      %v1969 = vpack.c.b16 %v1931, %v1930
      %v1970 = vpack.c.b16 %v1933, %v1932
      %v1971 = vpack.c.b16 %v1935, %v1934
      %v1972 = vpack.c.b16 %v1937, %v1936
      %v1973 = vpack.c.b16 %v1939, %v1938
      %v1974 = vpack.c.b16 %v1941, %v1940
      %v1975 = vpack.c.b16 %v1943, %v1942
      %2008 = vmatprep.subr.bf16.mxu0 0
      %2009 = vmatpush1.bf16.msra.mxu0 %v1944
      %2010 = vmatprep.subr.bf16.mxu0 0
      %2011 = vmatpush1.bf16.msra.mxu0 %v1945
      %2012 = vmatprep.subr.bf16.mxu0 0
      %2013 = vmatpush1.bf16.msra.mxu0 %v1946
      %2014 = vmatprep.subr.bf16.mxu0 0
      %2015 = vmatpush1.bf16.msra.mxu0 %v1947
      %2016 = vmatprep.subr.bf16.mxu0 0
      %2017 = vmatpush1.bf16.msra.mxu0 %v1948
      %2018 = vmatprep.subr.bf16.mxu0 0
      %2019 = vmatpush1.bf16.msra.mxu0 %v1949
      %2020 = vmatprep.subr.bf16.mxu0 0
      %2021 = vmatpush1.bf16.msra.mxu0 %v1950
      %2022 = vmatprep.subr.bf16.mxu0 0
      %2023 = vmatpush1.bf16.msra.mxu0 %v1951
      %2024 = vmatprep.subr.bf16.mxu0 0
      %2025 = vmatpush1.bf16.msra.mxu0 %v1952
      %2026 = vmatprep.subr.bf16.mxu0 0
      %2027 = vmatpush1.bf16.msra.mxu0 %v1953
      %2028 = vmatprep.subr.bf16.mxu0 0
      %2029 = vmatpush1.bf16.msra.mxu0 %v1954
      %2030 = vmatprep.subr.bf16.mxu0 0
      %2031 = vmatpush1.bf16.msra.mxu0 %v1955
      %2032 = vmatprep.subr.bf16.mxu0 0
      %2033 = vmatpush1.bf16.msra.mxu0 %v1956
      %2034 = vmatprep.subr.bf16.mxu0 0
      %2035 = vmatpush1.bf16.msra.mxu0 %v1957
      %2036 = vmatprep.subr.bf16.mxu0 0
      %2037 = vmatpush1.bf16.msra.mxu0 %v1958
      %2038 = vmatprep.subr.bf16.mxu0 0
      %2039 = vmatpush1.bf16.msra.mxu0 %v1959
      %2040 = vmatprep.mubr.bf16.mxu0 %v751
      %2041 = vmatmul.mubr.bf16.gmra.mrb[0].mxu0 %v750
      %v2042 = vpop.f32.mrb[0].mxu0
      %v2043 = vadd.f32 0.0, %v2042
      %v2044 = vpop.f32.mrb[0].mxu0
      %v2045 = vpop.f32.mrb[0].mxu0
      %v2046 = vadd.f32 0.0, %v2045
      %v2047 = vpop.f32.mrb[0].mxu0
      %2048 = vdwg.mxu0
      %2049 = vmatprep.subr.bf16.mxu0 0
      %2050 = vmatpush1.bf16.msra.mxu0 %v1960
      %2051 = vmatprep.subr.bf16.mxu0 0
      %2052 = vmatpush1.bf16.msra.mxu0 %v1961
      %2053 = vmatprep.subr.bf16.mxu0 0
      %2054 = vmatpush1.bf16.msra.mxu0 %v1962
      %2055 = vmatprep.subr.bf16.mxu0 0
      %2056 = vmatpush1.bf16.msra.mxu0 %v1963
      %2057 = vmatprep.subr.bf16.mxu0 0
      %2058 = vmatpush1.bf16.msra.mxu0 %v1964
      %2059 = vmatprep.subr.bf16.mxu0 0
      %2060 = vmatpush1.bf16.msra.mxu0 %v1965
      %2061 = vmatprep.subr.bf16.mxu0 0
      %2062 = vmatpush1.bf16.msra.mxu0 %v1966
      %2063 = vmatprep.subr.bf16.mxu0 0
      %2064 = vmatpush1.bf16.msra.mxu0 %v1967
      %2065 = vmatprep.subr.bf16.mxu0 0
      %2066 = vmatpush1.bf16.msra.mxu0 %v1968
      %2067 = vmatprep.subr.bf16.mxu0 0
      %2068 = vmatpush1.bf16.msra.mxu0 %v1969
      %2069 = vmatprep.subr.bf16.mxu0 0
      %2070 = vmatpush1.bf16.msra.mxu0 %v1970
      %2071 = vmatprep.subr.bf16.mxu0 0
      %2072 = vmatpush1.bf16.msra.mxu0 %v1971
      %2073 = vmatprep.subr.bf16.mxu0 0
      %2074 = vmatpush1.bf16.msra.mxu0 %v1972
      %2075 = vmatprep.subr.bf16.mxu0 0
      %2076 = vmatpush1.bf16.msra.mxu0 %v1973
      %2077 = vmatprep.subr.bf16.mxu0 0
      %2078 = vmatpush1.bf16.msra.mxu0 %v1974
      %2079 = vmatprep.subr.bf16.mxu0 0
      %2080 = vmatpush1.bf16.msra.mxu0 %v1975
      %2081 = vmatprep.mubr.bf16.mxu0 %v753
      %2082 = vmatmul.mubr.bf16.gmra.mrb[0].mxu0 %v752
      %v2083 = vpop.f32.mrb[0].mxu0
      %v2084 = vadd.f32 %v2043, %v2083
      %v2085 = vpop.f32.mrb[0].mxu0
      %v2086 = vpop.f32.mrb[0].mxu0
      %v2087 = vadd.f32 %v2046, %v2086
      %v2088 = vpop.f32.mrb[0].mxu0
      %2089 = vdwg.mxu0
      %v2090 = vadd.f32 %v668, %v2084
      %v2091 = vadd.f32 %v671, %v2087
      %s2092 = scalar_lea.vmem %s6, 3
      %v2093 = vld [vmem:[%s2092] sm:$0x1]
      %v2095 = vlaneseq
      %v2096 = vshrl.u32 %v2095, 7
      %v2097 = vsub.s32 0, %v2096
      %v2098 = vrot.slane %v2093, %v2097
      %v2100 = vadd.f32 %v2090, %v2098
      %v2101 = vadd.f32 %v2091, %v2098
      %2102 = vst [vmem:[#allocation2 + $0x30] sm:$0xff] %v2100
      %2103 = vst [vmem:[#allocation2 + $0x38] sm:$0xff] %v2101
      %v2104 = vld [vmem:[#allocation2] sm:$0xff]
      %v2105 = vld [vmem:[#allocation2 + $0x8] sm:$0xff]
      %v2106 = vld [vmem:[#allocation2 + $0x10] sm:$0xff]
      %v2107 = vld [vmem:[#allocation2 + $0x18] sm:$0xff]
      %v2108 = vld [vmem:[#allocation2 + $0x20] sm:$0xff]
      %v2109 = vld [vmem:[#allocation2 + $0x28] sm:$0xff]
      %v2110 = vld [vmem:[#allocation2 + $0x30] sm:$0xff]
      %v2111 = vld [vmem:[#allocation2 + $0x38] sm:$0xff]
      %v2112 = vpack.c.bf16 %v2105, %v2104
      %v2113 = vpack.c.bf16 %v2107, %v2106
      %v2114 = vpack.c.bf16 %v2109, %v2108
      %v2115 = vpack.c.bf16 %v2111, %v2110
      %v2116 = vld [vmem:[%s422] sm:$0xf]
      %v2117 = vld [vmem:[%s422 + $0x4] sm:$0xf]
      %v2118 = vld [vmem:[%s422 + $0x8] sm:$0xf]
      %v2119 = vld [vmem:[%s422 + $0xc] sm:$0xf]
      %v2120 = vld [vmem:[%s422 + $0x10] sm:$0xf]
      %v2121 = vld [vmem:[%s422 + $0x14] sm:$0xf]
      %v2122 = vld [vmem:[%s422 + $0x18] sm:$0xf]
      %v2123 = vld [vmem:[%s422 + $0x1c] sm:$0xf]
      %v2124 = vld [vmem:[%s422 + $0x20] sm:$0xf]
      %v2125 = vld [vmem:[%s422 + $0x24] sm:$0xf]
      %v2126 = vld [vmem:[%s422 + $0x28] sm:$0xf]
      %v2127 = vld [vmem:[%s422 + $0x2c] sm:$0xf]
      %v2128 = vld [vmem:[%s422 + $0x30] sm:$0xf]
      %v2129 = vld [vmem:[%s422 + $0x34] sm:$0xf]
      %v2130 = vld [vmem:[%s422 + $0x38] sm:$0xf]
      %v2131 = vld [vmem:[%s422 + $0x3c] sm:$0xf]
      %v2132 = vld [vmem:[%s422 + $0x40] sm:$0xf]
      %v2133 = vld [vmem:[%s422 + $0x44] sm:$0xf]
      %v2134 = vld [vmem:[%s422 + $0x48] sm:$0xf]
      %v2135 = vld [vmem:[%s422 + $0x4c] sm:$0xf]
      %v2136 = vld [vmem:[%s422 + $0x50] sm:$0xf]
      %v2137 = vld [vmem:[%s422 + $0x54] sm:$0xf]
      %v2138 = vld [vmem:[%s422 + $0x58] sm:$0xf]
      %v2139 = vld [vmem:[%s422 + $0x5c] sm:$0xf]
      %v2140 = vld [vmem:[%s422 + $0x60] sm:$0xf]
      %v2141 = vld [vmem:[%s422 + $0x64] sm:$0xf]
      %v2142 = vld [vmem:[%s422 + $0x68] sm:$0xf]
      %v2143 = vld [vmem:[%s422 + $0x6c] sm:$0xf]
      %v2144 = vld [vmem:[%s422 + $0x70] sm:$0xf]
      %v2145 = vld [vmem:[%s422 + $0x74] sm:$0xf]
      %v2146 = vld [vmem:[%s422 + $0x78] sm:$0xf]
      %v2147 = vld [vmem:[%s422 + $0x7c] sm:$0xf]
      %v2148 = vld [vmem:[%s7] sm:$0xf]
      %v2149 = vld [vmem:[%s7 + $0x4] sm:$0xf]
      %v2150 = vld [vmem:[%s7 + $0x8] sm:$0xf]
      %v2151 = vld [vmem:[%s7 + $0xc] sm:$0xf]
      %v2152 = vld [vmem:[%s7 + $0x10] sm:$0xf]
      %v2153 = vld [vmem:[%s7 + $0x14] sm:$0xf]
      %v2154 = vld [vmem:[%s7 + $0x18] sm:$0xf]
      %v2155 = vld [vmem:[%s7 + $0x1c] sm:$0xf]
      %v2156 = vld [vmem:[%s7 + $0x20] sm:$0xf]
      %v2157 = vld [vmem:[%s7 + $0x24] sm:$0xf]
      %v2158 = vld [vmem:[%s7 + $0x28] sm:$0xf]
      %v2159 = vld [vmem:[%s7 + $0x2c] sm:$0xf]
      %v2160 = vld [vmem:[%s7 + $0x30] sm:$0xf]
      %v2161 = vld [vmem:[%s7 + $0x34] sm:$0xf]
      %v2162 = vld [vmem:[%s7 + $0x38] sm:$0xf]
      %v2163 = vld [vmem:[%s7 + $0x3c] sm:$0xf]
      %v2164 = vld [vmem:[%s8] sm:$0xf]
      %v2165 = vld [vmem:[%s8 + $0x4] sm:$0xf]
      %v2166 = vld [vmem:[%s8 + $0x8] sm:$0xf]
      %v2167 = vld [vmem:[%s8 + $0xc] sm:$0xf]
      %v2168 = vld [vmem:[%s8 + $0x10] sm:$0xf]
      %v2169 = vld [vmem:[%s8 + $0x14] sm:$0xf]
      %v2170 = vld [vmem:[%s8 + $0x18] sm:$0xf]
      %v2171 = vld [vmem:[%s8 + $0x1c] sm:$0xf]
      %v2172 = vld [vmem:[%s8 + $0x20] sm:$0xf]
      %v2173 = vld [vmem:[%s8 + $0x24] sm:$0xf]
      %v2174 = vld [vmem:[%s8 + $0x28] sm:$0xf]
      %v2175 = vld [vmem:[%s8 + $0x2c] sm:$0xf]
      %v2176 = vld [vmem:[%s8 + $0x30] sm:$0xf]
      %v2177 = vld [vmem:[%s8 + $0x34] sm:$0xf]
      %v2178 = vld [vmem:[%s8 + $0x38] sm:$0xf]
      %v2179 = vld [vmem:[%s8 + $0x3c] sm:$0xf]
      %v2188 = vunpack.c.l.b16 %v2116
      %v2189 = vunpack.c.l.b16 %v2117
      %v2190 = vunpack.c.l.b16 %v2118
      %v2191 = vunpack.c.l.b16 %v2119
      %v2192 = vunpack.c.l.b16 %v2120
      %v2193 = vunpack.c.l.b16 %v2121
      %v2194 = vunpack.c.l.b16 %v2122
      %v2195 = vunpack.c.l.b16 %v2123
      %v2196 = vpack.c.b16 %v2189, %v2188
      %v2197 = vpack.c.b16 %v2191, %v2190
      %v2198 = vpack.c.b16 %v2193, %v2192
      %v2199 = vpack.c.b16 %v2195, %v2194
      %v2220 = vunpack.c.l.b16 %v2164
      %v2221 = vunpack.c.l.b16 %v2165
      %v2222 = vunpack.c.l.b16 %v2166
      %v2223 = vunpack.c.l.b16 %v2167
      %v2224 = vunpack.c.l.b16 %v2168
      %v2225 = vunpack.c.l.b16 %v2169
      %v2226 = vunpack.c.l.b16 %v2170
      %v2227 = vunpack.c.l.b16 %v2171
      %v2228 = vunpack.c.l.b16 %v2172
      %v2229 = vunpack.c.l.b16 %v2173
      %v2230 = vunpack.c.l.b16 %v2174
      %v2231 = vunpack.c.l.b16 %v2175
      %v2232 = vunpack.c.l.b16 %v2176
      %v2233 = vunpack.c.l.b16 %v2177
      %v2234 = vunpack.c.l.b16 %v2178
      %v2235 = vunpack.c.l.b16 %v2179
      %v2236 = vpack.c.b16 %v2221, %v2220
      %v2237 = vpack.c.b16 %v2223, %v2222
      %v2238 = vpack.c.b16 %v2225, %v2224
      %v2239 = vpack.c.b16 %v2227, %v2226
      %v2240 = vpack.c.b16 %v2229, %v2228
      %v2241 = vpack.c.b16 %v2231, %v2230
      %v2242 = vpack.c.b16 %v2233, %v2232
      %v2243 = vpack.c.b16 %v2235, %v2234
      %2252 = vmatprep.subr.bf16.mxu0 0
      %2253 = vmatpush1.bf16.msra.mxu0 %v2236
      %2254 = vmatprep.subr.bf16.mxu0 0
      %2255 = vmatpush1.bf16.msra.mxu0 %v2237
      %2256 = vmatprep.subr.bf16.mxu0 0
      %2257 = vmatpush1.bf16.msra.mxu0 %v2238
      %2258 = vmatprep.subr.bf16.mxu0 0
      %2259 = vmatpush1.bf16.msra.mxu0 %v2239
      %2260 = vmatprep.subr.bf16.mxu0 0
      %2261 = vmatpush1.bf16.msra.mxu0 %v2240
      %2262 = vmatprep.subr.bf16.mxu0 0
      %2263 = vmatpush1.bf16.msra.mxu0 %v2241
      %2264 = vmatprep.subr.bf16.mxu0 0
      %2265 = vmatpush1.bf16.msra.mxu0 %v2242
      %2266 = vmatprep.subr.bf16.mxu0 0
      %2267 = vmatpush1.bf16.msra.mxu0 %v2243
      %2268 = vmatprep.subr.bf16.mxu0 0
      %2269 = vmatpush1.bf16.msra.mxu0 0
      %2270 = vmatprep.subr.bf16.mxu0 0
      %2271 = vmatpush1.bf16.msra.mxu0 0
      %2272 = vmatprep.subr.bf16.mxu0 0
      %2273 = vmatpush1.bf16.msra.mxu0 0
      %2274 = vmatprep.subr.bf16.mxu0 0
      %2275 = vmatpush1.bf16.msra.mxu0 0
      %2276 = vmatprep.subr.bf16.mxu0 0
      %2277 = vmatpush1.bf16.msra.mxu0 0
      %2278 = vmatprep.subr.bf16.mxu0 0
      %2279 = vmatpush1.bf16.msra.mxu0 0
      %2280 = vmatprep.subr.bf16.mxu0 0
      %2281 = vmatpush1.bf16.msra.mxu0 0
      %2282 = vmatprep.subr.bf16.mxu0 0
      %2283 = vmatpush1.bf16.msra.mxu0 0
      %2284 = vmatprep.mubr.bf16.mxu0 0
      %2285 = vmatmul.mubr.bf16.gmra.mrb[0].mxu0 %v2196
      %v2286 = vpop.f32.mrb[0].mxu0
      %v2287 = vadd.f32 0.0, %v2286
      %v2288 = vpop.f32.mrb[0].mxu0
      %v2289 = vpop.f32.mrb[0].mxu0
      %v2290 = vadd.f32 0.0, %v2289
      %v2291 = vpop.f32.mrb[0].mxu0
      %2292 = vmatprep.mubr.bf16.mxu0 0
      %2293 = vmatmul.mubr.bf16.gmra.mrb[0].mxu0 %v2197
      %v2294 = vpop.f32.mrb[0].mxu0
      %v2295 = vadd.f32 0.0, %v2294
      %v2296 = vpop.f32.mrb[0].mxu0
      %v2297 = vpop.f32.mrb[0].mxu0
      %v2298 = vadd.f32 0.0, %v2297
      %v2299 = vpop.f32.mrb[0].mxu0
      %2300 = vmatprep.mubr.bf16.mxu0 0
      %2301 = vmatmul.mubr.bf16.gmra.mrb[0].mxu0 %v2198
      %v2302 = vpop.f32.mrb[0].mxu0
      %v2303 = vadd.f32 0.0, %v2302
      %v2304 = vpop.f32.mrb[0].mxu0
      %v2305 = vpop.f32.mrb[0].mxu0
      %v2306 = vadd.f32 0.0, %v2305
      %v2307 = vpop.f32.mrb[0].mxu0
      %2308 = vmatprep.mubr.bf16.mxu0 0
      %2309 = vmatmul.mubr.bf16.gmra.mrb[0].mxu0 %v2199
      %v2310 = vpop.f32.mrb[0].mxu0
      %v2311 = vadd.f32 0.0, %v2310
      %v2312 = vpop.f32.mrb[0].mxu0
      %v2313 = vpop.f32.mrb[0].mxu0
      %v2314 = vadd.f32 0.0, %v2313
      %v2315 = vpop.f32.mrb[0].mxu0
      %2316 = vdwg.mxu0
      %v2333 = vunpack.c.l.b16 %v2148
      %v2334 = vunpack.c.l.b16 %v2149
      %v2335 = vunpack.c.l.b16 %v2150
      %v2336 = vunpack.c.l.b16 %v2151
      %v2337 = vunpack.c.l.b16 %v2152
      %v2338 = vunpack.c.l.b16 %v2153
      %v2339 = vunpack.c.l.b16 %v2154
      %v2340 = vunpack.c.l.b16 %v2155
      %v2341 = vunpack.c.l.b16 %v2156
      %v2342 = vunpack.c.l.b16 %v2157
      %v2343 = vunpack.c.l.b16 %v2158
      %v2344 = vunpack.c.l.b16 %v2159
      %v2345 = vunpack.c.l.b16 %v2160
      %v2346 = vunpack.c.l.b16 %v2161
      %v2347 = vunpack.c.l.b16 %v2162
      %v2348 = vunpack.c.l.b16 %v2163
      %v2349 = vpack.c.b16 %v2334, %v2333
      %v2350 = vpack.c.b16 %v2336, %v2335
      %v2351 = vpack.c.b16 %v2338, %v2337
      %v2352 = vpack.c.b16 %v2340, %v2339
      %v2353 = vpack.c.b16 %v2342, %v2341
      %v2354 = vpack.c.b16 %v2344, %v2343
      %v2355 = vpack.c.b16 %v2346, %v2345
      %v2356 = vpack.c.b16 %v2348, %v2347
      %2365 = vmatprep.subr.bf16.mxu0 0
      %2366 = vmatpush1.bf16.msra.mxu0 %v2349
      %2367 = vmatprep.subr.bf16.mxu0 0
      %2368 = vmatpush1.bf16.msra.mxu0 %v2350
      %2369 = vmatprep.subr.bf16.mxu0 0
      %2370 = vmatpush1.bf16.msra.mxu0 %v2351
      %2371 = vmatprep.subr.bf16.mxu0 0
      %2372 = vmatpush1.bf16.msra.mxu0 %v2352
      %2373 = vmatprep.subr.bf16.mxu0 0
      %2374 = vmatpush1.bf16.msra.mxu0 %v2353
      %2375 = vmatprep.subr.bf16.mxu0 0
      %2376 = vmatpush1.bf16.msra.mxu0 %v2354
      %2377 = vmatprep.subr.bf16.mxu0 0
      %2378 = vmatpush1.bf16.msra.mxu0 %v2355
      %2379 = vmatprep.subr.bf16.mxu0 0
      %2380 = vmatpush1.bf16.msra.mxu0 %v2356
      %2381 = vmatprep.subr.bf16.mxu0 0
      %2382 = vmatpush1.bf16.msra.mxu0 0
      %2383 = vmatprep.subr.bf16.mxu0 0
      %2384 = vmatpush1.bf16.msra.mxu0 0
      %2385 = vmatprep.subr.bf16.mxu0 0
      %2386 = vmatpush1.bf16.msra.mxu0 0
      %2387 = vmatprep.subr.bf16.mxu0 0
      %2388 = vmatpush1.bf16.msra.mxu0 0
      %2389 = vmatprep.subr.bf16.mxu0 0
      %2390 = vmatpush1.bf16.msra.mxu0 0
      %2391 = vmatprep.subr.bf16.mxu0 0
      %2392 = vmatpush1.bf16.msra.mxu0 0
      %2393 = vmatprep.subr.bf16.mxu0 0
      %2394 = vmatpush1.bf16.msra.mxu0 0
      %2395 = vmatprep.subr.bf16.mxu0 0
      %2396 = vmatpush1.bf16.msra.mxu0 0
      %2397 = vmatprep.mubr.bf16.mxu0 0
      %2398 = vmatmul.mubr.bf16.gmra.mrb[0].mxu0 %v2112
      %v2399 = vpop.f32.mrb[0].mxu0
      %v2400 = vadd.f32 %v2287, %v2399
      %v2401 = vpop.f32.mrb[0].mxu0
      %v2402 = vpop.f32.mrb[0].mxu0
      %v2403 = vadd.f32 %v2290, %v2402
      %v2404 = vpop.f32.mrb[0].mxu0
      %2405 = vmatprep.mubr.bf16.mxu0 0
      %2406 = vmatmul.mubr.bf16.gmra.mrb[0].mxu0 %v2113
      %v2407 = vpop.f32.mrb[0].mxu0
      %v2408 = vadd.f32 %v2295, %v2407
      %v2409 = vpop.f32.mrb[0].mxu0
      %v2410 = vpop.f32.mrb[0].mxu0
      %v2411 = vadd.f32 %v2298, %v2410
      %v2412 = vpop.f32.mrb[0].mxu0
      %2413 = vmatprep.mubr.bf16.mxu0 0
      %2414 = vmatmul.mubr.bf16.gmra.mrb[0].mxu0 %v2114
      %v2415 = vpop.f32.mrb[0].mxu0
      %v2416 = vadd.f32 %v2303, %v2415
      %v2417 = vpop.f32.mrb[0].mxu0
      %v2418 = vpop.f32.mrb[0].mxu0
      %v2419 = vadd.f32 %v2306, %v2418
      %v2420 = vpop.f32.mrb[0].mxu0
      %2421 = vmatprep.mubr.bf16.mxu0 0
      %2422 = vmatmul.mubr.bf16.gmra.mrb[0].mxu0 %v2115
      %v2423 = vpop.f32.mrb[0].mxu0
      %v2424 = vadd.f32 %v2311, %v2423
      %v2425 = vpop.f32.mrb[0].mxu0
      %v2426 = vpop.f32.mrb[0].mxu0
      %v2427 = vadd.f32 %v2314, %v2426
      %v2428 = vpop.f32.mrb[0].mxu0
      %2429 = vdwg.mxu0
      %v2430 = vld [vmem:[%s9] sm:$0x1]
      %v2432 = vlaneseq
      %v2433 = vshrl.u32 %v2432, 7
      %v2434 = vsub.s32 0, %v2433
      %v2435 = vrot.slane %v2430, %v2434
      %v2437 = vadd.f32 %v2400, %v2435
      %v2438 = vadd.f32 %v2403, %v2435
      %v2439 = vadd.f32 %v2408, %v2435
      %v2440 = vadd.f32 %v2411, %v2435
      %v2441 = vadd.f32 %v2416, %v2435
      %v2442 = vadd.f32 %v2419, %v2435
      %v2443 = vadd.f32 %v2424, %v2435
      %v2444 = vadd.f32 %v2427, %v2435
      %v2445 = vmax.f32 %v2437, 1e-06
      %v2446 = vmax.f32 %v2438, 1e-06
      %v2447 = vmax.f32 %v2439, 1e-06
      %v2448 = vmax.f32 %v2440, 1e-06
      %v2449 = vmax.f32 %v2441, 1e-06
      %v2450 = vmax.f32 %v2442, 1e-06
      %v2451 = vmax.f32 %v2443, 1e-06
      %v2452 = vmax.f32 %v2444, 1e-06
      %v2453 = vlog2.pop %v2445
      %v2454 = vmul.f32 %v2453, 0.6931472
      %v2455 = vlog2.pop %v2446
      %v2456 = vmul.f32 %v2455, 0.6931472
      %v2457 = vlog2.pop %v2447
      %v2458 = vmul.f32 %v2457, 0.6931472
      %v2459 = vlog2.pop %v2448
      %v2460 = vmul.f32 %v2459, 0.6931472
      %v2461 = vlog2.pop %v2449
      %v2462 = vmul.f32 %v2461, 0.6931472
      %v2463 = vlog2.pop %v2450
      %v2464 = vmul.f32 %v2463, 0.6931472
      %v2465 = vlog2.pop %v2451
      %v2466 = vmul.f32 %v2465, 0.6931472
      %v2467 = vlog2.pop %v2452
      %v2468 = vmul.f32 %v2467, 0.6931472
      %v2469 = vstv %s428
      %v2470 = vmul.f32 %v2469, %v2454
      %v2471 = vmul.f32 %v2469, %v2456
      %v2472 = vmul.f32 %v2469, %v2458
      %v2473 = vmul.f32 %v2469, %v2460
      %v2474 = vmul.f32 %v2469, %v2462
      %v2475 = vmul.f32 %v2469, %v2464
      %v2476 = vmul.f32 %v2469, %v2466
      %v2477 = vmul.f32 %v2469, %v2468
      %v2478 = vmul.f32 %v2470, 1.442695
      %v2479 = vpow.pop %v2478
      %v2480 = vmul.f32 %v2471, 1.442695
      %v2481 = vpow.pop %v2480
      %v2482 = vmul.f32 %v2472, 1.442695
      %v2483 = vpow.pop %v2482
      %v2484 = vmul.f32 %v2473, 1.442695
      %v2485 = vpow.pop %v2484
      %v2486 = vmul.f32 %v2474, 1.442695
      %v2487 = vpow.pop %v2486
      %v2488 = vmul.f32 %v2475, 1.442695
      %v2489 = vpow.pop %v2488
      %v2490 = vmul.f32 %v2476, 1.442695
      %v2491 = vpow.pop %v2490
      %v2492 = vmul.f32 %v2477, 1.442695
      %v2493 = vpow.pop %v2492
      %v2494 = vadd.f32 %v2479, %v2481
      %v2495 = vadd.f32 %v2494, %v2483
      %v2496 = vadd.f32 %v2495, %v2485
      %v2497 = vadd.f32 %v2496, %v2487
      %v2498 = vadd.f32 %v2497, %v2489
      %v2499 = vadd.f32 %v2498, %v2491
      %v2500 = vadd.f32 %v2499, %v2493
      %v2501 = vrot.slane %v2500, 4
      %v2502 = vadd.f32 %v2500, %v2501
      %v2503 = vrot.slane %v2502, 2
      %v2504 = vadd.f32 %v2502, %v2503
      %v2505 = vrot.slane %v2504, 1
      %v2506 = vadd.f32 %v2504, %v2505
      %v2507 = vadd.f32 %v2506, 0.0
      %s2508 = scalar_lea.vmem %s7, 64
      %v2509 = vld [vmem:[%s2508] sm:$0xf]
      %v2510 = vld [vmem:[%s2508 + $0x4] sm:$0xf]
      %v2511 = vld [vmem:[%s2508 + $0x8] sm:$0xf]
      %v2512 = vld [vmem:[%s2508 + $0xc] sm:$0xf]
      %v2513 = vld [vmem:[%s2508 + $0x10] sm:$0xf]
      %v2514 = vld [vmem:[%s2508 + $0x14] sm:$0xf]
      %v2515 = vld [vmem:[%s2508 + $0x18] sm:$0xf]
      %v2516 = vld [vmem:[%s2508 + $0x1c] sm:$0xf]
      %v2517 = vld [vmem:[%s2508 + $0x20] sm:$0xf]
      %v2518 = vld [vmem:[%s2508 + $0x24] sm:$0xf]
      %v2519 = vld [vmem:[%s2508 + $0x28] sm:$0xf]
      %v2520 = vld [vmem:[%s2508 + $0x2c] sm:$0xf]
      %v2521 = vld [vmem:[%s2508 + $0x30] sm:$0xf]
      %v2522 = vld [vmem:[%s2508 + $0x34] sm:$0xf]
      %v2523 = vld [vmem:[%s2508 + $0x38] sm:$0xf]
      %v2524 = vld [vmem:[%s2508 + $0x3c] sm:$0xf]
      %v2533 = vunpack.c.l.b16 %v2124
      %v2534 = vunpack.c.l.b16 %v2125
      %v2535 = vunpack.c.l.b16 %v2126
      %v2536 = vunpack.c.l.b16 %v2127
      %v2537 = vunpack.c.l.b16 %v2128
      %v2538 = vunpack.c.l.b16 %v2129
      %v2539 = vunpack.c.l.b16 %v2130
      %v2540 = vunpack.c.l.b16 %v2131
      %v2541 = vpack.c.b16 %v2534, %v2533
      %v2542 = vpack.c.b16 %v2536, %v2535
      %v2543 = vpack.c.b16 %v2538, %v2537
      %v2544 = vpack.c.b16 %v2540, %v2539
      %2549 = vmatprep.subr.bf16.mxu0 0
      %2550 = vmatpush1.bf16.msra.mxu0 %v2236
      %2551 = vmatprep.subr.bf16.mxu0 0
      %2552 = vmatpush1.bf16.msra.mxu0 %v2237
      %2553 = vmatprep.subr.bf16.mxu0 0
      %2554 = vmatpush1.bf16.msra.mxu0 %v2238
      %2555 = vmatprep.subr.bf16.mxu0 0
      %2556 = vmatpush1.bf16.msra.mxu0 %v2239
      %2557 = vmatprep.subr.bf16.mxu0 0
      %2558 = vmatpush1.bf16.msra.mxu0 %v2240
      %2559 = vmatprep.subr.bf16.mxu0 0
      %2560 = vmatpush1.bf16.msra.mxu0 %v2241
      %2561 = vmatprep.subr.bf16.mxu0 0
      %2562 = vmatpush1.bf16.msra.mxu0 %v2242
      %2563 = vmatprep.subr.bf16.mxu0 0
      %2564 = vmatpush1.bf16.msra.mxu0 %v2243
      %2565 = vmatprep.subr.bf16.mxu0 0
      %2566 = vmatpush1.bf16.msra.mxu0 0
      %2567 = vmatprep.subr.bf16.mxu0 0
      %2568 = vmatpush1.bf16.msra.mxu0 0
      %2569 = vmatprep.subr.bf16.mxu0 0
      %2570 = vmatpush1.bf16.msra.mxu0 0
      %2571 = vmatprep.subr.bf16.mxu0 0
      %2572 = vmatpush1.bf16.msra.mxu0 0
      %2573 = vmatprep.subr.bf16.mxu0 0
      %2574 = vmatpush1.bf16.msra.mxu0 0
      %2575 = vmatprep.subr.bf16.mxu0 0
      %2576 = vmatpush1.bf16.msra.mxu0 0
      %2577 = vmatprep.subr.bf16.mxu0 0
      %2578 = vmatpush1.bf16.msra.mxu0 0
      %2579 = vmatprep.subr.bf16.mxu0 0
      %2580 = vmatpush1.bf16.msra.mxu0 0
      %2581 = vmatprep.mubr.bf16.mxu0 0
      %2582 = vmatmul.mubr.bf16.gmra.mrb[0].mxu0 %v2541
      %v2583 = vpop.f32.mrb[0].mxu0
      %v2584 = vadd.f32 0.0, %v2583
      %v2585 = vpop.f32.mrb[0].mxu0
      %v2586 = vpop.f32.mrb[0].mxu0
      %v2587 = vadd.f32 0.0, %v2586
      %v2588 = vpop.f32.mrb[0].mxu0
      %2589 = vmatprep.mubr.bf16.mxu0 0
      %2590 = vmatmul.mubr.bf16.gmra.mrb[0].mxu0 %v2542
      %v2591 = vpop.f32.mrb[0].mxu0
      %v2592 = vadd.f32 0.0, %v2591
      %v2593 = vpop.f32.mrb[0].mxu0
      %v2594 = vpop.f32.mrb[0].mxu0
      %v2595 = vadd.f32 0.0, %v2594
      %v2596 = vpop.f32.mrb[0].mxu0
      %2597 = vmatprep.mubr.bf16.mxu0 0
      %2598 = vmatmul.mubr.bf16.gmra.mrb[0].mxu0 %v2543
      %v2599 = vpop.f32.mrb[0].mxu0
      %v2600 = vadd.f32 0.0, %v2599
      %v2601 = vpop.f32.mrb[0].mxu0
      %v2602 = vpop.f32.mrb[0].mxu0
      %v2603 = vadd.f32 0.0, %v2602
      %v2604 = vpop.f32.mrb[0].mxu0
      %2605 = vmatprep.mubr.bf16.mxu0 0
      %2606 = vmatmul.mubr.bf16.gmra.mrb[0].mxu0 %v2544
      %v2607 = vpop.f32.mrb[0].mxu0
      %v2608 = vadd.f32 0.0, %v2607
      %v2609 = vpop.f32.mrb[0].mxu0
      %v2610 = vpop.f32.mrb[0].mxu0
      %v2611 = vadd.f32 0.0, %v2610
      %v2612 = vpop.f32.mrb[0].mxu0
      %2613 = vdwg.mxu0
      %v2630 = vunpack.c.l.b16 %v2509
      %v2631 = vunpack.c.l.b16 %v2510
      %v2632 = vunpack.c.l.b16 %v2511
      %v2633 = vunpack.c.l.b16 %v2512
      %v2634 = vunpack.c.l.b16 %v2513
      %v2635 = vunpack.c.l.b16 %v2514
      %v2636 = vunpack.c.l.b16 %v2515
      %v2637 = vunpack.c.l.b16 %v2516
      %v2638 = vunpack.c.l.b16 %v2517
      %v2639 = vunpack.c.l.b16 %v2518
      %v2640 = vunpack.c.l.b16 %v2519
      %v2641 = vunpack.c.l.b16 %v2520
      %v2642 = vunpack.c.l.b16 %v2521
      %v2643 = vunpack.c.l.b16 %v2522
      %v2644 = vunpack.c.l.b16 %v2523
      %v2645 = vunpack.c.l.b16 %v2524
      %v2646 = vpack.c.b16 %v2631, %v2630
      %v2647 = vpack.c.b16 %v2633, %v2632
      %v2648 = vpack.c.b16 %v2635, %v2634
      %v2649 = vpack.c.b16 %v2637, %v2636
      %v2650 = vpack.c.b16 %v2639, %v2638
      %v2651 = vpack.c.b16 %v2641, %v2640
      %v2652 = vpack.c.b16 %v2643, %v2642
      %v2653 = vpack.c.b16 %v2645, %v2644
      %2662 = vmatprep.subr.bf16.mxu0 0
      %2663 = vmatpush1.bf16.msra.mxu0 %v2646
      %2664 = vmatprep.subr.bf16.mxu0 0
      %2665 = vmatpush1.bf16.msra.mxu0 %v2647
      %2666 = vmatprep.subr.bf16.mxu0 0
      %2667 = vmatpush1.bf16.msra.mxu0 %v2648
      %2668 = vmatprep.subr.bf16.mxu0 0
      %2669 = vmatpush1.bf16.msra.mxu0 %v2649
      %2670 = vmatprep.subr.bf16.mxu0 0
      %2671 = vmatpush1.bf16.msra.mxu0 %v2650
      %2672 = vmatprep.subr.bf16.mxu0 0
      %2673 = vmatpush1.bf16.msra.mxu0 %v2651
      %2674 = vmatprep.subr.bf16.mxu0 0
      %2675 = vmatpush1.bf16.msra.mxu0 %v2652
      %2676 = vmatprep.subr.bf16.mxu0 0
      %2677 = vmatpush1.bf16.msra.mxu0 %v2653
      %2678 = vmatprep.subr.bf16.mxu0 0
      %2679 = vmatpush1.bf16.msra.mxu0 0
      %2680 = vmatprep.subr.bf16.mxu0 0
      %2681 = vmatpush1.bf16.msra.mxu0 0
      %2682 = vmatprep.subr.bf16.mxu0 0
      %2683 = vmatpush1.bf16.msra.mxu0 0
      %2684 = vmatprep.subr.bf16.mxu0 0
      %2685 = vmatpush1.bf16.msra.mxu0 0
      %2686 = vmatprep.subr.bf16.mxu0 0
      %2687 = vmatpush1.bf16.msra.mxu0 0
      %2688 = vmatprep.subr.bf16.mxu0 0
      %2689 = vmatpush1.bf16.msra.mxu0 0
      %2690 = vmatprep.subr.bf16.mxu0 0
      %2691 = vmatpush1.bf16.msra.mxu0 0
      %2692 = vmatprep.subr.bf16.mxu0 0
      %2693 = vmatpush1.bf16.msra.mxu0 0
      %2694 = vmatprep.mubr.bf16.mxu0 0
      %2695 = vmatmul.mubr.bf16.gmra.mrb[0].mxu0 %v2112
      %v2696 = vpop.f32.mrb[0].mxu0
      %v2697 = vadd.f32 %v2584, %v2696
      %v2698 = vpop.f32.mrb[0].mxu0
      %v2699 = vpop.f32.mrb[0].mxu0
      %v2700 = vadd.f32 %v2587, %v2699
      %v2701 = vpop.f32.mrb[0].mxu0
      %2702 = vmatprep.mubr.bf16.mxu0 0
      %2703 = vmatmul.mubr.bf16.gmra.mrb[0].mxu0 %v2113
      %v2704 = vpop.f32.mrb[0].mxu0
      %v2705 = vadd.f32 %v2592, %v2704
      %v2706 = vpop.f32.mrb[0].mxu0
      %v2707 = vpop.f32.mrb[0].mxu0
      %v2708 = vadd.f32 %v2595, %v2707
      %v2709 = vpop.f32.mrb[0].mxu0
      %2710 = vmatprep.mubr.bf16.mxu0 0
      %2711 = vmatmul.mubr.bf16.gmra.mrb[0].mxu0 %v2114
      %v2712 = vpop.f32.mrb[0].mxu0
      %v2713 = vadd.f32 %v2600, %v2712
      %v2714 = vpop.f32.mrb[0].mxu0
      %v2715 = vpop.f32.mrb[0].mxu0
      %v2716 = vadd.f32 %v2603, %v2715
      %v2717 = vpop.f32.mrb[0].mxu0
      %2718 = vmatprep.mubr.bf16.mxu0 0
      %2719 = vmatmul.mubr.bf16.gmra.mrb[0].mxu0 %v2115
      %v2720 = vpop.f32.mrb[0].mxu0
      %v2721 = vadd.f32 %v2608, %v2720
      %v2722 = vpop.f32.mrb[0].mxu0
      %v2723 = vpop.f32.mrb[0].mxu0
      %v2724 = vadd.f32 %v2611, %v2723
      %v2725 = vpop.f32.mrb[0].mxu0
      %2726 = vdwg.mxu0
      %v2727 = vadd.f32 %v2697, %v2435
      %v2728 = vadd.f32 %v2700, %v2435
      %v2729 = vadd.f32 %v2705, %v2435
      %v2730 = vadd.f32 %v2708, %v2435
      %v2731 = vadd.f32 %v2713, %v2435
      %v2732 = vadd.f32 %v2716, %v2435
      %v2733 = vadd.f32 %v2721, %v2435
      %v2734 = vadd.f32 %v2724, %v2435
      %v2735 = vmax.f32 %v2727, 1e-06
      %v2736 = vmax.f32 %v2728, 1e-06
      %v2737 = vmax.f32 %v2729, 1e-06
      %v2738 = vmax.f32 %v2730, 1e-06
      %v2739 = vmax.f32 %v2731, 1e-06
      %v2740 = vmax.f32 %v2732, 1e-06
      %v2741 = vmax.f32 %v2733, 1e-06
      %v2742 = vmax.f32 %v2734, 1e-06
      %v2743 = vlog2.pop %v2735
      %v2744 = vmul.f32 %v2743, 0.6931472
      %v2745 = vlog2.pop %v2736
      %v2746 = vmul.f32 %v2745, 0.6931472
      %v2747 = vlog2.pop %v2737
      %v2748 = vmul.f32 %v2747, 0.6931472
      %v2749 = vlog2.pop %v2738
      %v2750 = vmul.f32 %v2749, 0.6931472
      %v2751 = vlog2.pop %v2739
      %v2752 = vmul.f32 %v2751, 0.6931472
      %v2753 = vlog2.pop %v2740
      %v2754 = vmul.f32 %v2753, 0.6931472
      %v2755 = vlog2.pop %v2741
      %v2756 = vmul.f32 %v2755, 0.6931472
      %v2757 = vlog2.pop %v2742
      %v2758 = vmul.f32 %v2757, 0.6931472
      %v2759 = vmul.f32 %v2469, %v2744
      %v2760 = vmul.f32 %v2469, %v2746
      %v2761 = vmul.f32 %v2469, %v2748
      %v2762 = vmul.f32 %v2469, %v2750
      %v2763 = vmul.f32 %v2469, %v2752
      %v2764 = vmul.f32 %v2469, %v2754
      %v2765 = vmul.f32 %v2469, %v2756
      %v2766 = vmul.f32 %v2469, %v2758
      %v2767 = vmul.f32 %v2759, 1.442695
      %v2768 = vpow.pop %v2767
      %v2769 = vmul.f32 %v2760, 1.442695
      %v2770 = vpow.pop %v2769
      %v2771 = vmul.f32 %v2761, 1.442695
      %v2772 = vpow.pop %v2771
      %v2773 = vmul.f32 %v2762, 1.442695
      %v2774 = vpow.pop %v2773
      %v2775 = vmul.f32 %v2763, 1.442695
      %v2776 = vpow.pop %v2775
      %v2777 = vmul.f32 %v2764, 1.442695
      %v2778 = vpow.pop %v2777
      %v2779 = vmul.f32 %v2765, 1.442695
      %v2780 = vpow.pop %v2779
      %v2781 = vmul.f32 %v2766, 1.442695
      %v2782 = vpow.pop %v2781
      %v2783 = vadd.f32 %v2768, %v2770
      %v2784 = vadd.f32 %v2783, %v2772
      %v2785 = vadd.f32 %v2784, %v2774
      %v2786 = vadd.f32 %v2785, %v2776
      %v2787 = vadd.f32 %v2786, %v2778
      %v2788 = vadd.f32 %v2787, %v2780
      %v2789 = vadd.f32 %v2788, %v2782
      %v2790 = vrot.slane %v2789, 4
      %v2791 = vadd.f32 %v2789, %v2790
      %v2792 = vrot.slane %v2791, 2
      %v2793 = vadd.f32 %v2791, %v2792
      %v2794 = vrot.slane %v2793, 1
      %v2795 = vadd.f32 %v2793, %v2794
      %v2796 = vadd.f32 %v2507, %v2795
      %s2797 = scalar_lea.vmem %s7, 128
      %v2798 = vld [vmem:[%s2797] sm:$0xf]
      %v2799 = vld [vmem:[%s2797 + $0x4] sm:$0xf]
      %v2800 = vld [vmem:[%s2797 + $0x8] sm:$0xf]
      %v2801 = vld [vmem:[%s2797 + $0xc] sm:$0xf]
      %v2802 = vld [vmem:[%s2797 + $0x10] sm:$0xf]
      %v2803 = vld [vmem:[%s2797 + $0x14] sm:$0xf]
      %v2804 = vld [vmem:[%s2797 + $0x18] sm:$0xf]
      %v2805 = vld [vmem:[%s2797 + $0x1c] sm:$0xf]
      %v2806 = vld [vmem:[%s2797 + $0x20] sm:$0xf]
      %v2807 = vld [vmem:[%s2797 + $0x24] sm:$0xf]
      %v2808 = vld [vmem:[%s2797 + $0x28] sm:$0xf]
      %v2809 = vld [vmem:[%s2797 + $0x2c] sm:$0xf]
      %v2810 = vld [vmem:[%s2797 + $0x30] sm:$0xf]
      %v2811 = vld [vmem:[%s2797 + $0x34] sm:$0xf]
      %v2812 = vld [vmem:[%s2797 + $0x38] sm:$0xf]
      %v2813 = vld [vmem:[%s2797 + $0x3c] sm:$0xf]
      %v2822 = vunpack.c.l.b16 %v2132
      %v2823 = vunpack.c.l.b16 %v2133
      %v2824 = vunpack.c.l.b16 %v2134
      %v2825 = vunpack.c.l.b16 %v2135
      %v2826 = vunpack.c.l.b16 %v2136
      %v2827 = vunpack.c.l.b16 %v2137
      %v2828 = vunpack.c.l.b16 %v2138
      %v2829 = vunpack.c.l.b16 %v2139
      %v2830 = vpack.c.b16 %v2823, %v2822
      %v2831 = vpack.c.b16 %v2825, %v2824
      %v2832 = vpack.c.b16 %v2827, %v2826
      %v2833 = vpack.c.b16 %v2829, %v2828
      %2838 = vmatprep.subr.bf16.mxu0 0
      %2839 = vmatpush1.bf16.msra.mxu0 %v2236
      %2840 = vmatprep.subr.bf16.mxu0 0
      %2841 = vmatpush1.bf16.msra.mxu0 %v2237
      %2842 = vmatprep.subr.bf16.mxu0 0
      %2843 = vmatpush1.bf16.msra.mxu0 %v2238
      %2844 = vmatprep.subr.bf16.mxu0 0
      %2845 = vmatpush1.bf16.msra.mxu0 %v2239
      %2846 = vmatprep.subr.bf16.mxu0 0
      %2847 = vmatpush1.bf16.msra.mxu0 %v2240
      %2848 = vmatprep.subr.bf16.mxu0 0
      %2849 = vmatpush1.bf16.msra.mxu0 %v2241
      %2850 = vmatprep.subr.bf16.mxu0 0
      %2851 = vmatpush1.bf16.msra.mxu0 %v2242
      %2852 = vmatprep.subr.bf16.mxu0 0
      %2853 = vmatpush1.bf16.msra.mxu0 %v2243
      %2854 = vmatprep.subr.bf16.mxu0 0
      %2855 = vmatpush1.bf16.msra.mxu0 0
      %2856 = vmatprep.subr.bf16.mxu0 0
      %2857 = vmatpush1.bf16.msra.mxu0 0
      %2858 = vmatprep.subr.bf16.mxu0 0
      %2859 = vmatpush1.bf16.msra.mxu0 0
      %2860 = vmatprep.subr.bf16.mxu0 0
      %2861 = vmatpush1.bf16.msra.mxu0 0
      %2862 = vmatprep.subr.bf16.mxu0 0
      %2863 = vmatpush1.bf16.msra.mxu0 0
      %2864 = vmatprep.subr.bf16.mxu0 0
      %2865 = vmatpush1.bf16.msra.mxu0 0
      %2866 = vmatprep.subr.bf16.mxu0 0
      %2867 = vmatpush1.bf16.msra.mxu0 0
      %2868 = vmatprep.subr.bf16.mxu0 0
      %2869 = vmatpush1.bf16.msra.mxu0 0
      %2870 = vmatprep.mubr.bf16.mxu0 0
      %2871 = vmatmul.mubr.bf16.gmra.mrb[0].mxu0 %v2830
      %v2872 = vpop.f32.mrb[0].mxu0
      %v2873 = vadd.f32 0.0, %v2872
      %v2874 = vpop.f32.mrb[0].mxu0
      %v2875 = vpop.f32.mrb[0].mxu0
      %v2876 = vadd.f32 0.0, %v2875
      %v2877 = vpop.f32.mrb[0].mxu0
      %2878 = vmatprep.mubr.bf16.mxu0 0
      %2879 = vmatmul.mubr.bf16.gmra.mrb[0].mxu0 %v2831
      %v2880 = vpop.f32.mrb[0].mxu0
      %v2881 = vadd.f32 0.0, %v2880
      %v2882 = vpop.f32.mrb[0].mxu0
      %v2883 = vpop.f32.mrb[0].mxu0
      %v2884 = vadd.f32 0.0, %v2883
      %v2885 = vpop.f32.mrb[0].mxu0
      %2886 = vmatprep.mubr.bf16.mxu0 0
      %2887 = vmatmul.mubr.bf16.gmra.mrb[0].mxu0 %v2832
      %v2888 = vpop.f32.mrb[0].mxu0
      %v2889 = vadd.f32 0.0, %v2888
      %v2890 = vpop.f32.mrb[0].mxu0
      %v2891 = vpop.f32.mrb[0].mxu0
      %v2892 = vadd.f32 0.0, %v2891
      %v2893 = vpop.f32.mrb[0].mxu0
      %2894 = vmatprep.mubr.bf16.mxu0 0
      %2895 = vmatmul.mubr.bf16.gmra.mrb[0].mxu0 %v2833
      %v2896 = vpop.f32.mrb[0].mxu0
      %v2897 = vadd.f32 0.0, %v2896
      %v2898 = vpop.f32.mrb[0].mxu0
      %v2899 = vpop.f32.mrb[0].mxu0
      %v2900 = vadd.f32 0.0, %v2899
      %v2901 = vpop.f32.mrb[0].mxu0
      %2902 = vdwg.mxu0
      %v2919 = vunpack.c.l.b16 %v2798
      %v2920 = vunpack.c.l.b16 %v2799
      %v2921 = vunpack.c.l.b16 %v2800
      %v2922 = vunpack.c.l.b16 %v2801
      %v2923 = vunpack.c.l.b16 %v2802
      %v2924 = vunpack.c.l.b16 %v2803
      %v2925 = vunpack.c.l.b16 %v2804
      %v2926 = vunpack.c.l.b16 %v2805
      %v2927 = vunpack.c.l.b16 %v2806
      %v2928 = vunpack.c.l.b16 %v2807
      %v2929 = vunpack.c.l.b16 %v2808
      %v2930 = vunpack.c.l.b16 %v2809
      %v2931 = vunpack.c.l.b16 %v2810
      %v2932 = vunpack.c.l.b16 %v2811
      %v2933 = vunpack.c.l.b16 %v2812
      %v2934 = vunpack.c.l.b16 %v2813
      %v2935 = vpack.c.b16 %v2920, %v2919
      %v2936 = vpack.c.b16 %v2922, %v2921
      %v2937 = vpack.c.b16 %v2924, %v2923
      %v2938 = vpack.c.b16 %v2926, %v2925
      %v2939 = vpack.c.b16 %v2928, %v2927
      %v2940 = vpack.c.b16 %v2930, %v2929
      %v2941 = vpack.c.b16 %v2932, %v2931
      %v2942 = vpack.c.b16 %v2934, %v2933
      %2951 = vmatprep.subr.bf16.mxu0 0
      %2952 = vmatpush1.bf16.msra.mxu0 %v2935
      %2953 = vmatprep.subr.bf16.mxu0 0
      %2954 = vmatpush1.bf16.msra.mxu0 %v2936
      %2955 = vmatprep.subr.bf16.mxu0 0
      %2956 = vmatpush1.bf16.msra.mxu0 %v2937
      %2957 = vmatprep.subr.bf16.mxu0 0
      %2958 = vmatpush1.bf16.msra.mxu0 %v2938
      %2959 = vmatprep.subr.bf16.mxu0 0
      %2960 = vmatpush1.bf16.msra.mxu0 %v2939
      %2961 = vmatprep.subr.bf16.mxu0 0
      %2962 = vmatpush1.bf16.msra.mxu0 %v2940
      %2963 = vmatprep.subr.bf16.mxu0 0
      %2964 = vmatpush1.bf16.msra.mxu0 %v2941
      %2965 = vmatprep.subr.bf16.mxu0 0
      %2966 = vmatpush1.bf16.msra.mxu0 %v2942
      %2967 = vmatprep.subr.bf16.mxu0 0
      %2968 = vmatpush1.bf16.msra.mxu0 0
      %2969 = vmatprep.subr.bf16.mxu0 0
      %2970 = vmatpush1.bf16.msra.mxu0 0
      %2971 = vmatprep.subr.bf16.mxu0 0
      %2972 = vmatpush1.bf16.msra.mxu0 0
      %2973 = vmatprep.subr.bf16.mxu0 0
      %2974 = vmatpush1.bf16.msra.mxu0 0
      %2975 = vmatprep.subr.bf16.mxu0 0
      %2976 = vmatpush1.bf16.msra.mxu0 0
      %2977 = vmatprep.subr.bf16.mxu0 0
      %2978 = vmatpush1.bf16.msra.mxu0 0
      %2979 = vmatprep.subr.bf16.mxu0 0
      %2980 = vmatpush1.bf16.msra.mxu0 0
      %2981 = vmatprep.subr.bf16.mxu0 0
      %2982 = vmatpush1.bf16.msra.mxu0 0
      %2983 = vmatprep.mubr.bf16.mxu0 0
      %2984 = vmatmul.mubr.bf16.gmra.mrb[0].mxu0 %v2112
      %v2985 = vpop.f32.mrb[0].mxu0
      %v2986 = vadd.f32 %v2873, %v2985
      %v2987 = vpop.f32.mrb[0].mxu0
      %v2988 = vpop.f32.mrb[0].mxu0
      %v2989 = vadd.f32 %v2876, %v2988
      %v2990 = vpop.f32.mrb[0].mxu0
      %2991 = vmatprep.mubr.bf16.mxu0 0
      %2992 = vmatmul.mubr.bf16.gmra.mrb[0].mxu0 %v2113
      %v2993 = vpop.f32.mrb[0].mxu0
      %v2994 = vadd.f32 %v2881, %v2993
      %v2995 = vpop.f32.mrb[0].mxu0
      %v2996 = vpop.f32.mrb[0].mxu0
      %v2997 = vadd.f32 %v2884, %v2996
      %v2998 = vpop.f32.mrb[0].mxu0
      %2999 = vmatprep.mubr.bf16.mxu0 0
      %3000 = vmatmul.mubr.bf16.gmra.mrb[0].mxu0 %v2114
      %v3001 = vpop.f32.mrb[0].mxu0
      %v3002 = vadd.f32 %v2889, %v3001
      %v3003 = vpop.f32.mrb[0].mxu0
      %v3004 = vpop.f32.mrb[0].mxu0
      %v3005 = vadd.f32 %v2892, %v3004
      %v3006 = vpop.f32.mrb[0].mxu0
      %3007 = vmatprep.mubr.bf16.mxu0 0
      %3008 = vmatmul.mubr.bf16.gmra.mrb[0].mxu0 %v2115
      %v3009 = vpop.f32.mrb[0].mxu0
      %v3010 = vadd.f32 %v2897, %v3009
      %v3011 = vpop.f32.mrb[0].mxu0
      %v3012 = vpop.f32.mrb[0].mxu0
      %v3013 = vadd.f32 %v2900, %v3012
      %v3014 = vpop.f32.mrb[0].mxu0
      %3015 = vdwg.mxu0
      %v3016 = vadd.f32 %v2986, %v2435
      %v3017 = vadd.f32 %v2989, %v2435
      %v3018 = vadd.f32 %v2994, %v2435
      %v3019 = vadd.f32 %v2997, %v2435
      %v3020 = vadd.f32 %v3002, %v2435
      %v3021 = vadd.f32 %v3005, %v2435
      %v3022 = vadd.f32 %v3010, %v2435
      %v3023 = vadd.f32 %v3013, %v2435
      %v3024 = vmax.f32 %v3016, 1e-06
      %v3025 = vmax.f32 %v3017, 1e-06
      %v3026 = vmax.f32 %v3018, 1e-06
      %v3027 = vmax.f32 %v3019, 1e-06
      %v3028 = vmax.f32 %v3020, 1e-06
      %v3029 = vmax.f32 %v3021, 1e-06
      %v3030 = vmax.f32 %v3022, 1e-06
      %v3031 = vmax.f32 %v3023, 1e-06
      %v3032 = vlog2.pop %v3024
      %v3033 = vmul.f32 %v3032, 0.6931472
      %v3034 = vlog2.pop %v3025
      %v3035 = vmul.f32 %v3034, 0.6931472
      %v3036 = vlog2.pop %v3026
      %v3037 = vmul.f32 %v3036, 0.6931472
      %v3038 = vlog2.pop %v3027
      %v3039 = vmul.f32 %v3038, 0.6931472
      %v3040 = vlog2.pop %v3028
      %v3041 = vmul.f32 %v3040, 0.6931472
      %v3042 = vlog2.pop %v3029
      %v3043 = vmul.f32 %v3042, 0.6931472
      %v3044 = vlog2.pop %v3030
      %v3045 = vmul.f32 %v3044, 0.6931472
      %v3046 = vlog2.pop %v3031
      %v3047 = vmul.f32 %v3046, 0.6931472
      %v3048 = vmul.f32 %v2469, %v3033
      %v3049 = vmul.f32 %v2469, %v3035
      %v3050 = vmul.f32 %v2469, %v3037
      %v3051 = vmul.f32 %v2469, %v3039
      %v3052 = vmul.f32 %v2469, %v3041
      %v3053 = vmul.f32 %v2469, %v3043
      %v3054 = vmul.f32 %v2469, %v3045
      %v3055 = vmul.f32 %v2469, %v3047
      %v3056 = vmul.f32 %v3048, 1.442695
      %v3057 = vpow.pop %v3056
      %v3058 = vmul.f32 %v3049, 1.442695
      %v3059 = vpow.pop %v3058
      %v3060 = vmul.f32 %v3050, 1.442695
      %v3061 = vpow.pop %v3060
      %v3062 = vmul.f32 %v3051, 1.442695
      %v3063 = vpow.pop %v3062
      %v3064 = vmul.f32 %v3052, 1.442695
      %v3065 = vpow.pop %v3064
      %v3066 = vmul.f32 %v3053, 1.442695
      %v3067 = vpow.pop %v3066
      %v3068 = vmul.f32 %v3054, 1.442695
      %v3069 = vpow.pop %v3068
      %v3070 = vmul.f32 %v3055, 1.442695
      %v3071 = vpow.pop %v3070
      %v3072 = vadd.f32 %v3057, %v3059
      %v3073 = vadd.f32 %v3072, %v3061
      %v3074 = vadd.f32 %v3073, %v3063
      %v3075 = vadd.f32 %v3074, %v3065
      %v3076 = vadd.f32 %v3075, %v3067
      %v3077 = vadd.f32 %v3076, %v3069
      %v3078 = vadd.f32 %v3077, %v3071
      %v3079 = vrot.slane %v3078, 4
      %v3080 = vadd.f32 %v3078, %v3079
      %v3081 = vrot.slane %v3080, 2
      %v3082 = vadd.f32 %v3080, %v3081
      %v3083 = vrot.slane %v3082, 1
      %v3084 = vadd.f32 %v3082, %v3083
      %v3085 = vadd.f32 %v2796, %v3084
      %s3086 = scalar_lea.vmem %s7, 192
      %v3087 = vld [vmem:[%s3086] sm:$0xf]
      %v3088 = vld [vmem:[%s3086 + $0x4] sm:$0xf]
      %v3089 = vld [vmem:[%s3086 + $0x8] sm:$0xf]
      %v3090 = vld [vmem:[%s3086 + $0xc] sm:$0xf]
      %v3091 = vld [vmem:[%s3086 + $0x10] sm:$0xf]
      %v3092 = vld [vmem:[%s3086 + $0x14] sm:$0xf]
      %v3093 = vld [vmem:[%s3086 + $0x18] sm:$0xf]
      %v3094 = vld [vmem:[%s3086 + $0x1c] sm:$0xf]
      %v3095 = vld [vmem:[%s3086 + $0x20] sm:$0xf]
      %v3096 = vld [vmem:[%s3086 + $0x24] sm:$0xf]
      %v3097 = vld [vmem:[%s3086 + $0x28] sm:$0xf]
      %v3098 = vld [vmem:[%s3086 + $0x2c] sm:$0xf]
      %v3099 = vld [vmem:[%s3086 + $0x30] sm:$0xf]
      %v3100 = vld [vmem:[%s3086 + $0x34] sm:$0xf]
      %v3101 = vld [vmem:[%s3086 + $0x38] sm:$0xf]
      %v3102 = vld [vmem:[%s3086 + $0x3c] sm:$0xf]
      %v3111 = vunpack.c.l.b16 %v2140
      %v3112 = vunpack.c.l.b16 %v2141
      %v3113 = vunpack.c.l.b16 %v2142
      %v3114 = vunpack.c.l.b16 %v2143
      %v3115 = vunpack.c.l.b16 %v2144
      %v3116 = vunpack.c.l.b16 %v2145
      %v3117 = vunpack.c.l.b16 %v2146
      %v3118 = vunpack.c.l.b16 %v2147
      %v3119 = vpack.c.b16 %v3112, %v3111
      %v3120 = vpack.c.b16 %v3114, %v3113
      %v3121 = vpack.c.b16 %v3116, %v3115
      %v3122 = vpack.c.b16 %v3118, %v3117
      %3127 = vmatprep.subr.bf16.mxu0 0
      %3128 = vmatpush1.bf16.msra.mxu0 %v2236
      %3129 = vmatprep.subr.bf16.mxu0 0
      %3130 = vmatpush1.bf16.msra.mxu0 %v2237
      %3131 = vmatprep.subr.bf16.mxu0 0
      %3132 = vmatpush1.bf16.msra.mxu0 %v2238
      %3133 = vmatprep.subr.bf16.mxu0 0
      %3134 = vmatpush1.bf16.msra.mxu0 %v2239
      %3135 = vmatprep.subr.bf16.mxu0 0
      %3136 = vmatpush1.bf16.msra.mxu0 %v2240
      %3137 = vmatprep.subr.bf16.mxu0 0
      %3138 = vmatpush1.bf16.msra.mxu0 %v2241
      %3139 = vmatprep.subr.bf16.mxu0 0
      %3140 = vmatpush1.bf16.msra.mxu0 %v2242
      %3141 = vmatprep.subr.bf16.mxu0 0
      %3142 = vmatpush1.bf16.msra.mxu0 %v2243
      %3143 = vmatprep.subr.bf16.mxu0 0
      %3144 = vmatpush1.bf16.msra.mxu0 0
      %3145 = vmatprep.subr.bf16.mxu0 0
      %3146 = vmatpush1.bf16.msra.mxu0 0
      %3147 = vmatprep.subr.bf16.mxu0 0
      %3148 = vmatpush1.bf16.msra.mxu0 0
      %3149 = vmatprep.subr.bf16.mxu0 0
      %3150 = vmatpush1.bf16.msra.mxu0 0
      %3151 = vmatprep.subr.bf16.mxu0 0
      %3152 = vmatpush1.bf16.msra.mxu0 0
      %3153 = vmatprep.subr.bf16.mxu0 0
      %3154 = vmatpush1.bf16.msra.mxu0 0
      %3155 = vmatprep.subr.bf16.mxu0 0
      %3156 = vmatpush1.bf16.msra.mxu0 0
      %3157 = vmatprep.subr.bf16.mxu0 0
      %3158 = vmatpush1.bf16.msra.mxu0 0
      %3159 = vmatprep.mubr.bf16.mxu0 0
      %3160 = vmatmul.mubr.bf16.gmra.mrb[0].mxu0 %v3119
      %v3161 = vpop.f32.mrb[0].mxu0
      %v3162 = vadd.f32 0.0, %v3161
      %v3163 = vpop.f32.mrb[0].mxu0
      %v3164 = vpop.f32.mrb[0].mxu0
      %v3165 = vadd.f32 0.0, %v3164
      %v3166 = vpop.f32.mrb[0].mxu0
      %3167 = vmatprep.mubr.bf16.mxu0 0
      %3168 = vmatmul.mubr.bf16.gmra.mrb[0].mxu0 %v3120
      %v3169 = vpop.f32.mrb[0].mxu0
      %v3170 = vadd.f32 0.0, %v3169
      %v3171 = vpop.f32.mrb[0].mxu0
      %v3172 = vpop.f32.mrb[0].mxu0
      %v3173 = vadd.f32 0.0, %v3172
      %v3174 = vpop.f32.mrb[0].mxu0
      %3175 = vmatprep.mubr.bf16.mxu0 0
      %3176 = vmatmul.mubr.bf16.gmra.mrb[0].mxu0 %v3121
      %v3177 = vpop.f32.mrb[0].mxu0
      %v3178 = vadd.f32 0.0, %v3177
      %v3179 = vpop.f32.mrb[0].mxu0
      %v3180 = vpop.f32.mrb[0].mxu0
      %v3181 = vadd.f32 0.0, %v3180
      %v3182 = vpop.f32.mrb[0].mxu0
      %3183 = vmatprep.mubr.bf16.mxu0 0
      %3184 = vmatmul.mubr.bf16.gmra.mrb[0].mxu0 %v3122
      %v3185 = vpop.f32.mrb[0].mxu0
      %v3186 = vadd.f32 0.0, %v3185
      %v3187 = vpop.f32.mrb[0].mxu0
      %v3188 = vpop.f32.mrb[0].mxu0
      %v3189 = vadd.f32 0.0, %v3188
      %v3190 = vpop.f32.mrb[0].mxu0
      %3191 = vdwg.mxu0
      %v3208 = vunpack.c.l.b16 %v3087
      %v3209 = vunpack.c.l.b16 %v3088
      %v3210 = vunpack.c.l.b16 %v3089
      %v3211 = vunpack.c.l.b16 %v3090
      %v3212 = vunpack.c.l.b16 %v3091
      %v3213 = vunpack.c.l.b16 %v3092
      %v3214 = vunpack.c.l.b16 %v3093
      %v3215 = vunpack.c.l.b16 %v3094
      %v3216 = vunpack.c.l.b16 %v3095
      %v3217 = vunpack.c.l.b16 %v3096
      %v3218 = vunpack.c.l.b16 %v3097
      %v3219 = vunpack.c.l.b16 %v3098
      %v3220 = vunpack.c.l.b16 %v3099
      %v3221 = vunpack.c.l.b16 %v3100
      %v3222 = vunpack.c.l.b16 %v3101
      %v3223 = vunpack.c.l.b16 %v3102
      %v3224 = vpack.c.b16 %v3209, %v3208
      %v3225 = vpack.c.b16 %v3211, %v3210
      %v3226 = vpack.c.b16 %v3213, %v3212
      %v3227 = vpack.c.b16 %v3215, %v3214
      %v3228 = vpack.c.b16 %v3217, %v3216
      %v3229 = vpack.c.b16 %v3219, %v3218
      %v3230 = vpack.c.b16 %v3221, %v3220
      %v3231 = vpack.c.b16 %v3223, %v3222
      %3240 = vmatprep.subr.bf16.mxu0 0
      %3241 = vmatpush1.bf16.msra.mxu0 %v3224
      %3242 = vmatprep.subr.bf16.mxu0 0
      %3243 = vmatpush1.bf16.msra.mxu0 %v3225
      %3244 = vmatprep.subr.bf16.mxu0 0
      %3245 = vmatpush1.bf16.msra.mxu0 %v3226
      %3246 = vmatprep.subr.bf16.mxu0 0
      %3247 = vmatpush1.bf16.msra.mxu0 %v3227
      %3248 = vmatprep.subr.bf16.mxu0 0
      %3249 = vmatpush1.bf16.msra.mxu0 %v3228
      %3250 = vmatprep.subr.bf16.mxu0 0
      %3251 = vmatpush1.bf16.msra.mxu0 %v3229
      %3252 = vmatprep.subr.bf16.mxu0 0
      %3253 = vmatpush1.bf16.msra.mxu0 %v3230
      %3254 = vmatprep.subr.bf16.mxu0 0
      %3255 = vmatpush1.bf16.msra.mxu0 %v3231
      %3256 = vmatprep.subr.bf16.mxu0 0
      %3257 = vmatpush1.bf16.msra.mxu0 0
      %3258 = vmatprep.subr.bf16.mxu0 0
      %3259 = vmatpush1.bf16.msra.mxu0 0
      %3260 = vmatprep.subr.bf16.mxu0 0
      %3261 = vmatpush1.bf16.msra.mxu0 0
      %3262 = vmatprep.subr.bf16.mxu0 0
      %3263 = vmatpush1.bf16.msra.mxu0 0
      %3264 = vmatprep.subr.bf16.mxu0 0
      %3265 = vmatpush1.bf16.msra.mxu0 0
      %3266 = vmatprep.subr.bf16.mxu0 0
      %3267 = vmatpush1.bf16.msra.mxu0 0
      %3268 = vmatprep.subr.bf16.mxu0 0
      %3269 = vmatpush1.bf16.msra.mxu0 0
      %3270 = vmatprep.subr.bf16.mxu0 0
      %3271 = vmatpush1.bf16.msra.mxu0 0
      %3272 = vmatprep.mubr.bf16.mxu0 0
      %3273 = vmatmul.mubr.bf16.gmra.mrb[0].mxu0 %v2112
      %v3274 = vpop.f32.mrb[0].mxu0
      %v3275 = vadd.f32 %v3162, %v3274
      %v3276 = vpop.f32.mrb[0].mxu0
      %v3277 = vpop.f32.mrb[0].mxu0
      %v3278 = vadd.f32 %v3165, %v3277
      %v3279 = vpop.f32.mrb[0].mxu0
      %3280 = vmatprep.mubr.bf16.mxu0 0
      %3281 = vmatmul.mubr.bf16.gmra.mrb[0].mxu0 %v2113
      %v3282 = vpop.f32.mrb[0].mxu0
      %v3283 = vadd.f32 %v3170, %v3282
      %v3284 = vpop.f32.mrb[0].mxu0
      %v3285 = vpop.f32.mrb[0].mxu0
      %v3286 = vadd.f32 %v3173, %v3285
      %v3287 = vpop.f32.mrb[0].mxu0
      %3288 = vmatprep.mubr.bf16.mxu0 0
      %3289 = vmatmul.mubr.bf16.gmra.mrb[0].mxu0 %v2114
      %v3290 = vpop.f32.mrb[0].mxu0
      %v3291 = vadd.f32 %v3178, %v3290
      %v3292 = vpop.f32.mrb[0].mxu0
      %v3293 = vpop.f32.mrb[0].mxu0
      %v3294 = vadd.f32 %v3181, %v3293
      %v3295 = vpop.f32.mrb[0].mxu0
      %3296 = vmatprep.mubr.bf16.mxu0 0
      %3297 = vmatmul.mubr.bf16.gmra.mrb[0].mxu0 %v2115
      %v3298 = vpop.f32.mrb[0].mxu0
      %v3299 = vadd.f32 %v3186, %v3298
      %v3300 = vpop.f32.mrb[0].mxu0
      %v3301 = vpop.f32.mrb[0].mxu0
      %v3302 = vadd.f32 %v3189, %v3301
      %v3303 = vpop.f32.mrb[0].mxu0
      %3304 = vdwg.mxu0
      %v3305 = vadd.f32 %v3275, %v2435
      %v3306 = vadd.f32 %v3278, %v2435
      %v3307 = vadd.f32 %v3283, %v2435
      %v3308 = vadd.f32 %v3286, %v2435
      %v3309 = vadd.f32 %v3291, %v2435
      %v3310 = vadd.f32 %v3294, %v2435
      %v3311 = vadd.f32 %v3299, %v2435
      %v3312 = vadd.f32 %v3302, %v2435
      %v3313 = vmax.f32 %v3305, 1e-06
      %v3314 = vmax.f32 %v3306, 1e-06
      %v3315 = vmax.f32 %v3307, 1e-06
      %v3316 = vmax.f32 %v3308, 1e-06
      %v3317 = vmax.f32 %v3309, 1e-06
      %v3318 = vmax.f32 %v3310, 1e-06
      %v3319 = vmax.f32 %v3311, 1e-06
      %v3320 = vmax.f32 %v3312, 1e-06
      %v3321 = vlog2.pop %v3313
      %v3322 = vmul.f32 %v3321, 0.6931472
      %v3323 = vlog2.pop %v3314
      %v3324 = vmul.f32 %v3323, 0.6931472
      %v3325 = vlog2.pop %v3315
      %v3326 = vmul.f32 %v3325, 0.6931472
      %v3327 = vlog2.pop %v3316
      %v3328 = vmul.f32 %v3327, 0.6931472
      %v3329 = vlog2.pop %v3317
      %v3330 = vmul.f32 %v3329, 0.6931472
      %v3331 = vlog2.pop %v3318
      %v3332 = vmul.f32 %v3331, 0.6931472
      %v3333 = vlog2.pop %v3319
      %v3334 = vmul.f32 %v3333, 0.6931472
      %v3335 = vlog2.pop %v3320
      %v3336 = vmul.f32 %v3335, 0.6931472
      %v3337 = vmul.f32 %v2469, %v3322
      %v3338 = vmul.f32 %v2469, %v3324
      %v3339 = vmul.f32 %v2469, %v3326
      %v3340 = vmul.f32 %v2469, %v3328
      %v3341 = vmul.f32 %v2469, %v3330
      %v3342 = vmul.f32 %v2469, %v3332
      %v3343 = vmul.f32 %v2469, %v3334
      %v3344 = vmul.f32 %v2469, %v3336
      %v3345 = vmul.f32 %v3337, 1.442695
      %v3346 = vpow.pop %v3345
      %v3347 = vmul.f32 %v3338, 1.442695
      %v3348 = vpow.pop %v3347
      %v3349 = vmul.f32 %v3339, 1.442695
      %v3350 = vpow.pop %v3349
      %v3351 = vmul.f32 %v3340, 1.442695
      %v3352 = vpow.pop %v3351
      %v3353 = vmul.f32 %v3341, 1.442695
      %v3354 = vpow.pop %v3353
      %v3355 = vmul.f32 %v3342, 1.442695
      %v3356 = vpow.pop %v3355
      %v3357 = vmul.f32 %v3343, 1.442695
      %v3358 = vpow.pop %v3357
      %v3359 = vmul.f32 %v3344, 1.442695
      %v3360 = vpow.pop %v3359
      %v3361 = vadd.f32 %v3346, %v3348
      %v3362 = vadd.f32 %v3361, %v3350
      %v3363 = vadd.f32 %v3362, %v3352
      %v3364 = vadd.f32 %v3363, %v3354
      %v3365 = vadd.f32 %v3364, %v3356
      %v3366 = vadd.f32 %v3365, %v3358
      %v3367 = vadd.f32 %v3366, %v3360
      %v3368 = vrot.slane %v3367, 4
      %v3369 = vadd.f32 %v3367, %v3368
      %v3370 = vrot.slane %v3369, 2
      %v3371 = vadd.f32 %v3369, %v3370
      %v3372 = vrot.slane %v3371, 1
      %v3373 = vadd.f32 %v3371, %v3372
      %v3374 = vadd.f32 %v3085, %v3373
      %v3375 = vmul.f32 %v3374, 0.00390625
      %v3376 = vlog2.pop %v3375
      %v3377 = vmul.f32 %v3376, 0.6931472
      %v3378 = vrcp.pop %v2469
      %v3379 = vmul.f32 %v3377, %v3378
      %v3380 = vmul.f32 %v3379, 1.442695
      %v3381 = vpow.pop %v3380
      %v3382 = vpack.c.bf16 %v3381, %v3381
      %v3383 = vld [vmem:[%s10] sm:$0xff]
      %v3384 = vld [vmem:[%s10 + $0x8] sm:$0xff]
      %v3385 = vld [vmem:[%s10 + $0x10] sm:$0xff]
      %v3386 = vld [vmem:[%s10 + $0x18] sm:$0xff]
      %v3387 = vld [vmem:[%s10 + $0x20] sm:$0xff]
      %v3388 = vld [vmem:[%s10 + $0x28] sm:$0xff]
      %v3389 = vld [vmem:[%s10 + $0x30] sm:$0xff]
      %v3390 = vld [vmem:[%s10 + $0x38] sm:$0xff]
      %v3391 = vld [vmem:[%s10 + $0x40] sm:$0xff]
      %v3392 = vld [vmem:[%s10 + $0x48] sm:$0xff]
      %v3393 = vld [vmem:[%s10 + $0x50] sm:$0xff]
      %v3394 = vld [vmem:[%s10 + $0x58] sm:$0xff]
      %v3395 = vld [vmem:[%s10 + $0x60] sm:$0xff]
      %v3396 = vld [vmem:[%s10 + $0x68] sm:$0xff]
      %v3397 = vld [vmem:[%s10 + $0x70] sm:$0xff]
      %v3398 = vld [vmem:[%s10 + $0x78] sm:$0xff]
      %v3415 = vunpack.c.l.b16 %v3383
      %v3416 = vunpack.c.h.b16 %v3383
      %v3417 = vunpack.c.l.b16 %v3384
      %v3418 = vunpack.c.h.b16 %v3384
      %v3419 = vunpack.c.l.b16 %v3385
      %v3420 = vunpack.c.h.b16 %v3385
      %v3421 = vunpack.c.l.b16 %v3386
      %v3422 = vunpack.c.h.b16 %v3386
      %v3423 = vunpack.c.l.b16 %v3387
      %v3424 = vunpack.c.h.b16 %v3387
      %v3425 = vunpack.c.l.b16 %v3388
      %v3426 = vunpack.c.h.b16 %v3388
      %v3427 = vunpack.c.l.b16 %v3389
      %v3428 = vunpack.c.h.b16 %v3389
      %v3429 = vunpack.c.l.b16 %v3390
      %v3430 = vunpack.c.h.b16 %v3390
      %v3431 = vunpack.c.l.b16 %v3391
      %v3432 = vunpack.c.h.b16 %v3391
      %v3433 = vunpack.c.l.b16 %v3392
      %v3434 = vunpack.c.h.b16 %v3392
      %v3435 = vunpack.c.l.b16 %v3393
      %v3436 = vunpack.c.h.b16 %v3393
      %v3437 = vunpack.c.l.b16 %v3394
      %v3438 = vunpack.c.h.b16 %v3394
      %v3439 = vunpack.c.l.b16 %v3395
      %v3440 = vunpack.c.h.b16 %v3395
      %v3441 = vunpack.c.l.b16 %v3396
      %v3442 = vunpack.c.h.b16 %v3396
      %v3443 = vunpack.c.l.b16 %v3397
      %v3444 = vunpack.c.h.b16 %v3397
      %v3445 = vunpack.c.l.b16 %v3398
      %v3446 = vunpack.c.h.b16 %v3398
      %v3447 = vpack.c.b16 %v3417, %v3415
      %v3448 = vpack.c.b16 %v3418, %v3416
      %v3449 = vpack.c.b16 %v3421, %v3419
      %v3450 = vpack.c.b16 %v3422, %v3420
      %v3451 = vpack.c.b16 %v3425, %v3423
      %v3452 = vpack.c.b16 %v3426, %v3424
      %v3453 = vpack.c.b16 %v3429, %v3427
      %v3454 = vpack.c.b16 %v3430, %v3428
      %v3455 = vpack.c.b16 %v3433, %v3431
      %v3456 = vpack.c.b16 %v3434, %v3432
      %v3457 = vpack.c.b16 %v3437, %v3435
      %v3458 = vpack.c.b16 %v3438, %v3436
      %v3459 = vpack.c.b16 %v3441, %v3439
      %v3460 = vpack.c.b16 %v3442, %v3440
      %v3461 = vpack.c.b16 %v3445, %v3443
      %v3462 = vpack.c.b16 %v3446, %v3444
      %3479 = vmatprep.subr.bf16.mxu0 %v3448
      %3480 = vmatpush1.bf16.msra.mxu0 %v3447
      %3481 = vmatprep.subr.bf16.mxu0 %v3450
      %3482 = vmatpush1.bf16.msra.mxu0 %v3449
      %3483 = vmatprep.subr.bf16.mxu0 %v3452
      %3484 = vmatpush1.bf16.msra.mxu0 %v3451
      %3485 = vmatprep.subr.bf16.mxu0 %v3454
      %3486 = vmatpush1.bf16.msra.mxu0 %v3453
      %3487 = vmatprep.subr.bf16.mxu0 %v3456
      %3488 = vmatpush1.bf16.msra.mxu0 %v3455
      %3489 = vmatprep.subr.bf16.mxu0 %v3458
      %3490 = vmatpush1.bf16.msra.mxu0 %v3457
      %3491 = vmatprep.subr.bf16.mxu0 %v3460
      %3492 = vmatpush1.bf16.msra.mxu0 %v3459
      %3493 = vmatprep.subr.bf16.mxu0 %v3462
      %3494 = vmatpush1.bf16.msra.mxu0 %v3461
      %3495 = vmatprep.subr.bf16.mxu0 0
      %3496 = vmatpush1.bf16.msra.mxu0 0
      %3497 = vmatprep.subr.bf16.mxu0 0
      %3498 = vmatpush1.bf16.msra.mxu0 0
      %3499 = vmatprep.subr.bf16.mxu0 0
      %3500 = vmatpush1.bf16.msra.mxu0 0
      %3501 = vmatprep.subr.bf16.mxu0 0
      %3502 = vmatpush1.bf16.msra.mxu0 0
      %3503 = vmatprep.subr.bf16.mxu0 0
      %3504 = vmatpush1.bf16.msra.mxu0 0
      %3505 = vmatprep.subr.bf16.mxu0 0
      %3506 = vmatpush1.bf16.msra.mxu0 0
      %3507 = vmatprep.subr.bf16.mxu0 0
      %3508 = vmatpush1.bf16.msra.mxu0 0
      %3509 = vmatprep.subr.bf16.mxu0 0
      %3510 = vmatpush1.bf16.msra.mxu0 0
      %3511 = vmatprep.mubr.bf16.mxu0 0
      %3512 = vmatmul.mubr.bf16.gmra.mrb[0].mxu0 %v3382
      %v3513 = vpop.f32.mrb[0].mxu0
      %v3514 = vadd.f32 0.0, %v3513
      %v3515 = vpop.f32.mrb[0].mxu0
      %v3516 = vadd.f32 0.0, %v3515
      %v3517 = vpop.f32.mrb[0].mxu0
      %v3518 = vpop.f32.mrb[0].mxu0
      %3519 = vdwg.mxu0
      %v3520 = vld [vmem:[%s11] sm:$0x3]
      %v3522 = vlaneseq
      %v3523 = vshrl.u32 %v3522, 7
      %v3524 = vsub.s32 0, %v3523
      %v3525 = vrot.slane %v3520, %v3524
      %v3526 = vlaneseq
      %v3527 = vshrl.u32 %v3526, 7
      %v3528 = vsub.s32 1, %v3527
      %v3529 = vrot.slane %v3520, %v3528
      %v3532 = vadd.f32 %v3514, %v3525
      %v3533 = vadd.f32 %v3516, %v3529
      %v3536 = vcombine.low %v3532, %v3533
      %v3538 = vunpack.c.l.s4 1966171168
      %v3539 = vunpack.c.0.s8 %v3538
      %v3540 = vlaneseq
      %v3541 = vshrl.u32 %v3540, 7
      %v3542 = vsub.s32 %v3539, %v3541
      %v3543 = vrot.slane %v3536, %v3542
      %v3545 = vunpack.c.l.s4 1966171168
      %v3546 = vunpack.c.0.s8 %v3545
      %v3547 = vlaneseq
      %v3548 = vshrl.u32 %v3547, 7
      %v3549 = vsub.s32 %v3546, %v3548
      %v3550 = vrot.slane %v3543, %v3549
      %v3552 = vlaneseq
      %vm3553 = vcmp.ge.s32.totalorder %v3552, 0
      %vm3554 = vcmp.lt.s32.totalorder %v3552, 256
      %vm3555 = vmand %vm3553, %vm3554
      %3556 = vst.msk [vmem:[%s426] sm:$0x3] %vm3555, %v3550
      %p3557 = scmp.lt.s32.totalorder %s24, 1
      %s3558 = scalar_select %p3557, %s24, 1
      %s3559 = smul.addr %s3558, 2
      %s3560 = scalar_lea.vmem %s12, %s3559
      // Predicated region
      $region65: #{fpn_gem_forward.1} parent=63 // pred_check
        %p3561 = pneg %p288
      $region66: #{fpn_gem_forward.1} parent=63 // pred_check_branch
        %3563 = sbr.rel (%p3561) target = $region68
      $region67: #{fpn_gem_forward.1} parent=63 // pred_region
        _
      $region68: #{fpn_gem_forward.1} parent=63 // pred_fallthru
        _
    $region64: #{fpn_gem_forward.1} parent=5 // pred_fallthru
      _
    %p3564 = scmp.le.s32.totalorder 2, %s19
    // Predicated region
    $region69: #{fpn_gem_forward.1} parent=5 // pred_check
      %p3565 = pneg %p3564
    $region70: #{fpn_gem_forward.1} parent=5 // pred_check_branch
      %3567 = sbr.rel (%p3565) target = $region72
    $region71: #{fpn_gem_forward.1} parent=5 // pred_region
      %s3568 = ssub.s32 %s19, 2
      // Predicated region
      $region73: #{fpn_gem_forward.1} parent=71 // pred_check
        %p3569 = pneg %p294
      $region74: #{fpn_gem_forward.1} parent=71 // pred_check_branch
        %3571 = sbr.rel (%p3569) target = $region76
      $region75: #{fpn_gem_forward.1} parent=71 // pred_region
        %p3572 = scmp.lt.s32.totalorder %s25, 1
        %s3573 = scalar_select %p3572, %s25, 1
        %s3574 = smul.addr %s3573, 2
        %s3575 = scalar_lea.vmem %s12, %s3574
      $region76: #{fpn_gem_forward.1} parent=71 // pred_fallthru
        _
    $region72: #{fpn_gem_forward.1} parent=5 // pred_fallthru
      _
  $region6: #{fpn_gem_forward.1} parent=0 // loop_footer
    %s23 = sadd.s32 1, %s19
  $region7: #{fpn_gem_forward.1} parent=0 // loop_footer_branch
    %18 = sbr.rel target = $region3
  $region8: #{fpn_gem_forward.1} parent=0 // loop_exit
    _

</llo_original>
